<compile_context>
chip_gen: v7x
topology: tpu7x:2x2x1
jax: 0.10.0
libtpu: 0.0.40
codegen_flags: <defaults>
</compile_context>

<pallas_src>
import functools

import numpy as np
import jax
import jax.numpy as jnp
from jax import lax
from jax.experimental import pallas as pl
from jax.experimental.pallas import tpu as pltpu


# ----------------------------------------------------------------------------
# In-kernel helpers (all traced once inside the single fused kernel)
# ----------------------------------------------------------------------------
def _apply_act(x, act):
    if act == "relu":
        return jnp.maximum(x, 0.0)
    if act == "tanh":
        return jnp.tanh(x)
    if act == "sigmoid":
        return 0.5 * (jnp.tanh(0.5 * x) + 1.0)      # numerically stable sigmoid (EUP)
    return x


def _batchnorm_train(x, q_ref, gamma_ref, beta_ref, count):
    """Train-mode BatchNorm2d on a lane-dense (N*H, W*C) value.

    q_ref is a (W*C, W*C) 0/1 same-channel indicator: two tiny f32 matmuls fold the
    per-lane column sums into per-channel moments and broadcast them back across W,
    avoiding any in-kernel reshape/relayout.
    """
    s1 = jnp.sum(x, axis=0, keepdims=True)            # (1, W*C) sublane reduce (XLU)
    s2 = jnp.sum(x * x, axis=0, keepdims=True)
    q = q_ref[...]
    inv_cnt = 1.0 / float(count)
    mean_l = jnp.dot(s1, q, preferred_element_type=jnp.float32) * inv_cnt
    ex2_l = jnp.dot(s2, q, preferred_element_type=jnp.float32) * inv_cnt
    var_l = ex2_l - mean_l * mean_l                   # biased var (PyTorch train mode)
    inv_l = lax.rsqrt(var_l + 1e-5)
    return (x - mean_l) * (inv_l * gamma_ref[...]) + beta_ref[...]


def _conv3x3(x, w_ref, N, H, W, Cin):
    """3x3 'same' conv on a lane-dense (N*H, W*Cin) value via 3 banded MXU matmuls.

    Vertical taps: pltpu.roll (XLU) + broadcasted_iota boundary masks (VPU) replace the
    old row-shift matmuls [R1]. H == 1 degenerates to the centre channel matmul [R8].
    """
    NH, WCi = N * H, W * Cin
    xb = x.astype(jnp.bfloat16)
    acc = jnp.dot(xb, w_ref[1], preferred_element_type=jnp.float32)
    if H > 1:
        rows = lax.broadcasted_iota(jnp.int32, (NH, WCi), 0)
        # kernel row ky=0 reads input row i-1 (zero at the top edge of each image)
        up = jnp.where(rows % H != 0, pltpu.roll(x, 1, 0), 0.0).astype(jnp.bfloat16)
        acc = acc + jnp.dot(up, w_ref[0], preferred_element_type=jnp.float32)
        # kernel row ky=2 reads input row i+1 (zero at the bottom edge of each image)
        dn = jnp.where(rows % H != H - 1, pltpu.roll(x, NH - 1, 0),
                       0.0).astype(jnp.bfloat16)
        acc = acc + jnp.dot(dn, w_ref[2], preferred_element_type=jnp.float32)
    return acc


def _resize_and_act(acc, refs, plan, N, scr_a, scr_b):
    """Optional bilinear (align_corners=True) resize, then the activation.

    Height interp is de-kron'ed [R5]: per-image (Ho, H) matrix applied per sample via
    VMEM scratch slices; width interp is one lanes matmul (kron(interp_W.T, I_C),
    TODO(synk): de-kron for large W*Cout [R6]). Resize matmuls stay in f32 for parity.
    """
    act = plan["act"]
    if not plan["resize"]:
        return _apply_act(acc, act)
    H, W, Cout = plan["H"], plan["W"], plan["Cout"]
    Ho, Wo = plan["Ho"], plan["Wo"]
    NH, WCo, WoCo = N * H, W * Cout, Wo * Cout
    ah_ref = next(refs)
    aw_ref = next(refs)
    scr_a[0:NH, 0:WCo] = acc
    for n in range(N):                                   # static unroll over batch
        a_n = scr_a[n * H:(n + 1) * H, 0:WCo]
        if H == 1:
            # align_corners=True with in_size==1 is a pure broadcast of the single row
            t_n = jnp.broadcast_to(a_n, (Ho, WCo))
        else:
            t_n = jnp.dot(ah_ref[...], a_n, preferred_element_type=jnp.float32)
        r_n = jnp.dot(t_n, aw_ref[...], preferred_element_type=jnp.float32)
        scr_b[n * Ho:(n + 1) * Ho, 0:WoCo] = _apply_act(r_n, act)
    return scr_b[0:N * Ho, 0:WoCo]


def _fused_layer(x, refs, plan, N, scr_a, scr_b):
    """One ReLU_CNN layer: [BN] -> conv3x3 -> bias -> [bilinear resize] -> activation."""
    H, W, Cin = plan["H"], plan["W"], plan["Cin"]
    if plan["bn"]:
        q_ref = next(refs)
        g_ref = next(refs)
        be_ref = next(refs)
        x = _batchnorm_train(x, q_ref, g_ref, be_ref, N * H * W)
    w_ref = next(refs)
    b_ref = next(refs)
    acc = _conv3x3(x, w_ref, N, H, W, Cin) + b_ref[...]
    return _resize_and_act(acc, refs, plan, N, scr_a, scr_b)


def _image_sampler_kernel(*refs, N, plans_down, plans_up, n_inputs):
    """Whole ImageSampler forward in one kernel [R2]: down path -> latent concat (fused
    into the first up conv via a weight-row split) -> up path -> output activation."""
    it = iter(refs[:n_inputs])
    o_ref = refs[n_inputs]
    scr_a = refs[n_inputs + 1]
    scr_b = refs[n_inputs + 2]

    x_ref = next(it)
    lat_ref = next(it)

    # --- down path ------------------------------------------------------------
    x = x_ref[...]
    for plan in plans_down:
        x = _fused_layer(x, it, plan, N, scr_a, scr_b)

    # --- channel concat fused into the first up-conv (1x1 spatial) -------------
    p0 = plans_up[0]
    w_ref = next(it)
    b_ref = next(it)
    cd = plans_down[-1]["Cout"]                    # down-latent channels
    cl = p0["Cin"] - cd                            # input-latent channels
    acc = (jnp.dot(x.astype(jnp.bfloat16), w_ref[1, 0:cd, :],
                   preferred_element_type=jnp.float32)
           + jnp.dot(lat_ref[...].astype(jnp.bfloat16), w_ref[1, cd:cd + cl, :],
                     preferred_element_type=jnp.float32)
           + b_ref[...])
    x = _resize_and_act(acc, it, p0, N, scr_a, scr_b)

    # --- remaining up layers ----------------------------------------------------
    for plan in plans_up[1:]:
        x = _fused_layer(x, it, plan, N, scr_a, scr_b)

    o_ref[...] = x.astype(o_ref.dtype)


# ----------------------------------------------------------------------------
# Trace-time constant builders (numpy / plain JAX, run in the wrapper)
# ----------------------------------------------------------------------------
def _interp_matrix(out_size, in_size):
    """Interpolation matrix matching nn.Upsample(mode='bilinear', align_corners=True)."""
    a = np.zeros((out_size, in_size), np.float32)
    scale = 0.0 if out_size == 1 else (in_size - 1) / (out_size - 1)
    for i in range(out_size):
        src = i * scale
        lo = min(int(np.floor(src)), in_size - 1)
        hi = min(lo + 1, in_size - 1)
        frac = src - lo
        a[i, lo] += 1.0 - frac
        a[i, hi] += frac
    return a


def _width_band_selector(w):
    """sel[dx, jx, jo] = 1 iff jx - jo + 1 == dx (builds the banded width-conv weights)."""
    jx = np.arange(w)[:, None]
    jo = np.arange(w)[None, :]
    sel = np.zeros((3, w, w), np.float32)
    for dx in range(3):
        sel[dx] = (jx - jo + 1 == dx).astype(np.float32)
    return sel


def _build_path(layer_params, imdims, channels, output_act, layernorm):
    """Static per-layer plans + flat operand list for one ReLU_CNN path."""
    nconv = len(channels) - 1
    assert len(imdims) == nconv
    plans, operands = [], []
    for li in range(nconv):
        H, W = imdims[li]
        Cin, Cout = channels[li], channels[li + 1]
        is_final = li == nconv - 1
        Ho, Wo = (H, W) if is_final else imdims[li + 1]
        has_resize = (not is_final) and (Ho, Wo) != (H, W)
        has_bn = bool(layernorm) and (li >= 1) and (not is_final)
        act = output_act if is_final else "relu"
        plans.append(dict(H=H, W=W, Cin=Cin, Cout=Cout, Ho=Ho, Wo=Wo,
                          bn=has_bn, resize=has_resize, act=act))
        p = layer_params[li]
        WCi, WCo = W * Cin, W * Cout
        if has_bn:
            lanes = np.arange(WCi)
            q = (lanes[:, None] % Cin == lanes[None, :] % Cin).astype(np.float32)
            operands.append(jnp.asarray(q))                                    # (WCi, WCi)
            operands.append(jnp.tile(p["gamma"].astype(jnp.float32), W).reshape(1, WCi))
            operands.append(jnp.tile(p["beta"].astype(jnp.float32), W).reshape(1, WCi))
        sel = jnp.asarray(_width_band_selector(W))
        wband = jnp.einsum("xab,yxco->yacbo", sel, p["w"].astype(jnp.float32))
        operands.append(wband.reshape(3, WCi, WCo).astype(jnp.bfloat16))       # banded conv
        operands.append(jnp.tile(p["b"].astype(jnp.float32), W).reshape(1, WCo))
        if has_resize:
            ah = _interp_matrix(Ho, H)                                         # (Ho, H)
            awk = np.kron(_interp_matrix(Wo, W).T, np.eye(Cout, dtype=np.float32))
            operands.append(jnp.asarray(ah, jnp.float32))
            operands.append(jnp.asarray(awk, jnp.float32))
    return plans, operands


def _scratch_dims(plans, N):
    mr, mc = 8, 128
    for p in plans:
        if p["resize"]:
            mr = max(mr, N * p["H"], N * p["Ho"])
            mc = max(mc, p["W"] * p["Cout"], p["Wo"] * p["Cout"])
    return (-(-mr // 8) * 8, -(-mc // 128) * 128)


# ----------------------------------------------------------------------------
# Model forward (single pallas_call)
# ----------------------------------------------------------------------------
def image_sampler_forward(params, cfg, input_image_nchw, latent):
    """Mirror of ImageSampler.forward: input_image NCHW, latent (N, latent_dim)."""
    x_nhwc = jnp.transpose(input_image_nchw, (0, 2, 3, 1)).astype(jnp.float32)
    N, H0, W0, C0 = x_nhwc.shape
    if latent.ndim == 4:                                   # (N, L, 1, 1) NCHW-style
        latent = latent.reshape(latent.shape[0], latent.shape[1])
    latent = latent.astype(jnp.float32)

    plans_d, ops_d = _build_path(params["down"], cfg["down_imdims"],
                                 cfg["down_channels"], "none", True)
    plans_u, ops_u = _build_path(params["up"], cfg["up_imdims"],
                                 cfg["up_channels"], "tanh", True)
    # ImageSampler's up path always starts at 1x1, which lets us fuse the channel concat
    # into the first up-conv by splitting its weight rows.
    assert plans_u[0]["H"] == 1 and plans_u[0]["W"] == 1 and not plans_u[0]["bn"]
    assert plans_u[0]["Cin"] == plans_d[-1]["Cout"] + latent.shape[1]
    assert (H0, W0) == tuple(cfg["down_imdims"][0]) and C0 == cfg["down_channels"][0]

    x2d = x_nhwc.reshape(N * H0, W0 * C0)                  # lane-dense rows=(n,i), lanes=(j,c)
    inputs = [x2d, latent] + ops_d + ops_u
    n_inputs = len(inputs)

    hf, wf, cf = plans_u[-1]["H"], plans_u[-1]["W"], plans_u[-1]["Cout"]
    mr, mc = _scratch_dims(plans_d + plans_u, N)

    kern = functools.partial(_image_sampler_kernel, N=N, plans_down=plans_d,
                             plans_up=plans_u, n_inputs=n_inputs)
    out2d = pl.pallas_call(
        kern,
        out_shape=jax.ShapeDtypeStruct((N * hf, wf * cf), jnp.float32),
        # Grid-less call: one kernel invocation, whole operands resident in VMEM,
        # no pipeline => single-buffered operands [R4].
        scratch_shapes=[pltpu.VMEM((mr, mc), jnp.float32),
                        pltpu.VMEM((mr, mc), jnp.float32)],
        compiler_params=pltpu.CompilerParams(vmem_limit_bytes=32 * 1024 * 1024),
    )(*inputs)

    out = out2d.reshape(N, hf, wf, cf)
    return jnp.transpose(out, (0, 3, 1, 2))                # NHWC -> NCHW


# ----------------------------------------------------------------------------
# Config + parameter init (PyTorch-equivalent synthetic init)
# ----------------------------------------------------------------------------
def make_image_sampler_config(input_im_size, output_im_size, downsampler_layers,
                              upsampler_layers, downsampler_channels, upsampler_channels):
    latent_dim = upsampler_channels[0] - downsampler_channels[-1]
    assert latent_dim > 0, "The input latent code must have dimensionality greater than zero."
    d_scale = input_im_size ** (-1.0 / (downsampler_layers - 1))
    u_scale = output_im_size ** (1.0 / (upsampler_layers - 1))
    d_imdims = ([input_im_size]
                + [int(input_im_size * d_scale ** k) for k in range(1, downsampler_layers - 1)]
                + [1])
    u_imdims = ([1]
                + [int(u_scale ** k) for k in range(1, upsampler_layers - 1)]
                + [output_im_size])
    return dict(latent_dim=latent_dim,
                down_imdims=[(s, s) for s in d_imdims],
                up_imdims=[(s, s) for s in u_imdims],
                down_channels=list(downsampler_channels),
                up_channels=list(upsampler_channels))


def _init_conv(key, cin, cout, ksize=3):
    k1, k2 = jax.random.split(key)
    bound = 1.0 / np.sqrt(cin * ksize * ksize)
    # HWIO layout (PyTorch Conv2d is OIHW; synthetic init, so init directly in HWIO).
    w = jax.random.uniform(k1, (ksize, ksize, cin, cout), jnp.float32, -bound, bound)
    b = jax.random.uniform(k2, (cout,), jnp.float32, -bound, bound)
    return w, b


def _init_relu_cnn(key, channels, layernorm):
    nconv = len(channels) - 1
    layers = []
    for li in range(nconv):
        key, sub = jax.random.split(key)
        w, b = _init_conv(sub, channels[li], channels[li + 1])
        layer = {"w": w, "b": b}
        if layernorm and li >= 1 and li != nconv - 1:
            layer["gamma"] = jnp.ones((channels[li],), jnp.float32)   # BN affine defaults
            layer["beta"] = jnp.zeros((channels[li],), jnp.float32)
        layers.append(layer)
    return layers


def init_image_sampler_params(key, cfg):
    kd, ku = jax.random.split(key)
    return {"down": _init_relu_cnn(kd, cfg["down_channels"], True),
            "up": _init_relu_cnn(ku, cfg["up_channels"], True)}


# ----------------------------------------------------------------------------
# Example run
# ----------------------------------------------------------------------------
if __name__ == "__main__":
    cfg = make_image_sampler_config(
        input_im_size=16,
        output_im_size=16,
        downsampler_layers=3,
        upsampler_layers=3,
        downsampler_channels=[4, 8, 8, 8],   # downsampler output latent dim = 8
        upsampler_channels=[12, 8, 8, 4],    # input latent dim = 12 - 8 = 4
    )

    key = jax.random.PRNGKey(0)
    key, kp, kx, kl = jax.random.split(key, 4)
    params = init_image_sampler_params(kp, cfg)

    input_image = jax.random.normal(kx, (2, 4, 16, 16), dtype=jnp.float32)   # NCHW
    latent = jax.random.normal(kl, (2, cfg["latent_dim"]), dtype=jnp.float32)

    @jax.jit
    def fwd(p, img, lat):
        return image_sampler_forward(p, cfg, img, lat)

    out = jax.block_until_ready(fwd(params, input_image, latent))

    assert out.shape == (2, 4, 16, 16), out.shape
    assert bool(jnp.all(jnp.isfinite(out)))
    assert bool(jnp.all(jnp.abs(out) <= 1.0 + 1e-6))   # tanh output range
    print("KERNEL_OK")
</pallas_src>

<mosaic_0001>
module attributes {stable_mosaic.version = 11 : i64} {
  func.func @_image_sampler_kernel(%arg0: memref<32x64xf32, #tpu.memory_space<vmem>>, %arg1: memref<2x4xf32, #tpu.memory_space<vmem>>, %arg2: memref<3x64x128xbf16, #tpu.memory_space<vmem>>, %arg3: memref<1x128xf32, #tpu.memory_space<vmem>>, %arg4: memref<4x16xf32, #tpu.memory_space<vmem>>, %arg5: memref<128x32xf32, #tpu.memory_space<vmem>>, %arg6: memref<32x32xf32, #tpu.memory_space<vmem>>, %arg7: memref<1x32xf32, #tpu.memory_space<vmem>>, %arg8: memref<1x32xf32, #tpu.memory_space<vmem>>, %arg9: memref<3x32x32xbf16, #tpu.memory_space<vmem>>, %arg10: memref<1x32xf32, #tpu.memory_space<vmem>>, %arg11: memref<1x4xf32, #tpu.memory_space<vmem>>, %arg12: memref<32x8xf32, #tpu.memory_space<vmem>>, %arg13: memref<3x8x8xbf16, #tpu.memory_space<vmem>>, %arg14: memref<1x8xf32, #tpu.memory_space<vmem>>, %arg15: memref<3x12x8xbf16, #tpu.memory_space<vmem>>, %arg16: memref<1x8xf32, #tpu.memory_space<vmem>>, %arg17: memref<4x1xf32, #tpu.memory_space<vmem>>, %arg18: memref<8x32xf32, #tpu.memory_space<vmem>>, %arg19: memref<32x32xf32, #tpu.memory_space<vmem>>, %arg20: memref<1x32xf32, #tpu.memory_space<vmem>>, %arg21: memref<1x32xf32, #tpu.memory_space<vmem>>, %arg22: memref<3x32x32xbf16, #tpu.memory_space<vmem>>, %arg23: memref<1x32xf32, #tpu.memory_space<vmem>>, %arg24: memref<16x4xf32, #tpu.memory_space<vmem>>, %arg25: memref<32x128xf32, #tpu.memory_space<vmem>>, %arg26: memref<3x128x64xbf16, #tpu.memory_space<vmem>>, %arg27: memref<1x64xf32, #tpu.memory_space<vmem>>, %arg28: memref<32x64xf32, #tpu.memory_space<vmem>>, %arg29: memref<32x128xf32, #tpu.memory_space<vmem>>, %arg30: memref<32x128xf32, #tpu.memory_space<vmem>>) attributes {dimension_semantics = [], scalar_prefetch = 0 : i64, scratch_operands = 2 : i64, tpu.core_type = #tpu.core_type<tc>} {
    %c0 = arith.constant 0 : index
    %c0_0 = arith.constant 0 : index
    %0 = vector.load %arg0[%c0, %c0_0] : memref<32x64xf32, #tpu.memory_space<vmem>>, vector<32x64xf32>
    %1 = arith.truncf %0 : vector<32x64xf32> to vector<32x64xbf16>
    %c1 = arith.constant 1 : index
    %c0_1 = arith.constant 0 : index
    %c0_2 = arith.constant 0 : index
    %2 = vector.load %arg2[%c1, %c0_1, %c0_2] : memref<3x64x128xbf16, #tpu.memory_space<vmem>>, vector<1x64x128xbf16>
    %3 = vector.shape_cast %2 : vector<1x64x128xbf16> to vector<64x128xbf16>
    %cst = arith.constant dense<0.000000e+00> : vector<32x128xf32>
    %4 = tpu.matmul %1, %3, %cst {dimension_numbers = #tpu.dot_dimension_numbers<[1], [0], [0], [1], [0, 0, 1, 1], [], []>} : vector<32x64xbf16>, vector<64x128xbf16>, vector<32x128xf32> -> vector<32x128xf32>
    %5 = tpu.iota {dimensions = array<i32: 0>} : vector<32x64xi32>
    %c16_i32 = arith.constant 16 : i32
    %c0_i32 = arith.constant 0 : i32
    %6 = arith.cmpi eq, %c16_i32, %c0_i32 : i32
    %c1_i32 = arith.constant 1 : i32
    %7 = arith.select %6, %c1_i32, %c16_i32 : i32
    %8 = vector.broadcast %7 : i32 to vector<32x64xi32>
    %9 = arith.remsi %5, %8 : vector<32x64xi32>
    %c0_i32_3 = arith.constant 0 : i32
    %10 = vector.broadcast %c0_i32_3 : i32 to vector<32x64xi32>
    %11 = arith.cmpi ne, %9, %10 : vector<32x64xi32>
    %c0_i32_4 = arith.constant 0 : i32
    %12 = vector.broadcast %c0_i32_4 : i32 to vector<32x64xi32>
    %13 = arith.cmpi slt, %9, %12 : vector<32x64xi32>
    %c0_i32_5 = arith.constant 0 : i32
    %14 = arith.cmpi slt, %7, %c0_i32_5 : i32
    %15 = vector.broadcast %14 : i1 to vector<32x64xi1>
    %16 = vector.broadcast %15 : vector<32x64xi1> to vector<32x64xi1>
    %17 = arith.xori %13, %16 : vector<32x64xi1>
    %18 = arith.andi %17, %11 : vector<32x64xi1>
    %19 = vector.broadcast %7 : i32 to vector<32x64xi32>
    %20 = arith.addi %9, %19 : vector<32x64xi32>
    %21 = arith.select %18, %20, %9 : vector<32x64xi1>, vector<32x64xi32>
    %c0_i32_6 = arith.constant 0 : i32
    %22 = vector.broadcast %c0_i32_6 : i32 to vector<32x64xi32>
    %23 = arith.cmpi ne, %21, %22 : vector<32x64xi32>
    %c1_i32_7 = arith.constant 1 : i32
    %24 = tpu.dynamic_rotate %0 by %c1_i32_7 dim 0 : vector<32x64xf32>, i32 -> vector<32x64xf32>
    %cst_8 = arith.constant 0.000000e+00 : f32
    %25 = vector.broadcast %cst_8 : f32 to vector<32x64xf32>
    %26 = arith.select %23, %24, %25 : vector<32x64xi1>, vector<32x64xf32>
    %27 = arith.truncf %26 : vector<32x64xf32> to vector<32x64xbf16>
    %c0_9 = arith.constant 0 : index
    %c0_10 = arith.constant 0 : index
    %c0_11 = arith.constant 0 : index
    %28 = vector.load %arg2[%c0_9, %c0_10, %c0_11] : memref<3x64x128xbf16, #tpu.memory_space<vmem>>, vector<1x64x128xbf16>
    %29 = vector.shape_cast %28 : vector<1x64x128xbf16> to vector<64x128xbf16>
    %cst_12 = arith.constant dense<0.000000e+00> : vector<32x128xf32>
    %30 = tpu.matmul %27, %29, %cst_12 {dimension_numbers = #tpu.dot_dimension_numbers<[1], [0], [0], [1], [0, 0, 1, 1], [], []>} : vector<32x64xbf16>, vector<64x128xbf16>, vector<32x128xf32> -> vector<32x128xf32>
    %31 = arith.addf %4, %30 : vector<32x128xf32>
    %c16_i32_13 = arith.constant 16 : i32
    %c0_i32_14 = arith.constant 0 : i32
    %32 = arith.cmpi eq, %c16_i32_13, %c0_i32_14 : i32
    %c1_i32_15 = arith.constant 1 : i32
    %33 = arith.select %32, %c1_i32_15, %c16_i32_13 : i32
    %34 = vector.broadcast %33 : i32 to vector<32x64xi32>
    %35 = arith.remsi %5, %34 : vector<32x64xi32>
    %c0_i32_16 = arith.constant 0 : i32
    %36 = vector.broadcast %c0_i32_16 : i32 to vector<32x64xi32>
    %37 = arith.cmpi ne, %35, %36 : vector<32x64xi32>
    %c0_i32_17 = arith.constant 0 : i32
    %38 = vector.broadcast %c0_i32_17 : i32 to vector<32x64xi32>
    %39 = arith.cmpi slt, %35, %38 : vector<32x64xi32>
    %c0_i32_18 = arith.constant 0 : i32
    %40 = arith.cmpi slt, %33, %c0_i32_18 : i32
    %41 = vector.broadcast %40 : i1 to vector<32x64xi1>
    %42 = vector.broadcast %41 : vector<32x64xi1> to vector<32x64xi1>
    %43 = arith.xori %39, %42 : vector<32x64xi1>
    %44 = arith.andi %43, %37 : vector<32x64xi1>
    %45 = vector.broadcast %33 : i32 to vector<32x64xi32>
    %46 = arith.addi %35, %45 : vector<32x64xi32>
    %47 = arith.select %44, %46, %35 : vector<32x64xi1>, vector<32x64xi32>
    %c15_i32 = arith.constant 15 : i32
    %48 = vector.broadcast %c15_i32 : i32 to vector<32x64xi32>
    %49 = arith.cmpi ne, %47, %48 : vector<32x64xi32>
    %c31_i32 = arith.constant 31 : i32
    %50 = tpu.dynamic_rotate %0 by %c31_i32 dim 0 : vector<32x64xf32>, i32 -> vector<32x64xf32>
    %cst_19 = arith.constant 0.000000e+00 : f32
    %51 = vector.broadcast %cst_19 : f32 to vector<32x64xf32>
    %52 = arith.select %49, %50, %51 : vector<32x64xi1>, vector<32x64xf32>
    %53 = arith.truncf %52 : vector<32x64xf32> to vector<32x64xbf16>
    %c2 = arith.constant 2 : index
    %c0_20 = arith.constant 0 : index
    %c0_21 = arith.constant 0 : index
    %54 = vector.load %arg2[%c2, %c0_20, %c0_21] : memref<3x64x128xbf16, #tpu.memory_space<vmem>>, vector<1x64x128xbf16>
    %55 = vector.shape_cast %54 : vector<1x64x128xbf16> to vector<64x128xbf16>
    %cst_22 = arith.constant dense<0.000000e+00> : vector<32x128xf32>
    %56 = tpu.matmul %53, %55, %cst_22 {dimension_numbers = #tpu.dot_dimension_numbers<[1], [0], [0], [1], [0, 0, 1, 1], [], []>} : vector<32x64xbf16>, vector<64x128xbf16>, vector<32x128xf32> -> vector<32x128xf32>
    %57 = arith.addf %31, %56 : vector<32x128xf32>
    %c0_23 = arith.constant 0 : index
    %c0_24 = arith.constant 0 : index
    %58 = vector.load %arg3[%c0_23, %c0_24] : memref<1x128xf32, #tpu.memory_space<vmem>>, vector<1x128xf32>
    %59 = vector.broadcast %58 : vector<1x128xf32> to vector<32x128xf32>
    %60 = arith.addf %57, %59 : vector<32x128xf32>
    %c0_25 = arith.constant 0 : index
    %c0_26 = arith.constant 0 : index
    %61 = vector.load %arg29[%c0_25, %c0_26] : memref<32x128xf32, #tpu.memory_space<vmem>>, vector<32x128xf32>
    tpu.vector_store %arg29[%c0_25, %c0_26], %60 {strides = array<i32>} : memref<32x128xf32, #tpu.memory_space<vmem>>, vector<32x128xf32>,
    %c0_27 = arith.constant 0 : index
    %c0_28 = arith.constant 0 : index
    %62 = vector.load %arg29[%c0_27, %c0_28] : memref<32x128xf32, #tpu.memory_space<vmem>>, vector<16x128xf32>
    %c0_29 = arith.constant 0 : index
    %c0_30 = arith.constant 0 : index
    %63 = vector.load %arg4[%c0_29, %c0_30] : memref<4x16xf32, #tpu.memory_space<vmem>>, vector<4x16xf32>
    %cst_31 = arith.constant dense<0.000000e+00> : vector<4x128xf32>
    %64 = tpu.matmul %63, %62, %cst_31 {dimension_numbers = #tpu.dot_dimension_numbers<[1], [0], [0], [1], [0, 0, 1, 1], [], []>} : vector<4x16xf32>, vector<16x128xf32>, vector<4x128xf32> -> vector<4x128xf32>
    %c0_32 = arith.constant 0 : index
    %c0_33 = arith.constant 0 : index
    %65 = vector.load %arg5[%c0_32, %c0_33] : memref<128x32xf32, #tpu.memory_space<vmem>>, vector<128x32xf32>
    %cst_34 = arith.constant dense<0.000000e+00> : vector<4x32xf32>
    %66 = tpu.matmul %64, %65, %cst_34 {dimension_numbers = #tpu.dot_dimension_numbers<[1], [0], [0], [1], [0, 0, 1, 1], [], []>} : vector<4x128xf32>, vector<128x32xf32>, vector<4x32xf32> -> vector<4x32xf32>
    %cst_35 = arith.constant 0.000000e+00 : f32
    %67 = vector.broadcast %cst_35 : f32 to vector<4x32xf32>
    %68 = arith.maximumf %66, %67 : vector<4x32xf32>
    %c0_36 = arith.constant 0 : index
    %c0_37 = arith.constant 0 : index
    %69 = vector.load %arg30[%c0_36, %c0_37] : memref<32x128xf32, #tpu.memory_space<vmem>>, vector<4x32xf32>
    tpu.vector_store %arg30[%c0_36, %c0_37], %68 {strides = array<i32>} : memref<32x128xf32, #tpu.memory_space<vmem>>, vector<4x32xf32>,
    %c16 = arith.constant 16 : index
    %c0_38 = arith.constant 0 : index
    %70 = vector.load %arg29[%c16, %c0_38] : memref<32x128xf32, #tpu.memory_space<vmem>>, vector<16x128xf32>
    %c0_39 = arith.constant 0 : index
    %c0_40 = arith.constant 0 : index
    %71 = vector.load %arg4[%c0_39, %c0_40] : memref<4x16xf32, #tpu.memory_space<vmem>>, vector<4x16xf32>
    %cst_41 = arith.constant dense<0.000000e+00> : vector<4x128xf32>
    %72 = tpu.matmul %71, %70, %cst_41 {dimension_numbers = #tpu.dot_dimension_numbers<[1], [0], [0], [1], [0, 0, 1, 1], [], []>} : vector<4x16xf32>, vector<16x128xf32>, vector<4x128xf32> -> vector<4x128xf32>
    %c0_42 = arith.constant 0 : index
    %c0_43 = arith.constant 0 : index
    %73 = vector.load %arg5[%c0_42, %c0_43] : memref<128x32xf32, #tpu.memory_space<vmem>>, vector<128x32xf32>
    %cst_44 = arith.constant dense<0.000000e+00> : vector<4x32xf32>
    %74 = tpu.matmul %72, %73, %cst_44 {dimension_numbers = #tpu.dot_dimension_numbers<[1], [0], [0], [1], [0, 0, 1, 1], [], []>} : vector<4x128xf32>, vector<128x32xf32>, vector<4x32xf32> -> vector<4x32xf32>
    %cst_45 = arith.constant 0.000000e+00 : f32
    %75 = vector.broadcast %cst_45 : f32 to vector<4x32xf32>
    %76 = arith.maximumf %74, %75 : vector<4x32xf32>
    %c4 = arith.constant 4 : index
    %c0_46 = arith.constant 0 : index
    %77 = vector.load %arg30[%c4, %c0_46] : memref<32x128xf32, #tpu.memory_space<vmem>>, vector<4x32xf32>
    tpu.vector_store %arg30[%c4, %c0_46], %76 {strides = array<i32>} : memref<32x128xf32, #tpu.memory_space<vmem>>, vector<4x32xf32>,
    %c0_47 = arith.constant 0 : index
    %c0_48 = arith.constant 0 : index
    %78 = vector.load %arg30[%c0_47, %c0_48] : memref<32x128xf32, #tpu.memory_space<vmem>>, vector<8x32xf32>
    %cst_49 = arith.constant dense<0.000000e+00> : vector<32xf32>
    %79 = vector.multi_reduction <add>, %78, %cst_49 [0] : vector<8x32xf32> to vector<32xf32>
    %80 = vector.shape_cast %79 : vector<32xf32> to vector<1x32xf32>
    %81 = arith.mulf %78, %78 : vector<8x32xf32>
    %cst_50 = arith.constant dense<0.000000e+00> : vector<32xf32>
    %82 = vector.multi_reduction <add>, %81, %cst_50 [0] : vector<8x32xf32> to vector<32xf32>
    %83 = vector.shape_cast %82 : vector<32xf32> to vector<1x32xf32>
    %c0_51 = arith.constant 0 : index
    %c0_52 = arith.constant 0 : index
    %84 = vector.load %arg6[%c0_51, %c0_52] : memref<32x32xf32, #tpu.memory_space<vmem>>, vector<32x32xf32>
    %cst_53 = arith.constant dense<0.000000e+00> : vector<1x32xf32>
    %85 = tpu.matmul %80, %84, %cst_53 {dimension_numbers = #tpu.dot_dimension_numbers<[1], [0], [0], [1], [0, 0, 1, 1], [], []>} : vector<1x32xf32>, vector<32x32xf32>, vector<1x32xf32> -> vector<1x32xf32>
    %cst_54 = arith.constant 3.125000e-02 : f32
    %86 = vector.broadcast %cst_54 : f32 to vector<1x32xf32>
    %87 = arith.mulf %85, %86 : vector<1x32xf32>
    %cst_55 = arith.constant dense<0.000000e+00> : vector<1x32xf32>
    %88 = tpu.matmul %83, %84, %cst_55 {dimension_numbers = #tpu.dot_dimension_numbers<[1], [0], [0], [1], [0, 0, 1, 1], [], []>} : vector<1x32xf32>, vector<32x32xf32>, vector<1x32xf32> -> vector<1x32xf32>
    %cst_56 = arith.constant 3.125000e-02 : f32
    %89 = vector.broadcast %cst_56 : f32 to vector<1x32xf32>
    %90 = arith.mulf %88, %89 : vector<1x32xf32>
    %91 = arith.mulf %87, %87 : vector<1x32xf32>
    %92 = arith.subf %90, %91 : vector<1x32xf32>
    %cst_57 = arith.constant 9.99999974E-6 : f32
    %93 = vector.broadcast %cst_57 : f32 to vector<1x32xf32>
    %94 = arith.addf %92, %93 : vector<1x32xf32>
    %95 = math.rsqrt %94 : vector<1x32xf32>
    %96 = vector.broadcast %87 : vector<1x32xf32> to vector<8x32xf32>
    %97 = arith.subf %78, %96 : vector<8x32xf32>
    %c0_58 = arith.constant 0 : index
    %c0_59 = arith.constant 0 : index
    %98 = vector.load %arg7[%c0_58, %c0_59] : memref<1x32xf32, #tpu.memory_space<vmem>>, vector<1x32xf32>
    %99 = arith.mulf %95, %98 : vector<1x32xf32>
    %100 = vector.broadcast %99 : vector<1x32xf32> to vector<8x32xf32>
    %101 = arith.mulf %97, %100 : vector<8x32xf32>
    %c0_60 = arith.constant 0 : index
    %c0_61 = arith.constant 0 : index
    %102 = vector.load %arg8[%c0_60, %c0_61] : memref<1x32xf32, #tpu.memory_space<vmem>>, vector<1x32xf32>
    %103 = vector.broadcast %102 : vector<1x32xf32> to vector<8x32xf32>
    %104 = arith.addf %101, %103 : vector<8x32xf32>
    %105 = arith.truncf %104 : vector<8x32xf32> to vector<8x32xbf16>
    %c1_62 = arith.constant 1 : index
    %c0_63 = arith.constant 0 : index
    %c0_64 = arith.constant 0 : index
    %106 = vector.load %arg9[%c1_62, %c0_63, %c0_64] : memref<3x32x32xbf16, #tpu.memory_space<vmem>>, vector<1x32x32xbf16>
    %107 = vector.shape_cast %106 : vector<1x32x32xbf16> to vector<32x32xbf16>
    %cst_65 = arith.constant dense<0.000000e+00> : vector<8x32xf32>
    %108 = tpu.matmul %105, %107, %cst_65 {dimension_numbers = #tpu.dot_dimension_numbers<[1], [0], [0], [1], [0, 0, 1, 1], [], []>} : vector<8x32xbf16>, vector<32x32xbf16>, vector<8x32xf32> -> vector<8x32xf32>
    %109 = tpu.iota {dimensions = array<i32: 0>} : vector<8x32xi32>
    %c4_i32 = arith.constant 4 : i32
    %c0_i32_66 = arith.constant 0 : i32
    %110 = arith.cmpi eq, %c4_i32, %c0_i32_66 : i32
    %c1_i32_67 = arith.constant 1 : i32
    %111 = arith.select %110, %c1_i32_67, %c4_i32 : i32
    %112 = vector.broadcast %111 : i32 to vector<8x32xi32>
    %113 = arith.remsi %109, %112 : vector<8x32xi32>
    %c0_i32_68 = arith.constant 0 : i32
    %114 = vector.broadcast %c0_i32_68 : i32 to vector<8x32xi32>
    %115 = arith.cmpi ne, %113, %114 : vector<8x32xi32>
    %c0_i32_69 = arith.constant 0 : i32
    %116 = vector.broadcast %c0_i32_69 : i32 to vector<8x32xi32>
    %117 = arith.cmpi slt, %113, %116 : vector<8x32xi32>
    %c0_i32_70 = arith.constant 0 : i32
    %118 = arith.cmpi slt, %111, %c0_i32_70 : i32
    %119 = vector.broadcast %118 : i1 to vector<8x32xi1>
    %120 = vector.broadcast %119 : vector<8x32xi1> to vector<8x32xi1>
    %121 = arith.xori %117, %120 : vector<8x32xi1>
    %122 = arith.andi %121, %115 : vector<8x32xi1>
    %123 = vector.broadcast %111 : i32 to vector<8x32xi32>
    %124 = arith.addi %113, %123 : vector<8x32xi32>
    %125 = arith.select %122, %124, %113 : vector<8x32xi1>, vector<8x32xi32>
    %c0_i32_71 = arith.constant 0 : i32
    %126 = vector.broadcast %c0_i32_71 : i32 to vector<8x32xi32>
    %127 = arith.cmpi ne, %125, %126 : vector<8x32xi32>
    %c1_i32_72 = arith.constant 1 : i32
    %128 = tpu.dynamic_rotate %104 by %c1_i32_72 dim 0 : vector<8x32xf32>, i32 -> vector<8x32xf32>
    %cst_73 = arith.constant 0.000000e+00 : f32
    %129 = vector.broadcast %cst_73 : f32 to vector<8x32xf32>
    %130 = arith.select %127, %128, %129 : vector<8x32xi1>, vector<8x32xf32>
    %131 = arith.truncf %130 : vector<8x32xf32> to vector<8x32xbf16>
    %c0_74 = arith.constant 0 : index
    %c0_75 = arith.constant 0 : index
    %c0_76 = arith.constant 0 : index
    %132 = vector.load %arg9[%c0_74, %c0_75, %c0_76] : memref<3x32x32xbf16, #tpu.memory_space<vmem>>, vector<1x32x32xbf16>
    %133 = vector.shape_cast %132 : vector<1x32x32xbf16> to vector<32x32xbf16>
    %cst_77 = arith.constant dense<0.000000e+00> : vector<8x32xf32>
    %134 = tpu.matmul %131, %133, %cst_77 {dimension_numbers = #tpu.dot_dimension_numbers<[1], [0], [0], [1], [0, 0, 1, 1], [], []>} : vector<8x32xbf16>, vector<32x32xbf16>, vector<8x32xf32> -> vector<8x32xf32>
    %135 = arith.addf %108, %134 : vector<8x32xf32>
    %c4_i32_78 = arith.constant 4 : i32
    %c0_i32_79 = arith.constant 0 : i32
    %136 = arith.cmpi eq, %c4_i32_78, %c0_i32_79 : i32
    %c1_i32_80 = arith.constant 1 : i32
    %137 = arith.select %136, %c1_i32_80, %c4_i32_78 : i32
    %138 = vector.broadcast %137 : i32 to vector<8x32xi32>
    %139 = arith.remsi %109, %138 : vector<8x32xi32>
    %c0_i32_81 = arith.constant 0 : i32
    %140 = vector.broadcast %c0_i32_81 : i32 to vector<8x32xi32>
    %141 = arith.cmpi ne, %139, %140 : vector<8x32xi32>
    %c0_i32_82 = arith.constant 0 : i32
    %142 = vector.broadcast %c0_i32_82 : i32 to vector<8x32xi32>
    %143 = arith.cmpi slt, %139, %142 : vector<8x32xi32>
    %c0_i32_83 = arith.constant 0 : i32
    %144 = arith.cmpi slt, %137, %c0_i32_83 : i32
    %145 = vector.broadcast %144 : i1 to vector<8x32xi1>
    %146 = vector.broadcast %145 : vector<8x32xi1> to vector<8x32xi1>
    %147 = arith.xori %143, %146 : vector<8x32xi1>
    %148 = arith.andi %147, %141 : vector<8x32xi1>
    %149 = vector.broadcast %137 : i32 to vector<8x32xi32>
    %150 = arith.addi %139, %149 : vector<8x32xi32>
    %151 = arith.select %148, %150, %139 : vector<8x32xi1>, vector<8x32xi32>
    %c3_i32 = arith.constant 3 : i32
    %152 = vector.broadcast %c3_i32 : i32 to vector<8x32xi32>
    %153 = arith.cmpi ne, %151, %152 : vector<8x32xi32>
    %c7_i32 = arith.constant 7 : i32
    %154 = tpu.dynamic_rotate %104 by %c7_i32 dim 0 : vector<8x32xf32>, i32 -> vector<8x32xf32>
    %cst_84 = arith.constant 0.000000e+00 : f32
    %155 = vector.broadcast %cst_84 : f32 to vector<8x32xf32>
    %156 = arith.select %153, %154, %155 : vector<8x32xi1>, vector<8x32xf32>
    %157 = arith.truncf %156 : vector<8x32xf32> to vector<8x32xbf16>
    %c2_85 = arith.constant 2 : index
    %c0_86 = arith.constant 0 : index
    %c0_87 = arith.constant 0 : index
    %158 = vector.load %arg9[%c2_85, %c0_86, %c0_87] : memref<3x32x32xbf16, #tpu.memory_space<vmem>>, vector<1x32x32xbf16>
    %159 = vector.shape_cast %158 : vector<1x32x32xbf16> to vector<32x32xbf16>
    %cst_88 = arith.constant dense<0.000000e+00> : vector<8x32xf32>
    %160 = tpu.matmul %157, %159, %cst_88 {dimension_numbers = #tpu.dot_dimension_numbers<[1], [0], [0], [1], [0, 0, 1, 1], [], []>} : vector<8x32xbf16>, vector<32x32xbf16>, vector<8x32xf32> -> vector<8x32xf32>
    %161 = arith.addf %135, %160 : vector<8x32xf32>
    %c0_89 = arith.constant 0 : index
    %c0_90 = arith.constant 0 : index
    %162 = vector.load %arg10[%c0_89, %c0_90] : memref<1x32xf32, #tpu.memory_space<vmem>>, vector<1x32xf32>
    %163 = vector.broadcast %162 : vector<1x32xf32> to vector<8x32xf32>
    %164 = arith.addf %161, %163 : vector<8x32xf32>
    %c0_91 = arith.constant 0 : index
    %c0_92 = arith.constant 0 : index
    %165 = vector.load %arg29[%c0_91, %c0_92] : memref<32x128xf32, #tpu.memory_space<vmem>>, vector<8x32xf32>
    tpu.vector_store %arg29[%c0_91, %c0_92], %164 {strides = array<i32>} : memref<32x128xf32, #tpu.memory_space<vmem>>, vector<8x32xf32>,
    %c0_93 = arith.constant 0 : index
    %c0_94 = arith.constant 0 : index
    %166 = vector.load %arg29[%c0_93, %c0_94] : memref<32x128xf32, #tpu.memory_space<vmem>>, vector<4x32xf32>
    %c0_95 = arith.constant 0 : index
    %c0_96 = arith.constant 0 : index
    %167 = vector.load %arg11[%c0_95, %c0_96] : memref<1x4xf32, #tpu.memory_space<vmem>>, vector<1x4xf32>
    %cst_97 = arith.constant dense<0.000000e+00> : vector<1x32xf32>
    %168 = tpu.matmul %167, %166, %cst_97 {dimension_numbers = #tpu.dot_dimension_numbers<[1], [0], [0], [1], [0, 0, 1, 1], [], []>} : vector<1x4xf32>, vector<4x32xf32>, vector<1x32xf32> -> vector<1x32xf32>
    %c0_98 = arith.constant 0 : index
    %c0_99 = arith.constant 0 : index
    %169 = vector.load %arg12[%c0_98, %c0_99] : memref<32x8xf32, #tpu.memory_space<vmem>>, vector<32x8xf32>
    %cst_100 = arith.constant dense<0.000000e+00> : vector<1x8xf32>
    %170 = tpu.matmul %168, %169, %cst_100 {dimension_numbers = #tpu.dot_dimension_numbers<[1], [0], [0], [1], [0, 0, 1, 1], [], []>} : vector<1x32xf32>, vector<32x8xf32>, vector<1x8xf32> -> vector<1x8xf32>
    %cst_101 = arith.constant 0.000000e+00 : f32
    %171 = vector.broadcast %cst_101 : f32 to vector<1x8xf32>
    %172 = arith.maximumf %170, %171 : vector<1x8xf32>
    %c0_102 = arith.constant 0 : index
    %c0_103 = arith.constant 0 : index
    %173 = vector.load %arg30[%c0_102, %c0_103] : memref<32x128xf32, #tpu.memory_space<vmem>>, vector<1x8xf32>
    tpu.vector_store %arg30[%c0_102, %c0_103], %172 {strides = array<i32>} : memref<32x128xf32, #tpu.memory_space<vmem>>, vector<1x8xf32>,
    %c4_104 = arith.constant 4 : index
    %c0_105 = arith.constant 0 : index
    %174 = vector.load %arg29[%c4_104, %c0_105] : memref<32x128xf32, #tpu.memory_space<vmem>>, vector<4x32xf32>
    %c0_106 = arith.constant 0 : index
    %c0_107 = arith.constant 0 : index
    %175 = vector.load %arg11[%c0_106, %c0_107] : memref<1x4xf32, #tpu.memory_space<vmem>>, vector<1x4xf32>
    %cst_108 = arith.constant dense<0.000000e+00> : vector<1x32xf32>
    %176 = tpu.matmul %175, %174, %cst_108 {dimension_numbers = #tpu.dot_dimension_numbers<[1], [0], [0], [1], [0, 0, 1, 1], [], []>} : vector<1x4xf32>, vector<4x32xf32>, vector<1x32xf32> -> vector<1x32xf32>
    %c0_109 = arith.constant 0 : index
    %c0_110 = arith.constant 0 : index
    %177 = vector.load %arg12[%c0_109, %c0_110] : memref<32x8xf32, #tpu.memory_space<vmem>>, vector<32x8xf32>
    %cst_111 = arith.constant dense<0.000000e+00> : vector<1x8xf32>
    %178 = tpu.matmul %176, %177, %cst_111 {dimension_numbers = #tpu.dot_dimension_numbers<[1], [0], [0], [1], [0, 0, 1, 1], [], []>} : vector<1x32xf32>, vector<32x8xf32>, vector<1x8xf32> -> vector<1x8xf32>
    %cst_112 = arith.constant 0.000000e+00 : f32
    %179 = vector.broadcast %cst_112 : f32 to vector<1x8xf32>
    %180 = arith.maximumf %178, %179 : vector<1x8xf32>
    %c1_113 = arith.constant 1 : index
    %c0_114 = arith.constant 0 : index
    %181 = vector.load %arg30[%c1_113, %c0_114] : memref<32x128xf32, #tpu.memory_space<vmem>>, vector<1x8xf32>
    tpu.vector_store %arg30[%c1_113, %c0_114], %180 {strides = array<i32>} : memref<32x128xf32, #tpu.memory_space<vmem>>, vector<1x8xf32>,
    %c0_115 = arith.constant 0 : index
    %c0_116 = arith.constant 0 : index
    %182 = vector.load %arg30[%c0_115, %c0_116] : memref<32x128xf32, #tpu.memory_space<vmem>>, vector<2x8xf32>
    %183 = arith.truncf %182 : vector<2x8xf32> to vector<2x8xbf16>
    %c1_117 = arith.constant 1 : index
    %c0_118 = arith.constant 0 : index
    %c0_119 = arith.constant 0 : index
    %184 = vector.load %arg13[%c1_117, %c0_118, %c0_119] : memref<3x8x8xbf16, #tpu.memory_space<vmem>>, vector<1x8x8xbf16>
    %185 = vector.shape_cast %184 : vector<1x8x8xbf16> to vector<8x8xbf16>
    %cst_120 = arith.constant dense<0.000000e+00> : vector<2x8xf32>
    %186 = tpu.matmul %183, %185, %cst_120 {dimension_numbers = #tpu.dot_dimension_numbers<[1], [0], [0], [1], [0, 0, 1, 1], [], []>} : vector<2x8xbf16>, vector<8x8xbf16>, vector<2x8xf32> -> vector<2x8xf32>
    %c0_121 = arith.constant 0 : index
    %c0_122 = arith.constant 0 : index
    %187 = vector.load %arg14[%c0_121, %c0_122] : memref<1x8xf32, #tpu.memory_space<vmem>>, vector<1x8xf32>
    %188 = vector.broadcast %187 : vector<1x8xf32> to vector<2x8xf32>
    %189 = arith.addf %186, %188 : vector<2x8xf32>
    %190 = arith.truncf %189 : vector<2x8xf32> to vector<2x8xbf16>
    %c1_123 = arith.constant 1 : index
    %c0_124 = arith.constant 0 : index
    %c0_125 = arith.constant 0 : index
    %191 = vector.load %arg15[%c1_123, %c0_124, %c0_125] : memref<3x12x8xbf16, #tpu.memory_space<vmem>>, vector<1x8x8xbf16>
    %192 = vector.shape_cast %191 : vector<1x8x8xbf16> to vector<8x8xbf16>
    %cst_126 = arith.constant dense<0.000000e+00> : vector<2x8xf32>
    %193 = tpu.matmul %190, %192, %cst_126 {dimension_numbers = #tpu.dot_dimension_numbers<[1], [0], [0], [1], [0, 0, 1, 1], [], []>} : vector<2x8xbf16>, vector<8x8xbf16>, vector<2x8xf32> -> vector<2x8xf32>
    %c0_127 = arith.constant 0 : index
    %c0_128 = arith.constant 0 : index
    %194 = vector.load %arg1[%c0_127, %c0_128] : memref<2x4xf32, #tpu.memory_space<vmem>>, vector<2x4xf32>
    %195 = arith.truncf %194 : vector<2x4xf32> to vector<2x4xbf16>
    %c1_129 = arith.constant 1 : index
    %c8 = arith.constant 8 : index
    %c0_130 = arith.constant 0 : index
    %196 = vector.load %arg15[%c1_129, %c8, %c0_130] : memref<3x12x8xbf16, #tpu.memory_space<vmem>>, vector<1x4x8xbf16>
    %197 = vector.shape_cast %196 : vector<1x4x8xbf16> to vector<4x8xbf16>
    %cst_131 = arith.constant dense<0.000000e+00> : vector<2x8xf32>
    %198 = tpu.matmul %195, %197, %cst_131 {dimension_numbers = #tpu.dot_dimension_numbers<[1], [0], [0], [1], [0, 0, 1, 1], [], []>} : vector<2x4xbf16>, vector<4x8xbf16>, vector<2x8xf32> -> vector<2x8xf32>
    %199 = arith.addf %193, %198 : vector<2x8xf32>
    %c0_132 = arith.constant 0 : index
    %c0_133 = arith.constant 0 : index
    %200 = vector.load %arg16[%c0_132, %c0_133] : memref<1x8xf32, #tpu.memory_space<vmem>>, vector<1x8xf32>
    %201 = vector.broadcast %200 : vector<1x8xf32> to vector<2x8xf32>
    %202 = arith.addf %199, %201 : vector<2x8xf32>
    %c0_134 = arith.constant 0 : index
    %c0_135 = arith.constant 0 : index
    %203 = vector.load %arg29[%c0_134, %c0_135] : memref<32x128xf32, #tpu.memory_space<vmem>>, vector<2x8xf32>
    tpu.vector_store %arg29[%c0_134, %c0_135], %202 {strides = array<i32>} : memref<32x128xf32, #tpu.memory_space<vmem>>, vector<2x8xf32>,
    %c0_136 = arith.constant 0 : index
    %c0_137 = arith.constant 0 : index
    %204 = vector.load %arg29[%c0_136, %c0_137] : memref<32x128xf32, #tpu.memory_space<vmem>>, vector<1x8xf32>
    %205 = vector.shape_cast %204 : vector<1x8xf32> to vector<1x8xf32>
    %206 = vector.broadcast %205 : vector<1x8xf32> to vector<4x8xf32>
    %c0_138 = arith.constant 0 : index
    %c0_139 = arith.constant 0 : index
    %207 = vector.load %arg18[%c0_138, %c0_139] : memref<8x32xf32, #tpu.memory_space<vmem>>, vector<8x32xf32>
    %cst_140 = arith.constant dense<0.000000e+00> : vector<4x32xf32>
    %208 = tpu.matmul %206, %207, %cst_140 {dimension_numbers = #tpu.dot_dimension_numbers<[1], [0], [0], [1], [0, 0, 1, 1], [], []>} : vector<4x8xf32>, vector<8x32xf32>, vector<4x32xf32> -> vector<4x32xf32>
    %cst_141 = arith.constant 0.000000e+00 : f32
    %209 = vector.broadcast %cst_141 : f32 to vector<4x32xf32>
    %210 = arith.maximumf %208, %209 : vector<4x32xf32>
    %c0_142 = arith.constant 0 : index
    %c0_143 = arith.constant 0 : index
    %211 = vector.load %arg30[%c0_142, %c0_143] : memref<32x128xf32, #tpu.memory_space<vmem>>, vector<4x32xf32>
    tpu.vector_store %arg30[%c0_142, %c0_143], %210 {strides = array<i32>} : memref<32x128xf32, #tpu.memory_space<vmem>>, vector<4x32xf32>,
    %c1_144 = arith.constant 1 : index
    %c0_145 = arith.constant 0 : index
    %212 = vector.load %arg29[%c1_144, %c0_145] : memref<32x128xf32, #tpu.memory_space<vmem>>, vector<1x8xf32>
    %213 = vector.shape_cast %212 : vector<1x8xf32> to vector<1x8xf32>
    %214 = vector.broadcast %213 : vector<1x8xf32> to vector<4x8xf32>
    %c0_146 = arith.constant 0 : index
    %c0_147 = arith.constant 0 : index
    %215 = vector.load %arg18[%c0_146, %c0_147] : memref<8x32xf32, #tpu.memory_space<vmem>>, vector<8x32xf32>
    %cst_148 = arith.constant dense<0.000000e+00> : vector<4x32xf32>
    %216 = tpu.matmul %214, %215, %cst_148 {dimension_numbers = #tpu.dot_dimension_numbers<[1], [0], [0], [1], [0, 0, 1, 1], [], []>} : vector<4x8xf32>, vector<8x32xf32>, vector<4x32xf32> -> vector<4x32xf32>
    %cst_149 = arith.constant 0.000000e+00 : f32
    %217 = vector.broadcast %cst_149 : f32 to vector<4x32xf32>
    %218 = arith.maximumf %216, %217 : vector<4x32xf32>
    %c4_150 = arith.constant 4 : index
    %c0_151 = arith.constant 0 : index
    %219 = vector.load %arg30[%c4_150, %c0_151] : memref<32x128xf32, #tpu.memory_space<vmem>>, vector<4x32xf32>
    tpu.vector_store %arg30[%c4_150, %c0_151], %218 {strides = array<i32>} : memref<32x128xf32, #tpu.memory_space<vmem>>, vector<4x32xf32>,
    %c0_152 = arith.constant 0 : index
    %c0_153 = arith.constant 0 : index
    %220 = vector.load %arg30[%c0_152, %c0_153] : memref<32x128xf32, #tpu.memory_space<vmem>>, vector<8x32xf32>
    %cst_154 = arith.constant dense<0.000000e+00> : vector<32xf32>
    %221 = vector.multi_reduction <add>, %220, %cst_154 [0] : vector<8x32xf32> to vector<32xf32>
    %222 = vector.shape_cast %221 : vector<32xf32> to vector<1x32xf32>
    %223 = arith.mulf %220, %220 : vector<8x32xf32>
    %cst_155 = arith.constant dense<0.000000e+00> : vector<32xf32>
    %224 = vector.multi_reduction <add>, %223, %cst_155 [0] : vector<8x32xf32> to vector<32xf32>
    %225 = vector.shape_cast %224 : vector<32xf32> to vector<1x32xf32>
    %c0_156 = arith.constant 0 : index
    %c0_157 = arith.constant 0 : index
    %226 = vector.load %arg19[%c0_156, %c0_157] : memref<32x32xf32, #tpu.memory_space<vmem>>, vector<32x32xf32>
    %cst_158 = arith.constant dense<0.000000e+00> : vector<1x32xf32>
    %227 = tpu.matmul %222, %226, %cst_158 {dimension_numbers = #tpu.dot_dimension_numbers<[1], [0], [0], [1], [0, 0, 1, 1], [], []>} : vector<1x32xf32>, vector<32x32xf32>, vector<1x32xf32> -> vector<1x32xf32>
    %cst_159 = arith.constant 3.125000e-02 : f32
    %228 = vector.broadcast %cst_159 : f32 to vector<1x32xf32>
    %229 = arith.mulf %227, %228 : vector<1x32xf32>
    %cst_160 = arith.constant dense<0.000000e+00> : vector<1x32xf32>
    %230 = tpu.matmul %225, %226, %cst_160 {dimension_numbers = #tpu.dot_dimension_numbers<[1], [0], [0], [1], [0, 0, 1, 1], [], []>} : vector<1x32xf32>, vector<32x32xf32>, vector<1x32xf32> -> vector<1x32xf32>
    %cst_161 = arith.constant 3.125000e-02 : f32
    %231 = vector.broadcast %cst_161 : f32 to vector<1x32xf32>
    %232 = arith.mulf %230, %231 : vector<1x32xf32>
    %233 = arith.mulf %229, %229 : vector<1x32xf32>
    %234 = arith.subf %232, %233 : vector<1x32xf32>
    %cst_162 = arith.constant 9.99999974E-6 : f32
    %235 = vector.broadcast %cst_162 : f32 to vector<1x32xf32>
    %236 = arith.addf %234, %235 : vector<1x32xf32>
    %237 = math.rsqrt %236 : vector<1x32xf32>
    %238 = vector.broadcast %229 : vector<1x32xf32> to vector<8x32xf32>
    %239 = arith.subf %220, %238 : vector<8x32xf32>
    %c0_163 = arith.constant 0 : index
    %c0_164 = arith.constant 0 : index
    %240 = vector.load %arg20[%c0_163, %c0_164] : memref<1x32xf32, #tpu.memory_space<vmem>>, vector<1x32xf32>
    %241 = arith.mulf %237, %240 : vector<1x32xf32>
    %242 = vector.broadcast %241 : vector<1x32xf32> to vector<8x32xf32>
    %243 = arith.mulf %239, %242 : vector<8x32xf32>
    %c0_165 = arith.constant 0 : index
    %c0_166 = arith.constant 0 : index
    %244 = vector.load %arg21[%c0_165, %c0_166] : memref<1x32xf32, #tpu.memory_space<vmem>>, vector<1x32xf32>
    %245 = vector.broadcast %244 : vector<1x32xf32> to vector<8x32xf32>
    %246 = arith.addf %243, %245 : vector<8x32xf32>
    %247 = arith.truncf %246 : vector<8x32xf32> to vector<8x32xbf16>
    %c1_167 = arith.constant 1 : index
    %c0_168 = arith.constant 0 : index
    %c0_169 = arith.constant 0 : index
    %248 = vector.load %arg22[%c1_167, %c0_168, %c0_169] : memref<3x32x32xbf16, #tpu.memory_space<vmem>>, vector<1x32x32xbf16>
    %249 = vector.shape_cast %248 : vector<1x32x32xbf16> to vector<32x32xbf16>
    %cst_170 = arith.constant dense<0.000000e+00> : vector<8x32xf32>
    %250 = tpu.matmul %247, %249, %cst_170 {dimension_numbers = #tpu.dot_dimension_numbers<[1], [0], [0], [1], [0, 0, 1, 1], [], []>} : vector<8x32xbf16>, vector<32x32xbf16>, vector<8x32xf32> -> vector<8x32xf32>
    %251 = tpu.iota {dimensions = array<i32: 0>} : vector<8x32xi32>
    %c4_i32_171 = arith.constant 4 : i32
    %c0_i32_172 = arith.constant 0 : i32
    %252 = arith.cmpi eq, %c4_i32_171, %c0_i32_172 : i32
    %c1_i32_173 = arith.constant 1 : i32
    %253 = arith.select %252, %c1_i32_173, %c4_i32_171 : i32
    %254 = vector.broadcast %253 : i32 to vector<8x32xi32>
    %255 = arith.remsi %251, %254 : vector<8x32xi32>
    %c0_i32_174 = arith.constant 0 : i32
    %256 = vector.broadcast %c0_i32_174 : i32 to vector<8x32xi32>
    %257 = arith.cmpi ne, %255, %256 : vector<8x32xi32>
    %c0_i32_175 = arith.constant 0 : i32
    %258 = vector.broadcast %c0_i32_175 : i32 to vector<8x32xi32>
    %259 = arith.cmpi slt, %255, %258 : vector<8x32xi32>
    %c0_i32_176 = arith.constant 0 : i32
    %260 = arith.cmpi slt, %253, %c0_i32_176 : i32
    %261 = vector.broadcast %260 : i1 to vector<8x32xi1>
    %262 = vector.broadcast %261 : vector<8x32xi1> to vector<8x32xi1>
    %263 = arith.xori %259, %262 : vector<8x32xi1>
    %264 = arith.andi %263, %257 : vector<8x32xi1>
    %265 = vector.broadcast %253 : i32 to vector<8x32xi32>
    %266 = arith.addi %255, %265 : vector<8x32xi32>
    %267 = arith.select %264, %266, %255 : vector<8x32xi1>, vector<8x32xi32>
    %c0_i32_177 = arith.constant 0 : i32
    %268 = vector.broadcast %c0_i32_177 : i32 to vector<8x32xi32>
    %269 = arith.cmpi ne, %267, %268 : vector<8x32xi32>
    %c1_i32_178 = arith.constant 1 : i32
    %270 = tpu.dynamic_rotate %246 by %c1_i32_178 dim 0 : vector<8x32xf32>, i32 -> vector<8x32xf32>
    %cst_179 = arith.constant 0.000000e+00 : f32
    %271 = vector.broadcast %cst_179 : f32 to vector<8x32xf32>
    %272 = arith.select %269, %270, %271 : vector<8x32xi1>, vector<8x32xf32>
    %273 = arith.truncf %272 : vector<8x32xf32> to vector<8x32xbf16>
    %c0_180 = arith.constant 0 : index
    %c0_181 = arith.constant 0 : index
    %c0_182 = arith.constant 0 : index
    %274 = vector.load %arg22[%c0_180, %c0_181, %c0_182] : memref<3x32x32xbf16, #tpu.memory_space<vmem>>, vector<1x32x32xbf16>
    %275 = vector.shape_cast %274 : vector<1x32x32xbf16> to vector<32x32xbf16>
    %cst_183 = arith.constant dense<0.000000e+00> : vector<8x32xf32>
    %276 = tpu.matmul %273, %275, %cst_183 {dimension_numbers = #tpu.dot_dimension_numbers<[1], [0], [0], [1], [0, 0, 1, 1], [], []>} : vector<8x32xbf16>, vector<32x32xbf16>, vector<8x32xf32> -> vector<8x32xf32>
    %277 = arith.addf %250, %276 : vector<8x32xf32>
    %c4_i32_184 = arith.constant 4 : i32
    %c0_i32_185 = arith.constant 0 : i32
    %278 = arith.cmpi eq, %c4_i32_184, %c0_i32_185 : i32
    %c1_i32_186 = arith.constant 1 : i32
    %279 = arith.select %278, %c1_i32_186, %c4_i32_184 : i32
    %280 = vector.broadcast %279 : i32 to vector<8x32xi32>
    %281 = arith.remsi %251, %280 : vector<8x32xi32>
    %c0_i32_187 = arith.constant 0 : i32
    %282 = vector.broadcast %c0_i32_187 : i32 to vector<8x32xi32>
    %283 = arith.cmpi ne, %281, %282 : vector<8x32xi32>
    %c0_i32_188 = arith.constant 0 : i32
    %284 = vector.broadcast %c0_i32_188 : i32 to vector<8x32xi32>
    %285 = arith.cmpi slt, %281, %284 : vector<8x32xi32>
    %c0_i32_189 = arith.constant 0 : i32
    %286 = arith.cmpi slt, %279, %c0_i32_189 : i32
    %287 = vector.broadcast %286 : i1 to vector<8x32xi1>
    %288 = vector.broadcast %287 : vector<8x32xi1> to vector<8x32xi1>
    %289 = arith.xori %285, %288 : vector<8x32xi1>
    %290 = arith.andi %289, %283 : vector<8x32xi1>
    %291 = vector.broadcast %279 : i32 to vector<8x32xi32>
    %292 = arith.addi %281, %291 : vector<8x32xi32>
    %293 = arith.select %290, %292, %281 : vector<8x32xi1>, vector<8x32xi32>
    %c3_i32_190 = arith.constant 3 : i32
    %294 = vector.broadcast %c3_i32_190 : i32 to vector<8x32xi32>
    %295 = arith.cmpi ne, %293, %294 : vector<8x32xi32>
    %c7_i32_191 = arith.constant 7 : i32
    %296 = tpu.dynamic_rotate %246 by %c7_i32_191 dim 0 : vector<8x32xf32>, i32 -> vector<8x32xf32>
    %cst_192 = arith.constant 0.000000e+00 : f32
    %297 = vector.broadcast %cst_192 : f32 to vector<8x32xf32>
    %298 = arith.select %295, %296, %297 : vector<8x32xi1>, vector<8x32xf32>
    %299 = arith.truncf %298 : vector<8x32xf32> to vector<8x32xbf16>
    %c2_193 = arith.constant 2 : index
    %c0_194 = arith.constant 0 : index
    %c0_195 = arith.constant 0 : index
    %300 = vector.load %arg22[%c2_193, %c0_194, %c0_195] : memref<3x32x32xbf16, #tpu.memory_space<vmem>>, vector<1x32x32xbf16>
    %301 = vector.shape_cast %300 : vector<1x32x32xbf16> to vector<32x32xbf16>
    %cst_196 = arith.constant dense<0.000000e+00> : vector<8x32xf32>
    %302 = tpu.matmul %299, %301, %cst_196 {dimension_numbers = #tpu.dot_dimension_numbers<[1], [0], [0], [1], [0, 0, 1, 1], [], []>} : vector<8x32xbf16>, vector<32x32xbf16>, vector<8x32xf32> -> vector<8x32xf32>
    %303 = arith.addf %277, %302 : vector<8x32xf32>
    %c0_197 = arith.constant 0 : index
    %c0_198 = arith.constant 0 : index
    %304 = vector.load %arg23[%c0_197, %c0_198] : memref<1x32xf32, #tpu.memory_space<vmem>>, vector<1x32xf32>
    %305 = vector.broadcast %304 : vector<1x32xf32> to vector<8x32xf32>
    %306 = arith.addf %303, %305 : vector<8x32xf32>
    %c0_199 = arith.constant 0 : index
    %c0_200 = arith.constant 0 : index
    %307 = vector.load %arg29[%c0_199, %c0_200] : memref<32x128xf32, #tpu.memory_space<vmem>>, vector<8x32xf32>
    tpu.vector_store %arg29[%c0_199, %c0_200], %306 {strides = array<i32>} : memref<32x128xf32, #tpu.memory_space<vmem>>, vector<8x32xf32>,
    %c0_201 = arith.constant 0 : index
    %c0_202 = arith.constant 0 : index
    %308 = vector.load %arg29[%c0_201, %c0_202] : memref<32x128xf32, #tpu.memory_space<vmem>>, vector<4x32xf32>
    %c0_203 = arith.constant 0 : index
    %c0_204 = arith.constant 0 : index
    %309 = vector.load %arg24[%c0_203, %c0_204] : memref<16x4xf32, #tpu.memory_space<vmem>>, vector<16x4xf32>
    %cst_205 = arith.constant dense<0.000000e+00> : vector<16x32xf32>
    %310 = tpu.matmul %309, %308, %cst_205 {dimension_numbers = #tpu.dot_dimension_numbers<[1], [0], [0], [1], [0, 0, 1, 1], [], []>} : vector<16x4xf32>, vector<4x32xf32>, vector<16x32xf32> -> vector<16x32xf32>
    %c0_206 = arith.constant 0 : index
    %c0_207 = arith.constant 0 : index
    %311 = vector.load %arg25[%c0_206, %c0_207] : memref<32x128xf32, #tpu.memory_space<vmem>>, vector<32x128xf32>
    %cst_208 = arith.constant dense<0.000000e+00> : vector<16x128xf32>
    %312 = tpu.matmul %310, %311, %cst_208 {dimension_numbers = #tpu.dot_dimension_numbers<[1], [0], [0], [1], [0, 0, 1, 1], [], []>} : vector<16x32xf32>, vector<32x128xf32>, vector<16x128xf32> -> vector<16x128xf32>
    %cst_209 = arith.constant 0.000000e+00 : f32
    %313 = vector.broadcast %cst_209 : f32 to vector<16x128xf32>
    %314 = arith.maximumf %312, %313 : vector<16x128xf32>
    %c0_210 = arith.constant 0 : index
    %c0_211 = arith.constant 0 : index
    %315 = vector.load %arg30[%c0_210, %c0_211] : memref<32x128xf32, #tpu.memory_space<vmem>>, vector<16x128xf32>
    tpu.vector_store %arg30[%c0_210, %c0_211], %314 {strides = array<i32>} : memref<32x128xf32, #tpu.memory_space<vmem>>, vector<16x128xf32>,
    %c4_212 = arith.constant 4 : index
    %c0_213 = arith.constant 0 : index
    %316 = vector.load %arg29[%c4_212, %c0_213] : memref<32x128xf32, #tpu.memory_space<vmem>>, vector<4x32xf32>
    %c0_214 = arith.constant 0 : index
    %c0_215 = arith.constant 0 : index
    %317 = vector.load %arg24[%c0_214, %c0_215] : memref<16x4xf32, #tpu.memory_space<vmem>>, vector<16x4xf32>
    %cst_216 = arith.constant dense<0.000000e+00> : vector<16x32xf32>
    %318 = tpu.matmul %317, %316, %cst_216 {dimension_numbers = #tpu.dot_dimension_numbers<[1], [0], [0], [1], [0, 0, 1, 1], [], []>} : vector<16x4xf32>, vector<4x32xf32>, vector<16x32xf32> -> vector<16x32xf32>
    %c0_217 = arith.constant 0 : index
    %c0_218 = arith.constant 0 : index
    %319 = vector.load %arg25[%c0_217, %c0_218] : memref<32x128xf32, #tpu.memory_space<vmem>>, vector<32x128xf32>
    %cst_219 = arith.constant dense<0.000000e+00> : vector<16x128xf32>
    %320 = tpu.matmul %318, %319, %cst_219 {dimension_numbers = #tpu.dot_dimension_numbers<[1], [0], [0], [1], [0, 0, 1, 1], [], []>} : vector<16x32xf32>, vector<32x128xf32>, vector<16x128xf32> -> vector<16x128xf32>
    %cst_220 = arith.constant 0.000000e+00 : f32
    %321 = vector.broadcast %cst_220 : f32 to vector<16x128xf32>
    %322 = arith.maximumf %320, %321 : vector<16x128xf32>
    %c16_221 = arith.constant 16 : index
    %c0_222 = arith.constant 0 : index
    %323 = vector.load %arg30[%c16_221, %c0_222] : memref<32x128xf32, #tpu.memory_space<vmem>>, vector<16x128xf32>
    tpu.vector_store %arg30[%c16_221, %c0_222], %322 {strides = array<i32>} : memref<32x128xf32, #tpu.memory_space<vmem>>, vector<16x128xf32>,
    %c0_223 = arith.constant 0 : index
    %c0_224 = arith.constant 0 : index
    %324 = vector.load %arg30[%c0_223, %c0_224] : memref<32x128xf32, #tpu.memory_space<vmem>>, vector<32x128xf32>
    %325 = arith.truncf %324 : vector<32x128xf32> to vector<32x128xbf16>
    %c1_225 = arith.constant 1 : index
    %c0_226 = arith.constant 0 : index
    %c0_227 = arith.constant 0 : index
    %326 = vector.load %arg26[%c1_225, %c0_226, %c0_227] : memref<3x128x64xbf16, #tpu.memory_space<vmem>>, vector<1x128x64xbf16>
    %327 = vector.shape_cast %326 : vector<1x128x64xbf16> to vector<128x64xbf16>
    %cst_228 = arith.constant dense<0.000000e+00> : vector<32x64xf32>
    %328 = tpu.matmul %325, %327, %cst_228 {dimension_numbers = #tpu.dot_dimension_numbers<[1], [0], [0], [1], [0, 0, 1, 1], [], []>} : vector<32x128xbf16>, vector<128x64xbf16>, vector<32x64xf32> -> vector<32x64xf32>
    %329 = tpu.iota {dimensions = array<i32: 0>} : vector<32x128xi32>
    %c16_i32_229 = arith.constant 16 : i32
    %c0_i32_230 = arith.constant 0 : i32
    %330 = arith.cmpi eq, %c16_i32_229, %c0_i32_230 : i32
    %c1_i32_231 = arith.constant 1 : i32
    %331 = arith.select %330, %c1_i32_231, %c16_i32_229 : i32
    %332 = vector.broadcast %331 : i32 to vector<32x128xi32>
    %333 = arith.remsi %329, %332 : vector<32x128xi32>
    %c0_i32_232 = arith.constant 0 : i32
    %334 = vector.broadcast %c0_i32_232 : i32 to vector<32x128xi32>
    %335 = arith.cmpi ne, %333, %334 : vector<32x128xi32>
    %c0_i32_233 = arith.constant 0 : i32
    %336 = vector.broadcast %c0_i32_233 : i32 to vector<32x128xi32>
    %337 = arith.cmpi slt, %333, %336 : vector<32x128xi32>
    %c0_i32_234 = arith.constant 0 : i32
    %338 = arith.cmpi slt, %331, %c0_i32_234 : i32
    %339 = vector.broadcast %338 : i1 to vector<32x128xi1>
    %340 = vector.broadcast %339 : vector<32x128xi1> to vector<32x128xi1>
    %341 = arith.xori %337, %340 : vector<32x128xi1>
    %342 = arith.andi %341, %335 : vector<32x128xi1>
    %343 = vector.broadcast %331 : i32 to vector<32x128xi32>
    %344 = arith.addi %333, %343 : vector<32x128xi32>
    %345 = arith.select %342, %344, %333 : vector<32x128xi1>, vector<32x128xi32>
    %c0_i32_235 = arith.constant 0 : i32
    %346 = vector.broadcast %c0_i32_235 : i32 to vector<32x128xi32>
    %347 = arith.cmpi ne, %345, %346 : vector<32x128xi32>
    %c1_i32_236 = arith.constant 1 : i32
    %348 = tpu.dynamic_rotate %324 by %c1_i32_236 dim 0 : vector<32x128xf32>, i32 -> vector<32x128xf32>
    %cst_237 = arith.constant 0.000000e+00 : f32
    %349 = vector.broadcast %cst_237 : f32 to vector<32x128xf32>
    %350 = arith.select %347, %348, %349 : vector<32x128xi1>, vector<32x128xf32>
    %351 = arith.truncf %350 : vector<32x128xf32> to vector<32x128xbf16>
    %c0_238 = arith.constant 0 : index
    %c0_239 = arith.constant 0 : index
    %c0_240 = arith.constant 0 : index
    %352 = vector.load %arg26[%c0_238, %c0_239, %c0_240] : memref<3x128x64xbf16, #tpu.memory_space<vmem>>, vector<1x128x64xbf16>
    %353 = vector.shape_cast %352 : vector<1x128x64xbf16> to vector<128x64xbf16>
    %cst_241 = arith.constant dense<0.000000e+00> : vector<32x64xf32>
    %354 = tpu.matmul %351, %353, %cst_241 {dimension_numbers = #tpu.dot_dimension_numbers<[1], [0], [0], [1], [0, 0, 1, 1], [], []>} : vector<32x128xbf16>, vector<128x64xbf16>, vector<32x64xf32> -> vector<32x64xf32>
    %355 = arith.addf %328, %354 : vector<32x64xf32>
    %c16_i32_242 = arith.constant 16 : i32
    %c0_i32_243 = arith.constant 0 : i32
    %356 = arith.cmpi eq, %c16_i32_242, %c0_i32_243 : i32
    %c1_i32_244 = arith.constant 1 : i32
    %357 = arith.select %356, %c1_i32_244, %c16_i32_242 : i32
    %358 = vector.broadcast %357 : i32 to vector<32x128xi32>
    %359 = arith.remsi %329, %358 : vector<32x128xi32>
    %c0_i32_245 = arith.constant 0 : i32
    %360 = vector.broadcast %c0_i32_245 : i32 to vector<32x128xi32>
    %361 = arith.cmpi ne, %359, %360 : vector<32x128xi32>
    %c0_i32_246 = arith.constant 0 : i32
    %362 = vector.broadcast %c0_i32_246 : i32 to vector<32x128xi32>
    %363 = arith.cmpi slt, %359, %362 : vector<32x128xi32>
    %c0_i32_247 = arith.constant 0 : i32
    %364 = arith.cmpi slt, %357, %c0_i32_247 : i32
    %365 = vector.broadcast %364 : i1 to vector<32x128xi1>
    %366 = vector.broadcast %365 : vector<32x128xi1> to vector<32x128xi1>
    %367 = arith.xori %363, %366 : vector<32x128xi1>
    %368 = arith.andi %367, %361 : vector<32x128xi1>
    %369 = vector.broadcast %357 : i32 to vector<32x128xi32>
    %370 = arith.addi %359, %369 : vector<32x128xi32>
    %371 = arith.select %368, %370, %359 : vector<32x128xi1>, vector<32x128xi32>
    %c15_i32_248 = arith.constant 15 : i32
    %372 = vector.broadcast %c15_i32_248 : i32 to vector<32x128xi32>
    %373 = arith.cmpi ne, %371, %372 : vector<32x128xi32>
    %c31_i32_249 = arith.constant 31 : i32
    %374 = tpu.dynamic_rotate %324 by %c31_i32_249 dim 0 : vector<32x128xf32>, i32 -> vector<32x128xf32>
    %cst_250 = arith.constant 0.000000e+00 : f32
    %375 = vector.broadcast %cst_250 : f32 to vector<32x128xf32>
    %376 = arith.select %373, %374, %375 : vector<32x128xi1>, vector<32x128xf32>
    %377 = arith.truncf %376 : vector<32x128xf32> to vector<32x128xbf16>
    %c2_251 = arith.constant 2 : index
    %c0_252 = arith.constant 0 : index
    %c0_253 = arith.constant 0 : index
    %378 = vector.load %arg26[%c2_251, %c0_252, %c0_253] : memref<3x128x64xbf16, #tpu.memory_space<vmem>>, vector<1x128x64xbf16>
    %379 = vector.shape_cast %378 : vector<1x128x64xbf16> to vector<128x64xbf16>
    %cst_254 = arith.constant dense<0.000000e+00> : vector<32x64xf32>
    %380 = tpu.matmul %377, %379, %cst_254 {dimension_numbers = #tpu.dot_dimension_numbers<[1], [0], [0], [1], [0, 0, 1, 1], [], []>} : vector<32x128xbf16>, vector<128x64xbf16>, vector<32x64xf32> -> vector<32x64xf32>
    %381 = arith.addf %355, %380 : vector<32x64xf32>
    %c0_255 = arith.constant 0 : index
    %c0_256 = arith.constant 0 : index
    %382 = vector.load %arg27[%c0_255, %c0_256] : memref<1x64xf32, #tpu.memory_space<vmem>>, vector<1x64xf32>
    %383 = vector.broadcast %382 : vector<1x64xf32> to vector<32x64xf32>
    %384 = arith.addf %381, %383 : vector<32x64xf32>
    %385 = math.tanh %384 : vector<32x64xf32>
    %c0_257 = arith.constant 0 : index
    %c0_258 = arith.constant 0 : index
    %386 = vector.load %arg28[%c0_257, %c0_258] : memref<32x64xf32, #tpu.memory_space<vmem>>, vector<32x64xf32>
    tpu.vector_store %arg28[%c0_257, %c0_258], %385 {strides = array<i32>} : memref<32x64xf32, #tpu.memory_space<vmem>>, vector<32x64xf32>,
    return
  }
}

</mosaic_0001>

<llo_original>
// kernel: tile.45
$region0: #{tile.45}
  #allocation0 [shape = 's32[1]{0}', space=sflag, size = 0x4, scoped, tag = 'scoped memory for tile.45']
  %s0 = inlined_call_operand.vmem [shape: f32[8], index: 0, kind: input, shape index: {}]
  %s1 = inlined_call_operand.vmem [shape: f32[16,8], index: 1, kind: output, shape index: {}]
  // Predicated region
  $region2: #{tile.45} parent=0 // pred_check
    _
  $region3: #{tile.45} parent=0 // pred_check_branch
    %3 = sbr.rel (0) target = $region5
  $region4: #{tile.45} parent=0 // pred_region
    _
  $region5: #{tile.45} parent=0 // pred_fallthru
    _
  %v4 = vld [vmem:[%s0] ss:$0 sm:$0xff]
  %5 = vst [vmem:[%s1] sm:$0xff] %v4
  %s6 = scalar_lea.vmem %s1, 8
  %7 = vst [vmem:[%s6] sm:$0xff] %v4

// kernel: tile.46
$region0: #{tile.46}
  %s0 = inlined_call_operand.vmem [shape: f32[16,8], index: 0, kind: input, shape index: {}]
  %s1 = inlined_call_operand.vmem [shape: f32[1,128], index: 1, kind: output, shape index: {}]
  $region1: #{tile.46} parent=0
    #allocation0 [shape = 'u8[4096]{0}', space=vmem, size = 0x1000, scoped, tag = 'scoped mem for output reshape']
    %v2 = vld [vmem:[%s0] sm:$0x1]
    %vm3 = vcmask 64512
    %4 = vst.msk [vmem:[#allocation0] sm:$0x1] %vm3, %v2
    %s5 = scalar_lea.vmem %s0, 15
    %v6 = vld [vmem:[%s5] sm:$0x1]
    %7 = vrot.lane.b32.xlu0 %v6, 120
    %v8 = vpop.permute.xlu0 %7
    %vm9 = vcmask 1048512
    %10 = vst.msk [vmem:[#allocation0] sm:$0x1] %vm9, %v8
    %s11 = scalar_lea.vmem %s0, 14
    %v12 = vld [vmem:[%s11] sm:$0x1]
    %13 = vrot.lane.b32.xlu0 %v12, 112
    %v14 = vpop.permute.xlu0 %13
    %vm15 = vcmask 982912
    %16 = vst.msk [vmem:[#allocation0] sm:$0x1] %vm15, %v14
    %s17 = scalar_lea.vmem %s0, 13
    %v18 = vld [vmem:[%s17] sm:$0x1]
    %19 = vrot.lane.b32.xlu0 %v18, 104
    %v20 = vpop.permute.xlu0 %19
    %vm21 = vcmask 917312
    %22 = vst.msk [vmem:[#allocation0] sm:$0x1] %vm21, %v20
    %s23 = scalar_lea.vmem %s0, 12
    %v24 = vld [vmem:[%s23] sm:$0x1]
    %25 = vrot.lane.b32.xlu0 %v24, 96
    %v26 = vpop.permute.xlu0 %25
    %vm27 = vcmask 851712
    %28 = vst.msk [vmem:[#allocation0] sm:$0x1] %vm27, %v26
    %s29 = scalar_lea.vmem %s0, 11
    %v30 = vld [vmem:[%s29] sm:$0x1]
    %31 = vrot.lane.b32.xlu0 %v30, 88
    %v32 = vpop.permute.xlu0 %31
    %vm33 = vcmask 786112
    %34 = vst.msk [vmem:[#allocation0] sm:$0x1] %vm33, %v32
    %s35 = scalar_lea.vmem %s0, 10
    %v36 = vld [vmem:[%s35] sm:$0x1]
    %37 = vrot.lane.b32.xlu0 %v36, 80
    %v38 = vpop.permute.xlu0 %37
    %vm39 = vcmask 720512
    %40 = vst.msk [vmem:[#allocation0] sm:$0x1] %vm39, %v38
    %s41 = scalar_lea.vmem %s0, 9
    %v42 = vld [vmem:[%s41] sm:$0x1]
    %43 = vrot.lane.b32.xlu0 %v42, 72
    %v44 = vpop.permute.xlu0 %43
    %vm45 = vcmask 654912
    %46 = vst.msk [vmem:[#allocation0] sm:$0x1] %vm45, %v44
    %s47 = scalar_lea.vmem %s0, 8
    %v48 = vld [vmem:[%s47] sm:$0x1]
    %49 = vrot.lane.b32.xlu0 %v48, 64
    %v50 = vpop.permute.xlu0 %49
    %vm51 = vcmask 589312
    %52 = vst.msk [vmem:[#allocation0] sm:$0x1] %vm51, %v50
    %s53 = scalar_lea.vmem %s0, 7
    %v54 = vld [vmem:[%s53] sm:$0x1]
    %55 = vrot.lane.b32.xlu0 %v54, 56
    %v56 = vpop.permute.xlu0 %55
    %vm57 = vcmask 523712
    %58 = vst.msk [vmem:[#allocation0] sm:$0x1] %vm57, %v56
    %s59 = scalar_lea.vmem %s0, 6
    %v60 = vld [vmem:[%s59] sm:$0x1]
    %61 = vrot.lane.b32.xlu0 %v60, 48
    %v62 = vpop.permute.xlu0 %61
    %vm63 = vcmask 458112
    %64 = vst.msk [vmem:[#allocation0] sm:$0x1] %vm63, %v62
    %s65 = scalar_lea.vmem %s0, 5
    %v66 = vld [vmem:[%s65] sm:$0x1]
    %67 = vrot.lane.b32.xlu0 %v66, 40
    %v68 = vpop.permute.xlu0 %67
    %vm69 = vcmask 392512
    %70 = vst.msk [vmem:[#allocation0] sm:$0x1] %vm69, %v68
    %s71 = scalar_lea.vmem %s0, 4
    %v72 = vld [vmem:[%s71] sm:$0x1]
    %73 = vrot.lane.b32.xlu0 %v72, 32
    %v74 = vpop.permute.xlu0 %73
    %vm75 = vcmask 326912
    %76 = vst.msk [vmem:[#allocation0] sm:$0x1] %vm75, %v74
    %s77 = scalar_lea.vmem %s0, 3
    %v78 = vld [vmem:[%s77] sm:$0x1]
    %79 = vrot.lane.b32.xlu0 %v78, 24
    %v80 = vpop.permute.xlu0 %79
    %vm81 = vcmask 261312
    %82 = vst.msk [vmem:[#allocation0] sm:$0x1] %vm81, %v80
    %s83 = scalar_lea.vmem %s0, 2
    %v84 = vld [vmem:[%s83] sm:$0x1]
    %85 = vrot.lane.b32.xlu0 %v84, 16
    %v86 = vpop.permute.xlu0 %85
    %vm87 = vcmask 195712
    %88 = vst.msk [vmem:[#allocation0] sm:$0x1] %vm87, %v86
    %s89 = scalar_lea.vmem %s0, 1
    %v90 = vld [vmem:[%s89] sm:$0x1]
    %91 = vrot.lane.b32.xlu0 %v90, 8
    %v92 = vpop.permute.xlu0 %91
    %vm93 = vcmask 130112
    %94 = vst.msk [vmem:[#allocation0] sm:$0x1] %vm93, %v92
    %s96 = sshllo.u32 0, 1
    %v98 = vld [vmem:[#allocation0] sm:%s96]
    %s99 = sshllo.u32 0, 1
    %100 = vst [vmem:[%s1] sm:%s99] %v98

// kernel: tile.82
$region0: #{tile.82}
  #allocation0 [shape = 's32[1]{0}', space=sflag, size = 0x4, scoped, tag = 'scoped memory for tile.82']
  %s0 = inlined_call_operand.vmem [shape: f32[4], index: 0, kind: input, shape index: {}]
  %s1 = inlined_call_operand.vmem [shape: f32[16,4], index: 1, kind: output, shape index: {}]
  // Predicated region
  $region2: #{tile.82} parent=0 // pred_check
    _
  $region3: #{tile.82} parent=0 // pred_check_branch
    %3 = sbr.rel (0) target = $region5
  $region4: #{tile.82} parent=0 // pred_region
    _
  $region5: #{tile.82} parent=0 // pred_fallthru
    _
  %v4 = vld [vmem:[%s0] ss:$0 sm:$0xff]
  %5 = vst [vmem:[%s1] sm:$0xff] %v4
  %s6 = scalar_lea.vmem %s1, 8
  %7 = vst [vmem:[%s6] sm:$0xff] %v4

// kernel: tile.83
$region0: #{tile.83}
  %s0 = inlined_call_operand.vmem [shape: f32[16,4], index: 0, kind: input, shape index: {}]
  %s1 = inlined_call_operand.vmem [shape: f32[1,64], index: 1, kind: output, shape index: {}]
  $region1: #{tile.83} parent=0
    #allocation0 [shape = 'u8[4096]{0}', space=vmem, size = 0x1000, scoped, tag = 'scoped mem for output reshape']
    %v2 = vld [vmem:[%s0] sm:$0x1]
    %vm3 = vcmask 31744
    %4 = vst.msk [vmem:[#allocation0] sm:$0x1] %vm3, %v2
    %s5 = scalar_lea.vmem %s0, 15
    %v6 = vld [vmem:[%s5] sm:$0x1]
    %7 = vrot.lane.b32.xlu0 %v6, 60
    %v8 = vpop.permute.xlu0 %7
    %vm9 = vcmask 523744
    %10 = vst.msk [vmem:[#allocation0] sm:$0x1] %vm9, %v8
    %s11 = scalar_lea.vmem %s0, 14
    %v12 = vld [vmem:[%s11] sm:$0x1]
    %13 = vrot.lane.b32.xlu0 %v12, 56
    %v14 = vpop.permute.xlu0 %13
    %vm15 = vcmask 490944
    %16 = vst.msk [vmem:[#allocation0] sm:$0x1] %vm15, %v14
    %s17 = scalar_lea.vmem %s0, 13
    %v18 = vld [vmem:[%s17] sm:$0x1]
    %19 = vrot.lane.b32.xlu0 %v18, 52
    %v20 = vpop.permute.xlu0 %19
    %vm21 = vcmask 458144
    %22 = vst.msk [vmem:[#allocation0] sm:$0x1] %vm21, %v20
    %s23 = scalar_lea.vmem %s0, 12
    %v24 = vld [vmem:[%s23] sm:$0x1]
    %25 = vrot.lane.b32.xlu0 %v24, 48
    %v26 = vpop.permute.xlu0 %25
    %vm27 = vcmask 425344
    %28 = vst.msk [vmem:[#allocation0] sm:$0x1] %vm27, %v26
    %s29 = scalar_lea.vmem %s0, 11
    %v30 = vld [vmem:[%s29] sm:$0x1]
    %31 = vrot.lane.b32.xlu0 %v30, 44
    %v32 = vpop.permute.xlu0 %31
    %vm33 = vcmask 392544
    %34 = vst.msk [vmem:[#allocation0] sm:$0x1] %vm33, %v32
    %s35 = scalar_lea.vmem %s0, 10
    %v36 = vld [vmem:[%s35] sm:$0x1]
    %37 = vrot.lane.b32.xlu0 %v36, 40
    %v38 = vpop.permute.xlu0 %37
    %vm39 = vcmask 359744
    %40 = vst.msk [vmem:[#allocation0] sm:$0x1] %vm39, %v38
    %s41 = scalar_lea.vmem %s0, 9
    %v42 = vld [vmem:[%s41] sm:$0x1]
    %43 = vrot.lane.b32.xlu0 %v42, 36
    %v44 = vpop.permute.xlu0 %43
    %vm45 = vcmask 326944
    %46 = vst.msk [vmem:[#allocation0] sm:$0x1] %vm45, %v44
    %s47 = scalar_lea.vmem %s0, 8
    %v48 = vld [vmem:[%s47] sm:$0x1]
    %49 = vrot.lane.b32.xlu0 %v48, 32
    %v50 = vpop.permute.xlu0 %49
    %vm51 = vcmask 294144
    %52 = vst.msk [vmem:[#allocation0] sm:$0x1] %vm51, %v50
    %s53 = scalar_lea.vmem %s0, 7
    %v54 = vld [vmem:[%s53] sm:$0x1]
    %55 = vrot.lane.b32.xlu0 %v54, 28
    %v56 = vpop.permute.xlu0 %55
    %vm57 = vcmask 261344
    %58 = vst.msk [vmem:[#allocation0] sm:$0x1] %vm57, %v56
    %s59 = scalar_lea.vmem %s0, 6
    %v60 = vld [vmem:[%s59] sm:$0x1]
    %61 = vrot.lane.b32.xlu0 %v60, 24
    %v62 = vpop.permute.xlu0 %61
    %vm63 = vcmask 228544
    %64 = vst.msk [vmem:[#allocation0] sm:$0x1] %vm63, %v62
    %s65 = scalar_lea.vmem %s0, 5
    %v66 = vld [vmem:[%s65] sm:$0x1]
    %67 = vrot.lane.b32.xlu0 %v66, 20
    %v68 = vpop.permute.xlu0 %67
    %vm69 = vcmask 195744
    %70 = vst.msk [vmem:[#allocation0] sm:$0x1] %vm69, %v68
    %s71 = scalar_lea.vmem %s0, 4
    %v72 = vld [vmem:[%s71] sm:$0x1]
    %73 = vrot.lane.b32.xlu0 %v72, 16
    %v74 = vpop.permute.xlu0 %73
    %vm75 = vcmask 162944
    %76 = vst.msk [vmem:[#allocation0] sm:$0x1] %vm75, %v74
    %s77 = scalar_lea.vmem %s0, 3
    %v78 = vld [vmem:[%s77] sm:$0x1]
    %79 = vrot.lane.b32.xlu0 %v78, 12
    %v80 = vpop.permute.xlu0 %79
    %vm81 = vcmask 130144
    %82 = vst.msk [vmem:[#allocation0] sm:$0x1] %vm81, %v80
    %s83 = scalar_lea.vmem %s0, 2
    %v84 = vld [vmem:[%s83] sm:$0x1]
    %85 = vrot.lane.b32.xlu0 %v84, 8
    %v86 = vpop.permute.xlu0 %85
    %vm87 = vcmask 97344
    %88 = vst.msk [vmem:[#allocation0] sm:$0x1] %vm87, %v86
    %s89 = scalar_lea.vmem %s0, 1
    %v90 = vld [vmem:[%s89] sm:$0x1]
    %91 = vrot.lane.b32.xlu0 %v90, 4
    %v92 = vpop.permute.xlu0 %91
    %vm93 = vcmask 64544
    %94 = vst.msk [vmem:[#allocation0] sm:$0x1] %vm93, %v92
    %s96 = sshllo.u32 0, 1
    %v98 = vld [vmem:[#allocation0] sm:%s96]
    %s99 = sshllo.u32 0, 1
    %100 = vst [vmem:[%s1] sm:%s99] %v98

// kernel: tile.50
$region0: #{tile.50}
  #allocation0 [shape = 's32[1]{0}', space=sflag, size = 0x4, scoped, tag = 'scoped memory for tile.50']
  %s0 = inlined_call_operand.vmem [shape: f32[8], index: 0, kind: input, shape index: {}]
  %s1 = inlined_call_operand.vmem [shape: f32[4,8], index: 1, kind: output, shape index: {}]
  // Predicated region
  $region2: #{tile.50} parent=0 // pred_check
    _
  $region3: #{tile.50} parent=0 // pred_check_branch
    %3 = sbr.rel (0) target = $region5
  $region4: #{tile.50} parent=0 // pred_region
    _
  $region5: #{tile.50} parent=0 // pred_fallthru
    _
  %v4 = vld [vmem:[%s0] ss:$0 sm:$0xff]
  %5 = vst [vmem:[%s1] sm:$0xf] %v4

// kernel: tile.51
$region0: #{tile.51}
  %s0 = inlined_call_operand.vmem [shape: f32[4,8], index: 0, kind: input, shape index: {}]
  %s1 = inlined_call_operand.vmem [shape: f32[1,32], index: 1, kind: output, shape index: {}]
  $region1: #{tile.51} parent=0
    #allocation0 [shape = 'u8[4096]{0}', space=vmem, size = 0x1000, scoped, tag = 'scoped mem for output reshape']
    #allocation1 [shape = 'u8[4096]{0}', space=vmem, size = 0x1000, scoped, tag = 'scoped mem for input reshape']
    %s3 = sshllo.u32 0, 4
    %v4 = vld [vmem:[%s0] sm:%s3]
    %5 = vst [vmem:[#allocation1] sm:%s3] %v4
    %v6 = vld [vmem:[#allocation1] sm:$0x1]
    %vm7 = vcmask 64512
    %8 = vst.msk [vmem:[#allocation0] sm:$0x1] %vm7, %v6
    %s9 = scalar_lea.vmem [#allocation1], 3
    %v10 = vld [vmem:[%s9] sm:$0x1]
    %11 = vrot.lane.b32.xlu0 %v10, 24
    %v12 = vpop.permute.xlu0 %11
    %vm13 = vcmask 261312
    %14 = vst.msk [vmem:[#allocation0] sm:$0x1] %vm13, %v12
    %s15 = scalar_lea.vmem [#allocation1], 2
    %v16 = vld [vmem:[%s15] sm:$0x1]
    %17 = vrot.lane.b32.xlu0 %v16, 16
    %v18 = vpop.permute.xlu0 %17
    %vm19 = vcmask 195712
    %20 = vst.msk [vmem:[#allocation0] sm:$0x1] %vm19, %v18
    %s21 = scalar_lea.vmem [#allocation1], 1
    %v22 = vld [vmem:[%s21] sm:$0x1]
    %23 = vrot.lane.b32.xlu0 %v22, 8
    %v24 = vpop.permute.xlu0 %23
    %vm25 = vcmask 130112
    %26 = vst.msk [vmem:[#allocation0] sm:$0x1] %vm25, %v24
    %s28 = sshllo.u32 0, 1
    %v30 = vld [vmem:[#allocation0] sm:%s28]
    %s31 = sshllo.u32 0, 1
    %32 = vst [vmem:[%s1] sm:%s31] %v30

// kernel: fwd.1
$region0: #{fwd.1}
  #allocation0 [shape = 'u32[]', space=smem, size = 0x4, offset = 0x4, fixed_abs, tag = 'smem constant byte address 0x4 - core index']
  #allocation1 [shape = 'u32[144,128]{1,0:T(1,128)}', space=vmem, size = 0x12000, scoped, tag = 'internal scratch']
  #allocation2 [shape = 'f32[32,128]{1,0:T(8,128)}', space=vmem, size = 0x4000, scoped, tag = 'scratch operand']
  #allocation3 [shape = 'f32[32,128]{1,0:T(8,128)}', space=vmem, size = 0x4000, scoped, tag = 'scratch operand']
  %s0 = inlined_call_operand.vmem [shape: f32[32,64], index: 0, kind: input, shape index: {}]
  %s1 = inlined_call_operand.vmem [shape: f32[2,4], index: 1, kind: input, shape index: {}]
  %s2 = inlined_call_operand.vmem [shape: bf16[3,64,128], index: 2, kind: input, shape index: {}]
  %s3 = inlined_call_operand.vmem [shape: f32[1,128], index: 3, kind: input, shape index: {}]
  %s4 = inlined_call_operand.vmem [shape: f32[4,16], index: 4, kind: input, shape index: {}]
  %s5 = inlined_call_operand.vmem [shape: f32[128,32], index: 5, kind: input, shape index: {}]
  %s6 = inlined_call_operand.vmem [shape: f32[32,32], index: 6, kind: input, shape index: {}, may-alias: {6,19}]
  %s7 = inlined_call_operand.vmem [shape: f32[1,32], index: 7, kind: input, shape index: {}]
  %s8 = inlined_call_operand.vmem [shape: f32[1,32], index: 8, kind: input, shape index: {}]
  %s9 = inlined_call_operand.vmem [shape: bf16[3,32,32], index: 9, kind: input, shape index: {}]
  %s10 = inlined_call_operand.vmem [shape: f32[1,32], index: 10, kind: input, shape index: {}]
  %s11 = inlined_call_operand.vmem [shape: f32[1,4], index: 11, kind: input, shape index: {}]
  %s12 = inlined_call_operand.vmem [shape: f32[32,8], index: 12, kind: input, shape index: {}]
  %s13 = inlined_call_operand.vmem [shape: bf16[3,8,8], index: 13, kind: input, shape index: {}]
  %s14 = inlined_call_operand.vmem [shape: f32[1,8], index: 14, kind: input, shape index: {}]
  %s15 = inlined_call_operand.vmem [shape: bf16[3,12,8], index: 15, kind: input, shape index: {}]
  %s16 = inlined_call_operand.vmem [shape: f32[1,8], index: 16, kind: input, shape index: {}]
  %s17 = inlined_call_operand.vmem [shape: f32[4,1], index: 17, kind: input, shape index: {}]
  %s18 = inlined_call_operand.vmem [shape: f32[8,32], index: 18, kind: input, shape index: {}]
  %s19 = inlined_call_operand.vmem [shape: f32[32,32], index: 19, kind: input, shape index: {}, may-alias: {6,19}]
  %s20 = inlined_call_operand.vmem [shape: f32[1,32], index: 20, kind: input, shape index: {}]
  %s21 = inlined_call_operand.vmem [shape: f32[1,32], index: 21, kind: input, shape index: {}]
  %s22 = inlined_call_operand.vmem [shape: bf16[3,32,32], index: 22, kind: input, shape index: {}]
  %s23 = inlined_call_operand.vmem [shape: f32[1,32], index: 23, kind: input, shape index: {}]
  %s24 = inlined_call_operand.vmem [shape: f32[16,4], index: 24, kind: input, shape index: {}]
  %s25 = inlined_call_operand.vmem [shape: f32[32,128], index: 25, kind: input, shape index: {}]
  %s26 = inlined_call_operand.vmem [shape: bf16[3,128,64], index: 26, kind: input, shape index: {}]
  %s27 = inlined_call_operand.vmem [shape: f32[1,64], index: 27, kind: input, shape index: {}]
  %s28 = inlined_call_operand.vmem [shape: f32[32,64], index: 28, kind: output, shape index: {}]
  %s29 = sld [smem:[#allocation0]]
  $region122: #{fwd.1} parent=0
    _
  %s31 = ssub.s32 1, %s29
  %s32 = scalar_select 0, %s31, %s29
  // Predicated region
  $region2: #{fwd.1} parent=0 // pred_check
    _
  $region3: #{fwd.1} parent=0 // pred_check_branch
    %34 = sbr.rel (0) target = $region5
  $region4: #{fwd.1} parent=0 // pred_region
    _
  $region5: #{fwd.1} parent=0 // pred_fallthru
    _
  // Predicated region
  $region6: #{fwd.1} parent=0 // pred_check
    _
  $region7: #{fwd.1} parent=0 // pred_check_branch
    %36 = sbr.rel (0) target = $region9
  $region8: #{fwd.1} parent=0 // pred_region
    _
  $region9: #{fwd.1} parent=0 // pred_fallthru
    _
  // Predicated region
  $region10: #{fwd.1} parent=0 // pred_check
    _
  $region11: #{fwd.1} parent=0 // pred_check_branch
    %38 = sbr.rel (0) target = $region13
  $region12: #{fwd.1} parent=0 // pred_region
    _
  $region13: #{fwd.1} parent=0 // pred_fallthru
    _
  // Predicated region
  $region14: #{fwd.1} parent=0 // pred_check
    _
  $region15: #{fwd.1} parent=0 // pred_check_branch
    %40 = sbr.rel (0) target = $region17
  $region16: #{fwd.1} parent=0 // pred_region
    _
  $region17: #{fwd.1} parent=0 // pred_fallthru
    _
  // Predicated region
  $region18: #{fwd.1} parent=0 // pred_check
    _
  $region19: #{fwd.1} parent=0 // pred_check_branch
    %42 = sbr.rel (0) target = $region21
  $region20: #{fwd.1} parent=0 // pred_region
    _
  $region21: #{fwd.1} parent=0 // pred_fallthru
    _
  // Predicated region
  $region22: #{fwd.1} parent=0 // pred_check
    _
  $region23: #{fwd.1} parent=0 // pred_check_branch
    %44 = sbr.rel (0) target = $region25
  $region24: #{fwd.1} parent=0 // pred_region
    _
  $region25: #{fwd.1} parent=0 // pred_fallthru
    _
  // Predicated region
  $region26: #{fwd.1} parent=0 // pred_check
    _
  $region27: #{fwd.1} parent=0 // pred_check_branch
    %46 = sbr.rel (0) target = $region29
  $region28: #{fwd.1} parent=0 // pred_region
    _
  $region29: #{fwd.1} parent=0 // pred_fallthru
    _
  // Predicated region
  $region30: #{fwd.1} parent=0 // pred_check
    _
  $region31: #{fwd.1} parent=0 // pred_check_branch
    %48 = sbr.rel (0) target = $region33
  $region32: #{fwd.1} parent=0 // pred_region
    _
  $region33: #{fwd.1} parent=0 // pred_fallthru
    _
  // Predicated region
  $region34: #{fwd.1} parent=0 // pred_check
    _
  $region35: #{fwd.1} parent=0 // pred_check_branch
    %50 = sbr.rel (0) target = $region37
  $region36: #{fwd.1} parent=0 // pred_region
    _
  $region37: #{fwd.1} parent=0 // pred_fallthru
    _
  // Predicated region
  $region38: #{fwd.1} parent=0 // pred_check
    _
  $region39: #{fwd.1} parent=0 // pred_check_branch
    %52 = sbr.rel (0) target = $region41
  $region40: #{fwd.1} parent=0 // pred_region
    _
  $region41: #{fwd.1} parent=0 // pred_fallthru
    _
  // Predicated region
  $region42: #{fwd.1} parent=0 // pred_check
    _
  $region43: #{fwd.1} parent=0 // pred_check_branch
    %54 = sbr.rel (0) target = $region45
  $region44: #{fwd.1} parent=0 // pred_region
    _
  $region45: #{fwd.1} parent=0 // pred_fallthru
    _
  // Predicated region
  $region46: #{fwd.1} parent=0 // pred_check
    _
  $region47: #{fwd.1} parent=0 // pred_check_branch
    %56 = sbr.rel (0) target = $region49
  $region48: #{fwd.1} parent=0 // pred_region
    _
  $region49: #{fwd.1} parent=0 // pred_fallthru
    _
  // Predicated region
  $region50: #{fwd.1} parent=0 // pred_check
    _
  $region51: #{fwd.1} parent=0 // pred_check_branch
    %58 = sbr.rel (0) target = $region53
  $region52: #{fwd.1} parent=0 // pred_region
    _
  $region53: #{fwd.1} parent=0 // pred_fallthru
    _
  // Predicated region
  $region54: #{fwd.1} parent=0 // pred_check
    _
  $region55: #{fwd.1} parent=0 // pred_check_branch
    %60 = sbr.rel (0) target = $region57
  $region56: #{fwd.1} parent=0 // pred_region
    _
  $region57: #{fwd.1} parent=0 // pred_fallthru
    _
  // Predicated region
  $region58: #{fwd.1} parent=0 // pred_check
    _
  $region59: #{fwd.1} parent=0 // pred_check_branch
    %62 = sbr.rel (0) target = $region61
  $region60: #{fwd.1} parent=0 // pred_region
    _
  $region61: #{fwd.1} parent=0 // pred_fallthru
    _
  // Predicated region
  $region62: #{fwd.1} parent=0 // pred_check
    _
  $region63: #{fwd.1} parent=0 // pred_check_branch
    %64 = sbr.rel (0) target = $region65
  $region64: #{fwd.1} parent=0 // pred_region
    _
  $region65: #{fwd.1} parent=0 // pred_fallthru
    _
  // Predicated region
  $region66: #{fwd.1} parent=0 // pred_check
    _
  $region67: #{fwd.1} parent=0 // pred_check_branch
    %66 = sbr.rel (0) target = $region69
  $region68: #{fwd.1} parent=0 // pred_region
    _
  $region69: #{fwd.1} parent=0 // pred_fallthru
    _
  // Predicated region
  $region70: #{fwd.1} parent=0 // pred_check
    _
  $region71: #{fwd.1} parent=0 // pred_check_branch
    %68 = sbr.rel (0) target = $region73
  $region72: #{fwd.1} parent=0 // pred_region
    _
  $region73: #{fwd.1} parent=0 // pred_fallthru
    _
  // Predicated region
  $region74: #{fwd.1} parent=0 // pred_check
    _
  $region75: #{fwd.1} parent=0 // pred_check_branch
    %70 = sbr.rel (0) target = $region77
  $region76: #{fwd.1} parent=0 // pred_region
    _
  $region77: #{fwd.1} parent=0 // pred_fallthru
    _
  // Predicated region
  $region78: #{fwd.1} parent=0 // pred_check
    _
  $region79: #{fwd.1} parent=0 // pred_check_branch
    %72 = sbr.rel (0) target = $region81
  $region80: #{fwd.1} parent=0 // pred_region
    _
  $region81: #{fwd.1} parent=0 // pred_fallthru
    _
  // Predicated region
  $region82: #{fwd.1} parent=0 // pred_check
    _
  $region83: #{fwd.1} parent=0 // pred_check_branch
    %74 = sbr.rel (0) target = $region85
  $region84: #{fwd.1} parent=0 // pred_region
    _
  $region85: #{fwd.1} parent=0 // pred_fallthru
    _
  // Predicated region
  $region86: #{fwd.1} parent=0 // pred_check
    _
  $region87: #{fwd.1} parent=0 // pred_check_branch
    %76 = sbr.rel (0) target = $region89
  $region88: #{fwd.1} parent=0 // pred_region
    _
  $region89: #{fwd.1} parent=0 // pred_fallthru
    _
  // Predicated region
  $region90: #{fwd.1} parent=0 // pred_check
    _
  $region91: #{fwd.1} parent=0 // pred_check_branch
    %78 = sbr.rel (0) target = $region93
  $region92: #{fwd.1} parent=0 // pred_region
    _
  $region93: #{fwd.1} parent=0 // pred_fallthru
    _
  // Predicated region
  $region94: #{fwd.1} parent=0 // pred_check
    _
  $region95: #{fwd.1} parent=0 // pred_check_branch
    %80 = sbr.rel (0) target = $region97
  $region96: #{fwd.1} parent=0 // pred_region
    _
  $region97: #{fwd.1} parent=0 // pred_fallthru
    _
  // Predicated region
  $region98: #{fwd.1} parent=0 // pred_check
    _
  $region99: #{fwd.1} parent=0 // pred_check_branch
    %82 = sbr.rel (0) target = $region101
  $region100: #{fwd.1} parent=0 // pred_region
    _
  $region101: #{fwd.1} parent=0 // pred_fallthru
    _
  // Predicated region
  $region102: #{fwd.1} parent=0 // pred_check
    _
  $region103: #{fwd.1} parent=0 // pred_check_branch
    %84 = sbr.rel (0) target = $region105
  $region104: #{fwd.1} parent=0 // pred_region
    _
  $region105: #{fwd.1} parent=0 // pred_fallthru
    _
  // Predicated region
  $region106: #{fwd.1} parent=0 // pred_check
    _
  $region107: #{fwd.1} parent=0 // pred_check_branch
    %86 = sbr.rel (0) target = $region109
  $region108: #{fwd.1} parent=0 // pred_region
    _
  $region109: #{fwd.1} parent=0 // pred_fallthru
    _
  // Predicated region
  $region110: #{fwd.1} parent=0 // pred_check
    _
  $region111: #{fwd.1} parent=0 // pred_check_branch
    %88 = sbr.rel (0) target = $region113
  $region112: #{fwd.1} parent=0 // pred_region
    _
  $region113: #{fwd.1} parent=0 // pred_fallthru
    _
  %v90 = vld [vmem:[%s0] sm:$0xff]
  %v91 = vld [vmem:[%s0 + $0x8] sm:$0xff]
  %v92 = vld [vmem:[%s0 + $0x10] sm:$0xff]
  %v93 = vld [vmem:[%s0 + $0x18] sm:$0xff]
  %v94 = vpack.c.bf16 %v91, %v90
  %v95 = vpack.c.bf16 %v93, %v92
  %s96 = scalar_lea.vmem %s2, 32
  %v97 = vld [vmem:[%s96] sm:$0xf]
  %v98 = vld [vmem:[%s96 + $0x4] sm:$0xf]
  %v99 = vld [vmem:[%s96 + $0x8] sm:$0xf]
  %v100 = vld [vmem:[%s96 + $0xc] sm:$0xf]
  %v101 = vld [vmem:[%s96 + $0x10] sm:$0xf]
  %v102 = vld [vmem:[%s96 + $0x14] sm:$0xf]
  %v103 = vld [vmem:[%s96 + $0x18] sm:$0xf]
  %v104 = vld [vmem:[%s96 + $0x1c] sm:$0xf]
  %v105 = vlaneseq
  %v106 = vshrl.u32 %v105, 7
  %v107 = vadd.s32 %v106, 8
  %v108 = vadd.s32 %v106, 16
  %v109 = vadd.s32 %v106, 24
  %vm110 = vcmp.lt.s32.totalorder %v106, 0
  %v111 = vsub.s32 0, %v106
  %v112 = vsel %vm110, %v111, %v106
  %v113 = vshrl.u32 %v112, 4
  %v114 = vand.u32 %v112, 15
  %v115 = vsub.s32 0, %v114
  %v116 = vsel %vm110, %v115, %v114
  %vm117 = vcmp.lt.s32.totalorder %v107, 0
  %v118 = vsub.s32 0, %v107
  %v119 = vsel %vm117, %v118, %v107
  %v120 = vshrl.u32 %v119, 4
  %v121 = vand.u32 %v119, 15
  %v122 = vsub.s32 0, %v121
  %v123 = vsel %vm117, %v122, %v121
  %vm124 = vcmp.lt.s32.totalorder %v108, 0
  %v125 = vsub.s32 0, %v108
  %v126 = vsel %vm124, %v125, %v108
  %v127 = vshrl.u32 %v126, 4
  %v128 = vand.u32 %v126, 15
  %v129 = vsub.s32 0, %v128
  %v130 = vsel %vm124, %v129, %v128
  %vm131 = vcmp.lt.s32.totalorder %v109, 0
  %v132 = vsub.s32 0, %v109
  %v133 = vsel %vm131, %v132, %v109
  %v134 = vshrl.u32 %v133, 4
  %v135 = vand.u32 %v133, 15
  %v136 = vsub.s32 0, %v135
  %v137 = vsel %vm131, %v136, %v135
  %vm138 = vcmp.ne.s32.totalorder %v116, 0
  %vm139 = vcmp.ne.s32.totalorder %v123, 0
  %vm140 = vcmp.ne.s32.totalorder %v130, 0
  %vm141 = vcmp.ne.s32.totalorder %v137, 0
  %vm142 = vcmp.lt.s32.totalorder %v116, 0
  %vm143 = vcmp.lt.s32.totalorder %v123, 0
  %vm144 = vcmp.lt.s32.totalorder %v130, 0
  %vm145 = vcmp.lt.s32.totalorder %v137, 0
  %vm146 = vmand %vm142, %vm138
  %vm147 = vmand %vm143, %vm139
  %vm148 = vmand %vm144, %vm140
  %vm149 = vmand %vm145, %vm141
  %v150 = vadd.s32 %v116, 16
  %v151 = vadd.s32 %v123, 16
  %v152 = vadd.s32 %v130, 16
  %v153 = vadd.s32 %v137, 16
  %v154 = vsel %vm146, %v150, %v116
  %v155 = vsel %vm147, %v151, %v123
  %v156 = vsel %vm148, %v152, %v130
  %v157 = vsel %vm149, %v153, %v137
  %vm158 = vcmp.ne.s32.totalorder %v154, 0
  %vm159 = vcmp.ne.s32.totalorder %v155, 0
  %vm160 = vcmp.ne.s32.totalorder %v156, 0
  %vm161 = vcmp.ne.s32.totalorder %v157, 0
  %v162 = vrot.slane %v90, 7
  %v163 = vrot.slane %v91, 7
  %v164 = vrot.slane %v92, 7
  %v165 = vrot.slane %v93, 7
  %vm166 = vcmp.lt.s32.totalorder %v106, 1
  %v167 = vsel %vm166, %v164, %v165
  %v168 = vsel %vm166, %v163, %v164
  %v169 = vsel %vm166, %v162, %v163
  %v170 = vsel %vm166, %v165, %v162
  %v171 = vsel %vm158, %v170, 0.0
  %v172 = vsel %vm159, %v169, 0.0
  %v173 = vsel %vm160, %v168, 0.0
  %v174 = vsel %vm161, %v167, 0.0
  %v175 = vpack.c.bf16 %v172, %v171
  %v176 = vpack.c.bf16 %v174, %v173
  %v177 = vld [vmem:[%s2] sm:$0xf]
  %v178 = vld [vmem:[%s2 + $0x4] sm:$0xf]
  %v179 = vld [vmem:[%s2 + $0x8] sm:$0xf]
  %v180 = vld [vmem:[%s2 + $0xc] sm:$0xf]
  %v181 = vld [vmem:[%s2 + $0x10] sm:$0xf]
  %v182 = vld [vmem:[%s2 + $0x14] sm:$0xf]
  %v183 = vld [vmem:[%s2 + $0x18] sm:$0xf]
  %v184 = vld [vmem:[%s2 + $0x1c] sm:$0xf]
  %v193 = vunpack.c.l.b16 %v177
  %v194 = vunpack.c.l.b16 %v178
  %v195 = vunpack.c.l.b16 %v179
  %v196 = vunpack.c.l.b16 %v180
  %v197 = vunpack.c.l.b16 %v181
  %v198 = vunpack.c.l.b16 %v182
  %v199 = vunpack.c.l.b16 %v183
  %v200 = vunpack.c.l.b16 %v184
  %v201 = vpack.c.b16 %v194, %v193
  %v202 = vpack.c.b16 %v196, %v195
  %v203 = vpack.c.b16 %v198, %v197
  %v204 = vpack.c.b16 %v200, %v199
  %vm209 = vcmask 523264
  %v211 = vsel %vm209, %v175, 0
  %v214 = vsel %vm209, %v176, 0
  %216 = vmatprep.subr.bf16.mxu0 0
  %217 = vmatpush1.bf16.msra.mxu0 %v201
  %218 = vmatprep.subr.bf16.mxu0 0
  %219 = vmatpush1.bf16.msra.mxu0 %v202
  %220 = vmatprep.subr.bf16.mxu0 0
  %221 = vmatpush1.bf16.msra.mxu0 %v203
  %222 = vmatprep.subr.bf16.mxu0 0
  %223 = vmatpush1.bf16.msra.mxu0 %v204
  %224 = vmatprep.subr.bf16.mxu0 0
  %225 = vmatpush1.bf16.msra.mxu0 0
  %226 = vmatprep.subr.bf16.mxu0 0
  %227 = vmatpush1.bf16.msra.mxu0 0
  %228 = vmatprep.subr.bf16.mxu0 0
  %229 = vmatpush1.bf16.msra.mxu0 0
  %230 = vmatprep.subr.bf16.mxu0 0
  %231 = vmatpush1.bf16.msra.mxu0 0
  %232 = vmatprep.subr.bf16.mxu0 0
  %233 = vmatpush1.bf16.msra.mxu0 0
  %234 = vmatprep.subr.bf16.mxu0 0
  %235 = vmatpush1.bf16.msra.mxu0 0
  %236 = vmatprep.subr.bf16.mxu0 0
  %237 = vmatpush1.bf16.msra.mxu0 0
  %238 = vmatprep.subr.bf16.mxu0 0
  %239 = vmatpush1.bf16.msra.mxu0 0
  %240 = vmatprep.subr.bf16.mxu0 0
  %241 = vmatpush1.bf16.msra.mxu0 0
  %242 = vmatprep.subr.bf16.mxu0 0
  %243 = vmatpush1.bf16.msra.mxu0 0
  %244 = vmatprep.subr.bf16.mxu0 0
  %245 = vmatpush1.bf16.msra.mxu0 0
  %246 = vmatprep.subr.bf16.mxu0 0
  %247 = vmatpush1.bf16.msra.mxu0 0
  %248 = vmatprep.mubr.bf16.mxu0 0
  %249 = vmatmul.mubr.bf16.gmra.mrb[0].mxu0 %v211
  %v250 = vpop.f32.mrb[0].mxu0
  %v251 = vadd.f32 0.0, %v250
  %v252 = vpop.f32.mrb[0].mxu0
  %v253 = vpop.f32.mrb[0].mxu0
  %v254 = vadd.f32 0.0, %v253
  %v255 = vpop.f32.mrb[0].mxu0
  %256 = vmatprep.mubr.bf16.mxu0 0
  %257 = vmatmul.mubr.bf16.gmra.mrb[0].mxu0 %v214
  %v258 = vpop.f32.mrb[0].mxu0
  %v259 = vadd.f32 0.0, %v258
  %v260 = vpop.f32.mrb[0].mxu0
  %v261 = vpop.f32.mrb[0].mxu0
  %v262 = vadd.f32 0.0, %v261
  %v263 = vpop.f32.mrb[0].mxu0
  %264 = vdwg.mxu0
  %v273 = vunpack.c.l.b16 %v97
  %v274 = vunpack.c.l.b16 %v98
  %v275 = vunpack.c.l.b16 %v99
  %v276 = vunpack.c.l.b16 %v100
  %v277 = vunpack.c.l.b16 %v101
  %v278 = vunpack.c.l.b16 %v102
  %v279 = vunpack.c.l.b16 %v103
  %v280 = vunpack.c.l.b16 %v104
  %v281 = vpack.c.b16 %v274, %v273
  %v282 = vpack.c.b16 %v276, %v275
  %v283 = vpack.c.b16 %v278, %v277
  %v284 = vpack.c.b16 %v280, %v279
  %v290 = vsel %vm209, %v94, 0
  %v293 = vsel %vm209, %v95, 0
  %295 = vmatprep.subr.bf16.mxu0 0
  %296 = vmatpush1.bf16.msra.mxu0 %v281
  %297 = vmatprep.subr.bf16.mxu0 0
  %298 = vmatpush1.bf16.msra.mxu0 %v282
  %299 = vmatprep.subr.bf16.mxu0 0
  %300 = vmatpush1.bf16.msra.mxu0 %v283
  %301 = vmatprep.subr.bf16.mxu0 0
  %302 = vmatpush1.bf16.msra.mxu0 %v284
  %303 = vmatprep.subr.bf16.mxu0 0
  %304 = vmatpush1.bf16.msra.mxu0 0
  %305 = vmatprep.subr.bf16.mxu0 0
  %306 = vmatpush1.bf16.msra.mxu0 0
  %307 = vmatprep.subr.bf16.mxu0 0
  %308 = vmatpush1.bf16.msra.mxu0 0
  %309 = vmatprep.subr.bf16.mxu0 0
  %310 = vmatpush1.bf16.msra.mxu0 0
  %311 = vmatprep.subr.bf16.mxu0 0
  %312 = vmatpush1.bf16.msra.mxu0 0
  %313 = vmatprep.subr.bf16.mxu0 0
  %314 = vmatpush1.bf16.msra.mxu0 0
  %315 = vmatprep.subr.bf16.mxu0 0
  %316 = vmatpush1.bf16.msra.mxu0 0
  %317 = vmatprep.subr.bf16.mxu0 0
  %318 = vmatpush1.bf16.msra.mxu0 0
  %319 = vmatprep.subr.bf16.mxu0 0
  %320 = vmatpush1.bf16.msra.mxu0 0
  %321 = vmatprep.subr.bf16.mxu0 0
  %322 = vmatpush1.bf16.msra.mxu0 0
  %323 = vmatprep.subr.bf16.mxu0 0
  %324 = vmatpush1.bf16.msra.mxu0 0
  %325 = vmatprep.subr.bf16.mxu0 0
  %326 = vmatpush1.bf16.msra.mxu0 0
  %327 = vmatprep.mubr.bf16.mxu0 0
  %328 = vmatmul.mubr.bf16.gmra.mrb[0].mxu0 %v290
  %v329 = vpop.f32.mrb[0].mxu0
  %v330 = vadd.f32 %v251, %v329
  %v331 = vpop.f32.mrb[0].mxu0
  %v332 = vpop.f32.mrb[0].mxu0
  %v333 = vadd.f32 %v254, %v332
  %v334 = vpop.f32.mrb[0].mxu0
  %335 = vmatprep.mubr.bf16.mxu0 0
  %336 = vmatmul.mubr.bf16.gmra.mrb[0].mxu0 %v293
  %v337 = vpop.f32.mrb[0].mxu0
  %v338 = vadd.f32 %v259, %v337
  %v339 = vpop.f32.mrb[0].mxu0
  %v340 = vpop.f32.mrb[0].mxu0
  %v341 = vadd.f32 %v262, %v340
  %v342 = vpop.f32.mrb[0].mxu0
  %343 = vdwg.mxu0
  %vm344 = vcmp.ne.s32.totalorder %v154, 15
  %vm345 = vcmp.ne.s32.totalorder %v155, 15
  %vm346 = vcmp.ne.s32.totalorder %v156, 15
  %vm347 = vcmp.ne.s32.totalorder %v157, 15
  %v348 = vrot.slane %v90, 1
  %v349 = vrot.slane %v91, 1
  %v350 = vrot.slane %v92, 1
  %v351 = vrot.slane %v93, 1
  %vm352 = vcmp.lt.s32.totalorder %v106, 7
  %v353 = vsel %vm352, %v350, %v351
  %v354 = vsel %vm352, %v349, %v350
  %v355 = vsel %vm352, %v348, %v349
  %v356 = vsel %vm352, %v351, %v348
  %v357 = vsel %vm344, %v355, 0.0
  %v358 = vsel %vm345, %v354, 0.0
  %v359 = vsel %vm346, %v353, 0.0
  %v360 = vsel %vm347, %v356, 0.0
  %v361 = vpack.c.bf16 %v358, %v357
  %v362 = vpack.c.bf16 %v360, %v359
  %s363 = scalar_lea.vmem %s2, 64
  %v364 = vld [vmem:[%s363] sm:$0xf]
  %v365 = vld [vmem:[%s363 + $0x4] sm:$0xf]
  %v366 = vld [vmem:[%s363 + $0x8] sm:$0xf]
  %v367 = vld [vmem:[%s363 + $0xc] sm:$0xf]
  %v368 = vld [vmem:[%s363 + $0x10] sm:$0xf]
  %v369 = vld [vmem:[%s363 + $0x14] sm:$0xf]
  %v370 = vld [vmem:[%s363 + $0x18] sm:$0xf]
  %v371 = vld [vmem:[%s363 + $0x1c] sm:$0xf]
  %v380 = vunpack.c.l.b16 %v364
  %v381 = vunpack.c.l.b16 %v365
  %v382 = vunpack.c.l.b16 %v366
  %v383 = vunpack.c.l.b16 %v367
  %v384 = vunpack.c.l.b16 %v368
  %v385 = vunpack.c.l.b16 %v369
  %v386 = vunpack.c.l.b16 %v370
  %v387 = vunpack.c.l.b16 %v371
  %v388 = vpack.c.b16 %v381, %v380
  %v389 = vpack.c.b16 %v383, %v382
  %v390 = vpack.c.b16 %v385, %v384
  %v391 = vpack.c.b16 %v387, %v386
  %v397 = vsel %vm209, %v361, 0
  %v400 = vsel %vm209, %v362, 0
  %402 = vmatprep.subr.bf16.mxu0 0
  %403 = vmatpush1.bf16.msra.mxu0 %v388
  %404 = vmatprep.subr.bf16.mxu0 0
  %405 = vmatpush1.bf16.msra.mxu0 %v389
  %406 = vmatprep.subr.bf16.mxu0 0
  %407 = vmatpush1.bf16.msra.mxu0 %v390
  %408 = vmatprep.subr.bf16.mxu0 0
  %409 = vmatpush1.bf16.msra.mxu0 %v391
  %410 = vmatprep.subr.bf16.mxu0 0
  %411 = vmatpush1.bf16.msra.mxu0 0
  %412 = vmatprep.subr.bf16.mxu0 0
  %413 = vmatpush1.bf16.msra.mxu0 0
  %414 = vmatprep.subr.bf16.mxu0 0
  %415 = vmatpush1.bf16.msra.mxu0 0
  %416 = vmatprep.subr.bf16.mxu0 0
  %417 = vmatpush1.bf16.msra.mxu0 0
  %418 = vmatprep.subr.bf16.mxu0 0
  %419 = vmatpush1.bf16.msra.mxu0 0
  %420 = vmatprep.subr.bf16.mxu0 0
  %421 = vmatpush1.bf16.msra.mxu0 0
  %422 = vmatprep.subr.bf16.mxu0 0
  %423 = vmatpush1.bf16.msra.mxu0 0
  %424 = vmatprep.subr.bf16.mxu0 0
  %425 = vmatpush1.bf16.msra.mxu0 0
  %426 = vmatprep.subr.bf16.mxu0 0
  %427 = vmatpush1.bf16.msra.mxu0 0
  %428 = vmatprep.subr.bf16.mxu0 0
  %429 = vmatpush1.bf16.msra.mxu0 0
  %430 = vmatprep.subr.bf16.mxu0 0
  %431 = vmatpush1.bf16.msra.mxu0 0
  %432 = vmatprep.subr.bf16.mxu0 0
  %433 = vmatpush1.bf16.msra.mxu0 0
  %434 = vmatprep.mubr.bf16.mxu0 0
  %435 = vmatmul.mubr.bf16.gmra.mrb[0].mxu0 %v397
  %v436 = vpop.f32.mrb[0].mxu0
  %v437 = vadd.f32 0.0, %v436
  %v438 = vpop.f32.mrb[0].mxu0
  %v439 = vpop.f32.mrb[0].mxu0
  %v440 = vadd.f32 0.0, %v439
  %v441 = vpop.f32.mrb[0].mxu0
  %442 = vmatprep.mubr.bf16.mxu0 0
  %443 = vmatmul.mubr.bf16.gmra.mrb[0].mxu0 %v400
  %v444 = vpop.f32.mrb[0].mxu0
  %v445 = vadd.f32 0.0, %v444
  %v446 = vpop.f32.mrb[0].mxu0
  %v447 = vpop.f32.mrb[0].mxu0
  %v448 = vadd.f32 0.0, %v447
  %v449 = vpop.f32.mrb[0].mxu0
  %450 = vdwg.mxu0
  %v451 = vadd.f32 %v330, %v437
  %v452 = vadd.f32 %v333, %v440
  %v453 = vadd.f32 %v338, %v445
  %v454 = vadd.f32 %v341, %v448
  %v455 = vld [vmem:[%s3] sm:$0x1]
  %v457 = vlaneseq
  %v458 = vshrl.u32 %v457, 7
  %v459 = vsub.s32 0, %v458
  %v460 = vrot.slane %v455, %v459
  %v462 = vadd.f32 %v451, %v460
  %v463 = vadd.f32 %v452, %v460
  %v464 = vadd.f32 %v453, %v460
  %v465 = vadd.f32 %v454, %v460
  %466 = vst [vmem:[#allocation2] sm:$0xff] %v462
  %467 = vst [vmem:[#allocation2 + $0x8] sm:$0xff] %v463
  %468 = vst [vmem:[#allocation2 + $0x10] sm:$0xff] %v464
  %469 = vst [vmem:[#allocation2 + $0x18] sm:$0xff] %v465
  %v470 = vld [vmem:[#allocation2] sm:$0xff]
  %v471 = vld [vmem:[#allocation2 + $0x8] sm:$0xff]
  %v472 = vld [vmem:[%s4] sm:$0xf]
  %vm473 = vcmask 130048
  %v475 = vsel %vm473, %v472, 0
  %477 = vmatprep.subr.mxu0 0.0
  %478 = vmatpush1.msra.mxu0 %v470
  %479 = vmatprep.subr.mxu0 0.0
  %480 = vmatpush1.msra.mxu0 %v471
  %481 = vmatprep.subr.mxu0 0.0
  %482 = vmatpush1.msra.mxu0 0.0
  %483 = vmatprep.subr.mxu0 0.0
  %484 = vmatpush1.msra.mxu0 0.0
  %485 = vmatprep.subr.mxu0 0.0
  %486 = vmatpush1.msra.mxu0 0.0
  %487 = vmatprep.subr.mxu0 0.0
  %488 = vmatpush1.msra.mxu0 0.0
  %489 = vmatprep.subr.mxu0 0.0
  %490 = vmatpush1.msra.mxu0 0.0
  %491 = vmatprep.subr.mxu0 0.0
  %492 = vmatpush1.msra.mxu0 0.0
  %493 = vmatprep.subr.mxu0 0.0
  %494 = vmatpush1.msra.mxu0 0.0
  %495 = vmatprep.subr.mxu0 0.0
  %496 = vmatpush1.msra.mxu0 0.0
  %497 = vmatprep.subr.mxu0 0.0
  %498 = vmatpush1.msra.mxu0 0.0
  %499 = vmatprep.subr.mxu0 0.0
  %500 = vmatpush1.msra.mxu0 0.0
  %501 = vmatprep.subr.mxu0 0.0
  %502 = vmatpush1.msra.mxu0 0.0
  %503 = vmatprep.subr.mxu0 0.0
  %504 = vmatpush1.msra.mxu0 0.0
  %505 = vmatprep.subr.mxu0 0.0
  %506 = vmatpush1.msra.mxu0 0.0
  %507 = vmatprep.subr.mxu0 0.0
  %508 = vmatpush1.msra.mxu0 0.0
  %509 = vmatprep.subr.mxu0 0.0
  %510 = vmatpush1.msra.mxu0 0.0
  %511 = vmatprep.subr.mxu0 0.0
  %512 = vmatpush1.msra.mxu0 0.0
  %513 = vmatprep.subr.mxu0 0.0
  %514 = vmatpush1.msra.mxu0 0.0
  %515 = vmatprep.subr.mxu0 0.0
  %516 = vmatpush1.msra.mxu0 0.0
  %517 = vmatprep.subr.mxu0 0.0
  %518 = vmatpush1.msra.mxu0 0.0
  %519 = vmatprep.subr.mxu0 0.0
  %520 = vmatpush1.msra.mxu0 0.0
  %521 = vmatprep.subr.mxu0 0.0
  %522 = vmatpush1.msra.mxu0 0.0
  %523 = vmatprep.subr.mxu0 0.0
  %524 = vmatpush1.msra.mxu0 0.0
  %525 = vmatprep.subr.mxu0 0.0
  %526 = vmatpush1.msra.mxu0 0.0
  %527 = vmatprep.subr.mxu0 0.0
  %528 = vmatpush1.msra.mxu0 0.0
  %529 = vmatprep.subr.mxu0 0.0
  %530 = vmatpush1.msra.mxu0 0.0
  %531 = vmatprep.subr.mxu0 0.0
  %532 = vmatpush1.msra.mxu0 0.0
  %533 = vmatprep.subr.mxu0 0.0
  %534 = vmatpush1.msra.mxu0 0.0
  %535 = vmatprep.subr.mxu0 0.0
  %536 = vmatpush1.msra.mxu0 0.0
  %537 = vmatprep.subr.mxu0 0.0
  %538 = vmatpush1.msra.mxu0 0.0
  %539 = vmatprep.subr.mxu0 0.0
  %540 = vmatpush1.msra.mxu0 0.0
  %541 = vmatprep.mubr.f32.mxu0 0.0
  %542 = vmatmul.mubr.f32.gmra.mrb[0].mxu0 %v475
  %v543 = vpop.f32.mrb[0].mxu0
  %v544 = vadd.f32 0.0, %v543
  %v545 = vpop.f32.mrb[0].mxu0
  %546 = vdwg.mxu0
  %v547 = vld [vmem:[%s5] sm:$0xff]
  %v548 = vld [vmem:[%s5 + $0x8] sm:$0xff]
  %v549 = vld [vmem:[%s5 + $0x10] sm:$0xff]
  %v550 = vld [vmem:[%s5 + $0x18] sm:$0xff]
  %v551 = vld [vmem:[%s5 + $0x20] sm:$0xff]
  %v552 = vld [vmem:[%s5 + $0x28] sm:$0xff]
  %v553 = vld [vmem:[%s5 + $0x30] sm:$0xff]
  %v554 = vld [vmem:[%s5 + $0x38] sm:$0xff]
  %v555 = vld [vmem:[%s5 + $0x40] sm:$0xff]
  %v556 = vld [vmem:[%s5 + $0x48] sm:$0xff]
  %v557 = vld [vmem:[%s5 + $0x50] sm:$0xff]
  %v558 = vld [vmem:[%s5 + $0x58] sm:$0xff]
  %v559 = vld [vmem:[%s5 + $0x60] sm:$0xff]
  %v560 = vld [vmem:[%s5 + $0x68] sm:$0xff]
  %v561 = vld [vmem:[%s5 + $0x70] sm:$0xff]
  %v562 = vld [vmem:[%s5 + $0x78] sm:$0xff]
  %563 = vmatprep.subr.mxu0 0.0
  %564 = vmatpush1.msra.mxu0 %v547
  %565 = vmatprep.subr.mxu0 0.0
  %566 = vmatpush1.msra.mxu0 %v548
  %567 = vmatprep.subr.mxu0 0.0
  %568 = vmatpush1.msra.mxu0 %v549
  %569 = vmatprep.subr.mxu0 0.0
  %570 = vmatpush1.msra.mxu0 %v550
  %571 = vmatprep.subr.mxu0 0.0
  %572 = vmatpush1.msra.mxu0 %v551
  %573 = vmatprep.subr.mxu0 0.0
  %574 = vmatpush1.msra.mxu0 %v552
  %575 = vmatprep.subr.mxu0 0.0
  %576 = vmatpush1.msra.mxu0 %v553
  %577 = vmatprep.subr.mxu0 0.0
  %578 = vmatpush1.msra.mxu0 %v554
  %579 = vmatprep.subr.mxu0 0.0
  %580 = vmatpush1.msra.mxu0 %v555
  %581 = vmatprep.subr.mxu0 0.0
  %582 = vmatpush1.msra.mxu0 %v556
  %583 = vmatprep.subr.mxu0 0.0
  %584 = vmatpush1.msra.mxu0 %v557
  %585 = vmatprep.subr.mxu0 0.0
  %586 = vmatpush1.msra.mxu0 %v558
  %587 = vmatprep.subr.mxu0 0.0
  %588 = vmatpush1.msra.mxu0 %v559
  %589 = vmatprep.subr.mxu0 0.0
  %590 = vmatpush1.msra.mxu0 %v560
  %591 = vmatprep.subr.mxu0 0.0
  %592 = vmatpush1.msra.mxu0 %v561
  %593 = vmatprep.subr.mxu0 0.0
  %594 = vmatpush1.msra.mxu0 %v562
  %595 = vmatprep.subr.mxu0 0.0
  %596 = vmatpush1.msra.mxu0 0.0
  %597 = vmatprep.subr.mxu0 0.0
  %598 = vmatpush1.msra.mxu0 0.0
  %599 = vmatprep.subr.mxu0 0.0
  %600 = vmatpush1.msra.mxu0 0.0
  %601 = vmatprep.subr.mxu0 0.0
  %602 = vmatpush1.msra.mxu0 0.0
  %603 = vmatprep.subr.mxu0 0.0
  %604 = vmatpush1.msra.mxu0 0.0
  %605 = vmatprep.subr.mxu0 0.0
  %606 = vmatpush1.msra.mxu0 0.0
  %607 = vmatprep.subr.mxu0 0.0
  %608 = vmatpush1.msra.mxu0 0.0
  %609 = vmatprep.subr.mxu0 0.0
  %610 = vmatpush1.msra.mxu0 0.0
  %611 = vmatprep.subr.mxu0 0.0
  %612 = vmatpush1.msra.mxu0 0.0
  %613 = vmatprep.subr.mxu0 0.0
  %614 = vmatpush1.msra.mxu0 0.0
  %615 = vmatprep.subr.mxu0 0.0
  %616 = vmatpush1.msra.mxu0 0.0
  %617 = vmatprep.subr.mxu0 0.0
  %618 = vmatpush1.msra.mxu0 0.0
  %619 = vmatprep.subr.mxu0 0.0
  %620 = vmatpush1.msra.mxu0 0.0
  %621 = vmatprep.subr.mxu0 0.0
  %622 = vmatpush1.msra.mxu0 0.0
  %623 = vmatprep.subr.mxu0 0.0
  %624 = vmatpush1.msra.mxu0 0.0
  %625 = vmatprep.subr.mxu0 0.0
  %626 = vmatpush1.msra.mxu0 0.0
  %627 = vmatprep.mubr.f32.mxu0 0.0
  %628 = vmatmul.mubr.f32.gmra.mrb[0].mxu0 %v544
  %v629 = vpop.f32.mrb[0].mxu0
  %v630 = vadd.f32 0.0, %v629
  %v631 = vpop.f32.mrb[0].mxu0
  %632 = vdwg.mxu0
  %v633 = vmax.f32 %v630, 0.0
  %vm634 = vcmask 257024
  %635 = vst.msk [vmem:[#allocation3] sm:$0xf] %vm634, %v633
  %v636 = vld [vmem:[#allocation2 + $0x10] sm:$0xff]
  %v637 = vld [vmem:[#allocation2 + $0x18] sm:$0xff]
  %v638 = vld [vmem:[%s4] sm:$0xf]
  %v640 = vsel %vm473, %v638, 0
  %642 = vmatprep.subr.mxu0 0.0
  %643 = vmatpush1.msra.mxu0 %v636
  %644 = vmatprep.subr.mxu0 0.0
  %645 = vmatpush1.msra.mxu0 %v637
  %646 = vmatprep.subr.mxu0 0.0
  %647 = vmatpush1.msra.mxu0 0.0
  %648 = vmatprep.subr.mxu0 0.0
  %649 = vmatpush1.msra.mxu0 0.0
  %650 = vmatprep.subr.mxu0 0.0
  %651 = vmatpush1.msra.mxu0 0.0
  %652 = vmatprep.subr.mxu0 0.0
  %653 = vmatpush1.msra.mxu0 0.0
  %654 = vmatprep.subr.mxu0 0.0
  %655 = vmatpush1.msra.mxu0 0.0
  %656 = vmatprep.subr.mxu0 0.0
  %657 = vmatpush1.msra.mxu0 0.0
  %658 = vmatprep.subr.mxu0 0.0
  %659 = vmatpush1.msra.mxu0 0.0
  %660 = vmatprep.subr.mxu0 0.0
  %661 = vmatpush1.msra.mxu0 0.0
  %662 = vmatprep.subr.mxu0 0.0
  %663 = vmatpush1.msra.mxu0 0.0
  %664 = vmatprep.subr.mxu0 0.0
  %665 = vmatpush1.msra.mxu0 0.0
  %666 = vmatprep.subr.mxu0 0.0
  %667 = vmatpush1.msra.mxu0 0.0
  %668 = vmatprep.subr.mxu0 0.0
  %669 = vmatpush1.msra.mxu0 0.0
  %670 = vmatprep.subr.mxu0 0.0
  %671 = vmatpush1.msra.mxu0 0.0
  %672 = vmatprep.subr.mxu0 0.0
  %673 = vmatpush1.msra.mxu0 0.0
  %674 = vmatprep.subr.mxu0 0.0
  %675 = vmatpush1.msra.mxu0 0.0
  %676 = vmatprep.subr.mxu0 0.0
  %677 = vmatpush1.msra.mxu0 0.0
  %678 = vmatprep.subr.mxu0 0.0
  %679 = vmatpush1.msra.mxu0 0.0
  %680 = vmatprep.subr.mxu0 0.0
  %681 = vmatpush1.msra.mxu0 0.0
  %682 = vmatprep.subr.mxu0 0.0
  %683 = vmatpush1.msra.mxu0 0.0
  %684 = vmatprep.subr.mxu0 0.0
  %685 = vmatpush1.msra.mxu0 0.0
  %686 = vmatprep.subr.mxu0 0.0
  %687 = vmatpush1.msra.mxu0 0.0
  %688 = vmatprep.subr.mxu0 0.0
  %689 = vmatpush1.msra.mxu0 0.0
  %690 = vmatprep.subr.mxu0 0.0
  %691 = vmatpush1.msra.mxu0 0.0
  %692 = vmatprep.subr.mxu0 0.0
  %693 = vmatpush1.msra.mxu0 0.0
  %694 = vmatprep.subr.mxu0 0.0
  %695 = vmatpush1.msra.mxu0 0.0
  %696 = vmatprep.subr.mxu0 0.0
  %697 = vmatpush1.msra.mxu0 0.0
  %698 = vmatprep.subr.mxu0 0.0
  %699 = vmatpush1.msra.mxu0 0.0
  %700 = vmatprep.subr.mxu0 0.0
  %701 = vmatpush1.msra.mxu0 0.0
  %702 = vmatprep.subr.mxu0 0.0
  %703 = vmatpush1.msra.mxu0 0.0
  %704 = vmatprep.subr.mxu0 0.0
  %705 = vmatpush1.msra.mxu0 0.0
  %706 = vmatprep.mubr.f32.mxu0 0.0
  %707 = vmatmul.mubr.f32.gmra.mrb[0].mxu0 %v640
  %v708 = vpop.f32.mrb[0].mxu0
  %v709 = vadd.f32 0.0, %v708
  %v710 = vpop.f32.mrb[0].mxu0
  %711 = vdwg.mxu0
  %v712 = vld [vmem:[%s5] sm:$0xff]
  %v713 = vld [vmem:[%s5 + $0x8] sm:$0xff]
  %v714 = vld [vmem:[%s5 + $0x10] sm:$0xff]
  %v715 = vld [vmem:[%s5 + $0x18] sm:$0xff]
  %v716 = vld [vmem:[%s5 + $0x20] sm:$0xff]
  %v717 = vld [vmem:[%s5 + $0x28] sm:$0xff]
  %v718 = vld [vmem:[%s5 + $0x30] sm:$0xff]
  %v719 = vld [vmem:[%s5 + $0x38] sm:$0xff]
  %v720 = vld [vmem:[%s5 + $0x40] sm:$0xff]
  %v721 = vld [vmem:[%s5 + $0x48] sm:$0xff]
  %v722 = vld [vmem:[%s5 + $0x50] sm:$0xff]
  %v723 = vld [vmem:[%s5 + $0x58] sm:$0xff]
  %v724 = vld [vmem:[%s5 + $0x60] sm:$0xff]
  %v725 = vld [vmem:[%s5 + $0x68] sm:$0xff]
  %v726 = vld [vmem:[%s5 + $0x70] sm:$0xff]
  %v727 = vld [vmem:[%s5 + $0x78] sm:$0xff]
  %728 = vmatprep.subr.mxu0 0.0
  %729 = vmatpush1.msra.mxu0 %v712
  %730 = vmatprep.subr.mxu0 0.0
  %731 = vmatpush1.msra.mxu0 %v713
  %732 = vmatprep.subr.mxu0 0.0
  %733 = vmatpush1.msra.mxu0 %v714
  %734 = vmatprep.subr.mxu0 0.0
  %735 = vmatpush1.msra.mxu0 %v715
  %736 = vmatprep.subr.mxu0 0.0
  %737 = vmatpush1.msra.mxu0 %v716
  %738 = vmatprep.subr.mxu0 0.0
  %739 = vmatpush1.msra.mxu0 %v717
  %740 = vmatprep.subr.mxu0 0.0
  %741 = vmatpush1.msra.mxu0 %v718
  %742 = vmatprep.subr.mxu0 0.0
  %743 = vmatpush1.msra.mxu0 %v719
  %744 = vmatprep.subr.mxu0 0.0
  %745 = vmatpush1.msra.mxu0 %v720
  %746 = vmatprep.subr.mxu0 0.0
  %747 = vmatpush1.msra.mxu0 %v721
  %748 = vmatprep.subr.mxu0 0.0
  %749 = vmatpush1.msra.mxu0 %v722
  %750 = vmatprep.subr.mxu0 0.0
  %751 = vmatpush1.msra.mxu0 %v723
  %752 = vmatprep.subr.mxu0 0.0
  %753 = vmatpush1.msra.mxu0 %v724
  %754 = vmatprep.subr.mxu0 0.0
  %755 = vmatpush1.msra.mxu0 %v725
  %756 = vmatprep.subr.mxu0 0.0
  %757 = vmatpush1.msra.mxu0 %v726
  %758 = vmatprep.subr.mxu0 0.0
  %759 = vmatpush1.msra.mxu0 %v727
  %760 = vmatprep.subr.mxu0 0.0
  %761 = vmatpush1.msra.mxu0 0.0
  %762 = vmatprep.subr.mxu0 0.0
  %763 = vmatpush1.msra.mxu0 0.0
  %764 = vmatprep.subr.mxu0 0.0
  %765 = vmatpush1.msra.mxu0 0.0
  %766 = vmatprep.subr.mxu0 0.0
  %767 = vmatpush1.msra.mxu0 0.0
  %768 = vmatprep.subr.mxu0 0.0
  %769 = vmatpush1.msra.mxu0 0.0
  %770 = vmatprep.subr.mxu0 0.0
  %771 = vmatpush1.msra.mxu0 0.0
  %772 = vmatprep.subr.mxu0 0.0
  %773 = vmatpush1.msra.mxu0 0.0
  %774 = vmatprep.subr.mxu0 0.0
  %775 = vmatpush1.msra.mxu0 0.0
  %776 = vmatprep.subr.mxu0 0.0
  %777 = vmatpush1.msra.mxu0 0.0
  %778 = vmatprep.subr.mxu0 0.0
  %779 = vmatpush1.msra.mxu0 0.0
  %780 = vmatprep.subr.mxu0 0.0
  %781 = vmatpush1.msra.mxu0 0.0
  %782 = vmatprep.subr.mxu0 0.0
  %783 = vmatpush1.msra.mxu0 0.0
  %784 = vmatprep.subr.mxu0 0.0
  %785 = vmatpush1.msra.mxu0 0.0
  %786 = vmatprep.subr.mxu0 0.0
  %787 = vmatpush1.msra.mxu0 0.0
  %788 = vmatprep.subr.mxu0 0.0
  %789 = vmatpush1.msra.mxu0 0.0
  %790 = vmatprep.subr.mxu0 0.0
  %791 = vmatpush1.msra.mxu0 0.0
  %792 = vmatprep.mubr.f32.mxu0 0.0
  %793 = vmatmul.mubr.f32.gmra.mrb[0].mxu0 %v709
  %v794 = vpop.f32.mrb[0].mxu0
  %v795 = vadd.f32 0.0, %v794
  %v796 = vpop.f32.mrb[0].mxu0
  %797 = vdwg.mxu0
  %v798 = vmax.f32 %v795, 0.0
  %799 = vst.msk [vmem:[#allocation3 + $0x4] sm:$0xf] %vm634, %v798
  %v800 = vld [vmem:[#allocation3] sm:$0xff]
  %vm801 = vcmask 261120
  %v802 = vsel %vm801, %v800, 0.0
  %v803 = vrot.slane %v802, 4
  %v804 = vadd.f32 %v802, %v803
  %v805 = vrot.slane %v804, 2
  %v806 = vadd.f32 %v804, %v805
  %v807 = vrot.slane %v806, 1
  %v808 = vadd.f32 %v806, %v807
  %v809 = vmul.f32 %v800, %v800
  %v810 = vsel %vm801, %v809, 0.0
  %v811 = vrot.slane %v810, 4
  %v812 = vadd.f32 %v810, %v811
  %v813 = vrot.slane %v812, 2
  %v814 = vadd.f32 %v812, %v813
  %v815 = vrot.slane %v814, 1
  %v816 = vadd.f32 %v814, %v815
  %v817 = vld [vmem:[%s6] sm:$0xff]
  %v818 = vld [vmem:[%s6 + $0x8] sm:$0xff]
  %v819 = vld [vmem:[%s6 + $0x10] sm:$0xff]
  %v820 = vld [vmem:[%s6 + $0x18] sm:$0xff]
  %v822 = vsel %vm801, %v808, 0
  %824 = vmatprep.subr.mxu0 0.0
  %825 = vmatpush1.msra.mxu0 %v817
  %826 = vmatprep.subr.mxu0 0.0
  %827 = vmatpush1.msra.mxu0 %v818
  %828 = vmatprep.subr.mxu0 0.0
  %829 = vmatpush1.msra.mxu0 %v819
  %830 = vmatprep.subr.mxu0 0.0
  %831 = vmatpush1.msra.mxu0 %v820
  %832 = vmatprep.subr.mxu0 0.0
  %833 = vmatpush1.msra.mxu0 0.0
  %834 = vmatprep.subr.mxu0 0.0
  %835 = vmatpush1.msra.mxu0 0.0
  %836 = vmatprep.subr.mxu0 0.0
  %837 = vmatpush1.msra.mxu0 0.0
  %838 = vmatprep.subr.mxu0 0.0
  %839 = vmatpush1.msra.mxu0 0.0
  %840 = vmatprep.subr.mxu0 0.0
  %841 = vmatpush1.msra.mxu0 0.0
  %842 = vmatprep.subr.mxu0 0.0
  %843 = vmatpush1.msra.mxu0 0.0
  %844 = vmatprep.subr.mxu0 0.0
  %845 = vmatpush1.msra.mxu0 0.0
  %846 = vmatprep.subr.mxu0 0.0
  %847 = vmatpush1.msra.mxu0 0.0
  %848 = vmatprep.subr.mxu0 0.0
  %849 = vmatpush1.msra.mxu0 0.0
  %850 = vmatprep.subr.mxu0 0.0
  %851 = vmatpush1.msra.mxu0 0.0
  %852 = vmatprep.subr.mxu0 0.0
  %853 = vmatpush1.msra.mxu0 0.0
  %854 = vmatprep.subr.mxu0 0.0
  %855 = vmatpush1.msra.mxu0 0.0
  %856 = vmatprep.subr.mxu0 0.0
  %857 = vmatpush1.msra.mxu0 0.0
  %858 = vmatprep.subr.mxu0 0.0
  %859 = vmatpush1.msra.mxu0 0.0
  %860 = vmatprep.subr.mxu0 0.0
  %861 = vmatpush1.msra.mxu0 0.0
  %862 = vmatprep.subr.mxu0 0.0
  %863 = vmatpush1.msra.mxu0 0.0
  %864 = vmatprep.subr.mxu0 0.0
  %865 = vmatpush1.msra.mxu0 0.0
  %866 = vmatprep.subr.mxu0 0.0
  %867 = vmatpush1.msra.mxu0 0.0
  %868 = vmatprep.subr.mxu0 0.0
  %869 = vmatpush1.msra.mxu0 0.0
  %870 = vmatprep.subr.mxu0 0.0
  %871 = vmatpush1.msra.mxu0 0.0
  %872 = vmatprep.subr.mxu0 0.0
  %873 = vmatpush1.msra.mxu0 0.0
  %874 = vmatprep.subr.mxu0 0.0
  %875 = vmatpush1.msra.mxu0 0.0
  %876 = vmatprep.subr.mxu0 0.0
  %877 = vmatpush1.msra.mxu0 0.0
  %878 = vmatprep.subr.mxu0 0.0
  %879 = vmatpush1.msra.mxu0 0.0
  %880 = vmatprep.subr.mxu0 0.0
  %881 = vmatpush1.msra.mxu0 0.0
  %882 = vmatprep.subr.mxu0 0.0
  %883 = vmatpush1.msra.mxu0 0.0
  %884 = vmatprep.subr.mxu0 0.0
  %885 = vmatpush1.msra.mxu0 0.0
  %886 = vmatprep.subr.mxu0 0.0
  %887 = vmatpush1.msra.mxu0 0.0
  %888 = vmatprep.mubr.f32.mxu0 0.0
  %889 = vmatmul.mubr.f32.gmra.mrb[0].mxu0 %v822
  %v890 = vpop.f32.mrb[0].mxu0
  %v891 = vadd.f32 0.0, %v890
  %v892 = vpop.f32.mrb[0].mxu0
  %893 = vdwg.mxu0
  %v894 = vmul.f32 %v891, 0.03125
  %v896 = vsel %vm801, %v816, 0
  %898 = vmatprep.subr.mxu0 0.0
  %899 = vmatpush1.msra.mxu0 %v817
  %900 = vmatprep.subr.mxu0 0.0
  %901 = vmatpush1.msra.mxu0 %v818
  %902 = vmatprep.subr.mxu0 0.0
  %903 = vmatpush1.msra.mxu0 %v819
  %904 = vmatprep.subr.mxu0 0.0
  %905 = vmatpush1.msra.mxu0 %v820
  %906 = vmatprep.subr.mxu0 0.0
  %907 = vmatpush1.msra.mxu0 0.0
  %908 = vmatprep.subr.mxu0 0.0
  %909 = vmatpush1.msra.mxu0 0.0
  %910 = vmatprep.subr.mxu0 0.0
  %911 = vmatpush1.msra.mxu0 0.0
  %912 = vmatprep.subr.mxu0 0.0
  %913 = vmatpush1.msra.mxu0 0.0
  %914 = vmatprep.subr.mxu0 0.0
  %915 = vmatpush1.msra.mxu0 0.0
  %916 = vmatprep.subr.mxu0 0.0
  %917 = vmatpush1.msra.mxu0 0.0
  %918 = vmatprep.subr.mxu0 0.0
  %919 = vmatpush1.msra.mxu0 0.0
  %920 = vmatprep.subr.mxu0 0.0
  %921 = vmatpush1.msra.mxu0 0.0
  %922 = vmatprep.subr.mxu0 0.0
  %923 = vmatpush1.msra.mxu0 0.0
  %924 = vmatprep.subr.mxu0 0.0
  %925 = vmatpush1.msra.mxu0 0.0
  %926 = vmatprep.subr.mxu0 0.0
  %927 = vmatpush1.msra.mxu0 0.0
  %928 = vmatprep.subr.mxu0 0.0
  %929 = vmatpush1.msra.mxu0 0.0
  %930 = vmatprep.subr.mxu0 0.0
  %931 = vmatpush1.msra.mxu0 0.0
  %932 = vmatprep.subr.mxu0 0.0
  %933 = vmatpush1.msra.mxu0 0.0
  %934 = vmatprep.subr.mxu0 0.0
  %935 = vmatpush1.msra.mxu0 0.0
  %936 = vmatprep.subr.mxu0 0.0
  %937 = vmatpush1.msra.mxu0 0.0
  %938 = vmatprep.subr.mxu0 0.0
  %939 = vmatpush1.msra.mxu0 0.0
  %940 = vmatprep.subr.mxu0 0.0
  %941 = vmatpush1.msra.mxu0 0.0
  %942 = vmatprep.subr.mxu0 0.0
  %943 = vmatpush1.msra.mxu0 0.0
  %944 = vmatprep.subr.mxu0 0.0
  %945 = vmatpush1.msra.mxu0 0.0
  %946 = vmatprep.subr.mxu0 0.0
  %947 = vmatpush1.msra.mxu0 0.0
  %948 = vmatprep.subr.mxu0 0.0
  %949 = vmatpush1.msra.mxu0 0.0
  %950 = vmatprep.subr.mxu0 0.0
  %951 = vmatpush1.msra.mxu0 0.0
  %952 = vmatprep.subr.mxu0 0.0
  %953 = vmatpush1.msra.mxu0 0.0
  %954 = vmatprep.subr.mxu0 0.0
  %955 = vmatpush1.msra.mxu0 0.0
  %956 = vmatprep.subr.mxu0 0.0
  %957 = vmatpush1.msra.mxu0 0.0
  %958 = vmatprep.subr.mxu0 0.0
  %959 = vmatpush1.msra.mxu0 0.0
  %960 = vmatprep.subr.mxu0 0.0
  %961 = vmatpush1.msra.mxu0 0.0
  %962 = vmatprep.mubr.f32.mxu0 0.0
  %963 = vmatmul.mubr.f32.gmra.mrb[0].mxu0 %v896
  %v964 = vpop.f32.mrb[0].mxu0
  %v965 = vadd.f32 0.0, %v964
  %v966 = vpop.f32.mrb[0].mxu0
  %967 = vdwg.mxu0
  %v968 = vmul.f32 %v965, 0.03125
  %v969 = vmul.f32 %v894, %v894
  %v970 = vsub.f32 %v968, %v969
  %v971 = vadd.f32 %v970, 1e-05
  %v972 = vrsqrt.pop %v971
  %v973 = vlaneseq
  %v974 = vshrl.u32 %v973, 7
  %v975 = vsub.s32 0, %v974
  %v976 = vrot.slane %v894, %v975
  %v977 = vsub.f32 %v800, %v976
  %v978 = vld [vmem:[%s7] sm:$0x1]
  %v979 = vmul.f32 %v972, %v978
  %v980 = vlaneseq
  %v981 = vshrl.u32 %v980, 7
  %v982 = vsub.s32 0, %v981
  %v983 = vrot.slane %v979, %v982
  %v984 = vmul.f32 %v977, %v983
  %v985 = vld [vmem:[%s8] sm:$0x1]
  %v987 = vlaneseq
  %v988 = vshrl.u32 %v987, 7
  %v989 = vsub.s32 0, %v988
  %v990 = vrot.slane %v985, %v989
  %v992 = vadd.f32 %v984, %v990
  %v993 = vpack.c.bf16 %v992, %v992
  %s994 = scalar_lea.vmem %s9, 16
  %v995 = vld [vmem:[%s994] sm:$0xf]
  %v996 = vld [vmem:[%s994 + $0x4] sm:$0xf]
  %v997 = vld [vmem:[%s994 + $0x8] sm:$0xf]
  %v998 = vld [vmem:[%s994 + $0xc] sm:$0xf]
  %vm999 = vcmp.lt.s32.totalorder %v106, 0
  %v1000 = vsub.s32 0, %v106
  %v1001 = vsel %vm999, %v1000, %v106
  %v1002 = vshrl.u32 %v1001, 2
  %v1003 = vand.u32 %v1001, 3
  %v1004 = vsub.s32 0, %v1003
  %v1005 = vsel %vm999, %v1004, %v1003
  %vm1006 = vcmp.ne.s32.totalorder %v1005, 0
  %vm1007 = vcmp.lt.s32.totalorder %v1005, 0
  %vm1008 = vmand %vm1007, %vm1006
  %v1009 = vadd.s32 %v1005, 4
  %v1010 = vsel %vm1008, %v1009, %v1005
  %vm1011 = vcmp.ne.s32.totalorder %v1010, 0
  %v1012 = vrot.slane %v992, 7
  %v1013 = vsel %vm1011, %v1012, 0.0
  %v1014 = vpack.c.bf16 %v1013, %v1013
  %v1015 = vld [vmem:[%s9] sm:$0xf]
  %v1016 = vld [vmem:[%s9 + $0x4] sm:$0xf]
  %v1017 = vld [vmem:[%s9 + $0x8] sm:$0xf]
  %v1018 = vld [vmem:[%s9 + $0xc] sm:$0xf]
  %v1023 = vunpack.c.l.b16 %v1015
  %v1024 = vunpack.c.l.b16 %v1016
  %v1025 = vunpack.c.l.b16 %v1017
  %v1026 = vunpack.c.l.b16 %v1018
  %v1027 = vpack.c.b16 %v1024, %v1023
  %v1028 = vpack.c.b16 %v1026, %v1025
  %v1032 = vsel %vm801, %v1014, 0
  %1034 = vmatprep.subr.bf16.mxu0 0
  %1035 = vmatpush1.bf16.msra.mxu0 %v1027
  %1036 = vmatprep.subr.bf16.mxu0 0
  %1037 = vmatpush1.bf16.msra.mxu0 %v1028
  %1038 = vmatprep.subr.bf16.mxu0 0
  %1039 = vmatpush1.bf16.msra.mxu0 0
  %1040 = vmatprep.subr.bf16.mxu0 0
  %1041 = vmatpush1.bf16.msra.mxu0 0
  %1042 = vmatprep.subr.bf16.mxu0 0
  %1043 = vmatpush1.bf16.msra.mxu0 0
  %1044 = vmatprep.subr.bf16.mxu0 0
  %1045 = vmatpush1.bf16.msra.mxu0 0
  %1046 = vmatprep.subr.bf16.mxu0 0
  %1047 = vmatpush1.bf16.msra.mxu0 0
  %1048 = vmatprep.subr.bf16.mxu0 0
  %1049 = vmatpush1.bf16.msra.mxu0 0
  %1050 = vmatprep.subr.bf16.mxu0 0
  %1051 = vmatpush1.bf16.msra.mxu0 0
  %1052 = vmatprep.subr.bf16.mxu0 0
  %1053 = vmatpush1.bf16.msra.mxu0 0
  %1054 = vmatprep.subr.bf16.mxu0 0
  %1055 = vmatpush1.bf16.msra.mxu0 0
  %1056 = vmatprep.subr.bf16.mxu0 0
  %1057 = vmatpush1.bf16.msra.mxu0 0
  %1058 = vmatprep.subr.bf16.mxu0 0
  %1059 = vmatpush1.bf16.msra.mxu0 0
  %1060 = vmatprep.subr.bf16.mxu0 0
  %1061 = vmatpush1.bf16.msra.mxu0 0
  %1062 = vmatprep.subr.bf16.mxu0 0
  %1063 = vmatpush1.bf16.msra.mxu0 0
  %1064 = vmatprep.subr.bf16.mxu0 0
  %1065 = vmatpush1.bf16.msra.mxu0 0
  %1066 = vmatprep.mubr.bf16.mxu0 0
  %1067 = vmatmul.mubr.bf16.gmra.mrb[0].mxu0 %v1032
  %v1068 = vpop.f32.mrb[0].mxu0
  %v1069 = vadd.f32 0.0, %v1068
  %v1070 = vpop.f32.mrb[0].mxu0
  %v1071 = vpop.f32.mrb[0].mxu0
  %v1072 = vpop.f32.mrb[0].mxu0
  %1073 = vdwg.mxu0
  %v1078 = vunpack.c.l.b16 %v995
  %v1079 = vunpack.c.l.b16 %v996
  %v1080 = vunpack.c.l.b16 %v997
  %v1081 = vunpack.c.l.b16 %v998
  %v1082 = vpack.c.b16 %v1079, %v1078
  %v1083 = vpack.c.b16 %v1081, %v1080
  %v1087 = vsel %vm801, %v993, 0
  %1089 = vmatprep.subr.bf16.mxu0 0
  %1090 = vmatpush1.bf16.msra.mxu0 %v1082
  %1091 = vmatprep.subr.bf16.mxu0 0
  %1092 = vmatpush1.bf16.msra.mxu0 %v1083
  %1093 = vmatprep.subr.bf16.mxu0 0
  %1094 = vmatpush1.bf16.msra.mxu0 0
  %1095 = vmatprep.subr.bf16.mxu0 0
  %1096 = vmatpush1.bf16.msra.mxu0 0
  %1097 = vmatprep.subr.bf16.mxu0 0
  %1098 = vmatpush1.bf16.msra.mxu0 0
  %1099 = vmatprep.subr.bf16.mxu0 0
  %1100 = vmatpush1.bf16.msra.mxu0 0
  %1101 = vmatprep.subr.bf16.mxu0 0
  %1102 = vmatpush1.bf16.msra.mxu0 0
  %1103 = vmatprep.subr.bf16.mxu0 0
  %1104 = vmatpush1.bf16.msra.mxu0 0
  %1105 = vmatprep.subr.bf16.mxu0 0
  %1106 = vmatpush1.bf16.msra.mxu0 0
  %1107 = vmatprep.subr.bf16.mxu0 0
  %1108 = vmatpush1.bf16.msra.mxu0 0
  %1109 = vmatprep.subr.bf16.mxu0 0
  %1110 = vmatpush1.bf16.msra.mxu0 0
  %1111 = vmatprep.subr.bf16.mxu0 0
  %1112 = vmatpush1.bf16.msra.mxu0 0
  %1113 = vmatprep.subr.bf16.mxu0 0
  %1114 = vmatpush1.bf16.msra.mxu0 0
  %1115 = vmatprep.subr.bf16.mxu0 0
  %1116 = vmatpush1.bf16.msra.mxu0 0
  %1117 = vmatprep.subr.bf16.mxu0 0
  %1118 = vmatpush1.bf16.msra.mxu0 0
  %1119 = vmatprep.subr.bf16.mxu0 0
  %1120 = vmatpush1.bf16.msra.mxu0 0
  %1121 = vmatprep.mubr.bf16.mxu0 0
  %1122 = vmatmul.mubr.bf16.gmra.mrb[0].mxu0 %v1087
  %v1123 = vpop.f32.mrb[0].mxu0
  %v1124 = vadd.f32 %v1069, %v1123
  %v1125 = vpop.f32.mrb[0].mxu0
  %v1126 = vpop.f32.mrb[0].mxu0
  %v1127 = vpop.f32.mrb[0].mxu0
  %1128 = vdwg.mxu0
  %vm1129 = vcmp.ne.s32.totalorder %v1010, 3
  %v1130 = vrot.slane %v992, 1
  %v1131 = vsel %vm1129, %v1130, 0.0
  %v1132 = vpack.c.bf16 %v1131, %v1131
  %s1133 = scalar_lea.vmem %s9, 32
  %v1134 = vld [vmem:[%s1133] sm:$0xf]
  %v1135 = vld [vmem:[%s1133 + $0x4] sm:$0xf]
  %v1136 = vld [vmem:[%s1133 + $0x8] sm:$0xf]
  %v1137 = vld [vmem:[%s1133 + $0xc] sm:$0xf]
  %v1142 = vunpack.c.l.b16 %v1134
  %v1143 = vunpack.c.l.b16 %v1135
  %v1144 = vunpack.c.l.b16 %v1136
  %v1145 = vunpack.c.l.b16 %v1137
  %v1146 = vpack.c.b16 %v1143, %v1142
  %v1147 = vpack.c.b16 %v1145, %v1144
  %v1151 = vsel %vm801, %v1132, 0
  %1153 = vmatprep.subr.bf16.mxu0 0
  %1154 = vmatpush1.bf16.msra.mxu0 %v1146
  %1155 = vmatprep.subr.bf16.mxu0 0
  %1156 = vmatpush1.bf16.msra.mxu0 %v1147
  %1157 = vmatprep.subr.bf16.mxu0 0
  %1158 = vmatpush1.bf16.msra.mxu0 0
  %1159 = vmatprep.subr.bf16.mxu0 0
  %1160 = vmatpush1.bf16.msra.mxu0 0
  %1161 = vmatprep.subr.bf16.mxu0 0
  %1162 = vmatpush1.bf16.msra.mxu0 0
  %1163 = vmatprep.subr.bf16.mxu0 0
  %1164 = vmatpush1.bf16.msra.mxu0 0
  %1165 = vmatprep.subr.bf16.mxu0 0
  %1166 = vmatpush1.bf16.msra.mxu0 0
  %1167 = vmatprep.subr.bf16.mxu0 0
  %1168 = vmatpush1.bf16.msra.mxu0 0
  %1169 = vmatprep.subr.bf16.mxu0 0
  %1170 = vmatpush1.bf16.msra.mxu0 0
  %1171 = vmatprep.subr.bf16.mxu0 0
  %1172 = vmatpush1.bf16.msra.mxu0 0
  %1173 = vmatprep.subr.bf16.mxu0 0
  %1174 = vmatpush1.bf16.msra.mxu0 0
  %1175 = vmatprep.subr.bf16.mxu0 0
  %1176 = vmatpush1.bf16.msra.mxu0 0
  %1177 = vmatprep.subr.bf16.mxu0 0
  %1178 = vmatpush1.bf16.msra.mxu0 0
  %1179 = vmatprep.subr.bf16.mxu0 0
  %1180 = vmatpush1.bf16.msra.mxu0 0
  %1181 = vmatprep.subr.bf16.mxu0 0
  %1182 = vmatpush1.bf16.msra.mxu0 0
  %1183 = vmatprep.subr.bf16.mxu0 0
  %1184 = vmatpush1.bf16.msra.mxu0 0
  %1185 = vmatprep.mubr.bf16.mxu0 0
  %1186 = vmatmul.mubr.bf16.gmra.mrb[0].mxu0 %v1151
  %v1187 = vpop.f32.mrb[0].mxu0
  %v1188 = vadd.f32 0.0, %v1187
  %v1189 = vpop.f32.mrb[0].mxu0
  %v1190 = vpop.f32.mrb[0].mxu0
  %v1191 = vpop.f32.mrb[0].mxu0
  %1192 = vdwg.mxu0
  %v1193 = vadd.f32 %v1124, %v1188
  %v1194 = vld [vmem:[%s10] sm:$0x1]
  %v1196 = vlaneseq
  %v1197 = vshrl.u32 %v1196, 7
  %v1198 = vsub.s32 0, %v1197
  %v1199 = vrot.slane %v1194, %v1198
  %v1201 = vadd.f32 %v1193, %v1199
  %1202 = vst.msk [vmem:[#allocation2] sm:$0xff] %vm801, %v1201
  %v1203 = vld [vmem:[#allocation2] sm:$0xf]
  %v1204 = vld [vmem:[%s11] sm:$0x1]
  %vm1205 = vcmask 31744
  %v1207 = vsel %vm1205, %v1204, 0
  %vm1209 = vcmask 1043456
  %v1211 = vsel %vm1209, %v1203, 0
  %1213 = vmatprep.subr.mxu0 0.0
  %1214 = vmatpush1.msra.mxu0 %v1211
  %1215 = vmatprep.subr.mxu0 0.0
  %1216 = vmatpush1.msra.mxu0 0.0
  %1217 = vmatprep.subr.mxu0 0.0
  %1218 = vmatpush1.msra.mxu0 0.0
  %1219 = vmatprep.subr.mxu0 0.0
  %1220 = vmatpush1.msra.mxu0 0.0
  %1221 = vmatprep.subr.mxu0 0.0
  %1222 = vmatpush1.msra.mxu0 0.0
  %1223 = vmatprep.subr.mxu0 0.0
  %1224 = vmatpush1.msra.mxu0 0.0
  %1225 = vmatprep.subr.mxu0 0.0
  %1226 = vmatpush1.msra.mxu0 0.0
  %1227 = vmatprep.subr.mxu0 0.0
  %1228 = vmatpush1.msra.mxu0 0.0
  %1229 = vmatprep.subr.mxu0 0.0
  %1230 = vmatpush1.msra.mxu0 0.0
  %1231 = vmatprep.subr.mxu0 0.0
  %1232 = vmatpush1.msra.mxu0 0.0
  %1233 = vmatprep.subr.mxu0 0.0
  %1234 = vmatpush1.msra.mxu0 0.0
  %1235 = vmatprep.subr.mxu0 0.0
  %1236 = vmatpush1.msra.mxu0 0.0
  %1237 = vmatprep.subr.mxu0 0.0
  %1238 = vmatpush1.msra.mxu0 0.0
  %1239 = vmatprep.subr.mxu0 0.0
  %1240 = vmatpush1.msra.mxu0 0.0
  %1241 = vmatprep.subr.mxu0 0.0
  %1242 = vmatpush1.msra.mxu0 0.0
  %1243 = vmatprep.subr.mxu0 0.0
  %1244 = vmatpush1.msra.mxu0 0.0
  %1245 = vmatprep.subr.mxu0 0.0
  %1246 = vmatpush1.msra.mxu0 0.0
  %1247 = vmatprep.subr.mxu0 0.0
  %1248 = vmatpush1.msra.mxu0 0.0
  %1249 = vmatprep.subr.mxu0 0.0
  %1250 = vmatpush1.msra.mxu0 0.0
  %1251 = vmatprep.subr.mxu0 0.0
  %1252 = vmatpush1.msra.mxu0 0.0
  %1253 = vmatprep.subr.mxu0 0.0
  %1254 = vmatpush1.msra.mxu0 0.0
  %1255 = vmatprep.subr.mxu0 0.0
  %1256 = vmatpush1.msra.mxu0 0.0
  %1257 = vmatprep.subr.mxu0 0.0
  %1258 = vmatpush1.msra.mxu0 0.0
  %1259 = vmatprep.subr.mxu0 0.0
  %1260 = vmatpush1.msra.mxu0 0.0
  %1261 = vmatprep.subr.mxu0 0.0
  %1262 = vmatpush1.msra.mxu0 0.0
  %1263 = vmatprep.subr.mxu0 0.0
  %1264 = vmatpush1.msra.mxu0 0.0
  %1265 = vmatprep.subr.mxu0 0.0
  %1266 = vmatpush1.msra.mxu0 0.0
  %1267 = vmatprep.subr.mxu0 0.0
  %1268 = vmatpush1.msra.mxu0 0.0
  %1269 = vmatprep.subr.mxu0 0.0
  %1270 = vmatpush1.msra.mxu0 0.0
  %1271 = vmatprep.subr.mxu0 0.0
  %1272 = vmatpush1.msra.mxu0 0.0
  %1273 = vmatprep.subr.mxu0 0.0
  %1274 = vmatpush1.msra.mxu0 0.0
  %1275 = vmatprep.subr.mxu0 0.0
  %1276 = vmatpush1.msra.mxu0 0.0
  %1277 = vmatprep.mubr.f32.mxu0 0.0
  %1278 = vmatmul.mubr.f32.gmra.mrb[0].mxu0 %v1207
  %v1279 = vpop.f32.mrb[0].mxu0
  %v1280 = vadd.f32 0.0, %v1279
  %v1281 = vpop.f32.mrb[0].mxu0
  %1282 = vdwg.mxu0
  %v1283 = vld [vmem:[%s12] sm:$0xff]
  %v1284 = vld [vmem:[%s12 + $0x8] sm:$0xff]
  %v1285 = vld [vmem:[%s12 + $0x10] sm:$0xff]
  %v1286 = vld [vmem:[%s12 + $0x18] sm:$0xff]
  %v1288 = vsel %vm801, %v1280, 0
  %1290 = vmatprep.subr.mxu0 0.0
  %1291 = vmatpush1.msra.mxu0 %v1283
  %1292 = vmatprep.subr.mxu0 0.0
  %1293 = vmatpush1.msra.mxu0 %v1284
  %1294 = vmatprep.subr.mxu0 0.0
  %1295 = vmatpush1.msra.mxu0 %v1285
  %1296 = vmatprep.subr.mxu0 0.0
  %1297 = vmatpush1.msra.mxu0 %v1286
  %1298 = vmatprep.subr.mxu0 0.0
  %1299 = vmatpush1.msra.mxu0 0.0
  %1300 = vmatprep.subr.mxu0 0.0
  %1301 = vmatpush1.msra.mxu0 0.0
  %1302 = vmatprep.subr.mxu0 0.0
  %1303 = vmatpush1.msra.mxu0 0.0
  %1304 = vmatprep.subr.mxu0 0.0
  %1305 = vmatpush1.msra.mxu0 0.0
  %1306 = vmatprep.subr.mxu0 0.0
  %1307 = vmatpush1.msra.mxu0 0.0
  %1308 = vmatprep.subr.mxu0 0.0
  %1309 = vmatpush1.msra.mxu0 0.0
  %1310 = vmatprep.subr.mxu0 0.0
  %1311 = vmatpush1.msra.mxu0 0.0
  %1312 = vmatprep.subr.mxu0 0.0
  %1313 = vmatpush1.msra.mxu0 0.0
  %1314 = vmatprep.subr.mxu0 0.0
  %1315 = vmatpush1.msra.mxu0 0.0
  %1316 = vmatprep.subr.mxu0 0.0
  %1317 = vmatpush1.msra.mxu0 0.0
  %1318 = vmatprep.subr.mxu0 0.0
  %1319 = vmatpush1.msra.mxu0 0.0
  %1320 = vmatprep.subr.mxu0 0.0
  %1321 = vmatpush1.msra.mxu0 0.0
  %1322 = vmatprep.subr.mxu0 0.0
  %1323 = vmatpush1.msra.mxu0 0.0
  %1324 = vmatprep.subr.mxu0 0.0
  %1325 = vmatpush1.msra.mxu0 0.0
  %1326 = vmatprep.subr.mxu0 0.0
  %1327 = vmatpush1.msra.mxu0 0.0
  %1328 = vmatprep.subr.mxu0 0.0
  %1329 = vmatpush1.msra.mxu0 0.0
  %1330 = vmatprep.subr.mxu0 0.0
  %1331 = vmatpush1.msra.mxu0 0.0
  %1332 = vmatprep.subr.mxu0 0.0
  %1333 = vmatpush1.msra.mxu0 0.0
  %1334 = vmatprep.subr.mxu0 0.0
  %1335 = vmatpush1.msra.mxu0 0.0
  %1336 = vmatprep.subr.mxu0 0.0
  %1337 = vmatpush1.msra.mxu0 0.0
  %1338 = vmatprep.subr.mxu0 0.0
  %1339 = vmatpush1.msra.mxu0 0.0
  %1340 = vmatprep.subr.mxu0 0.0
  %1341 = vmatpush1.msra.mxu0 0.0
  %1342 = vmatprep.subr.mxu0 0.0
  %1343 = vmatpush1.msra.mxu0 0.0
  %1344 = vmatprep.subr.mxu0 0.0
  %1345 = vmatpush1.msra.mxu0 0.0
  %1346 = vmatprep.subr.mxu0 0.0
  %1347 = vmatpush1.msra.mxu0 0.0
  %1348 = vmatprep.subr.mxu0 0.0
  %1349 = vmatpush1.msra.mxu0 0.0
  %1350 = vmatprep.subr.mxu0 0.0
  %1351 = vmatpush1.msra.mxu0 0.0
  %1352 = vmatprep.subr.mxu0 0.0
  %1353 = vmatpush1.msra.mxu0 0.0
  %1354 = vmatprep.mubr.f32.mxu0 0.0
  %1355 = vmatmul.mubr.f32.gmra.mrb[0].mxu0 %v1288
  %v1356 = vpop.f32.mrb[0].mxu0
  %v1357 = vadd.f32 0.0, %v1356
  %v1358 = vpop.f32.mrb[0].mxu0
  %1359 = vdwg.mxu0
  %v1360 = vmax.f32 %v1357, 0.0
  %vm1361 = vcmask 57344
  %1362 = vst.msk [vmem:[#allocation3] sm:$0x1] %vm1361, %v1360
  %v1363 = vld [vmem:[#allocation2 + $0x4] sm:$0xf]
  %v1364 = vld [vmem:[%s11] sm:$0x1]
  %v1366 = vsel %vm1205, %v1364, 0
  %v1369 = vsel %vm1209, %v1363, 0
  %1371 = vmatprep.subr.mxu0 0.0
  %1372 = vmatpush1.msra.mxu0 %v1369
  %1373 = vmatprep.subr.mxu0 0.0
  %1374 = vmatpush1.msra.mxu0 0.0
  %1375 = vmatprep.subr.mxu0 0.0
  %1376 = vmatpush1.msra.mxu0 0.0
  %1377 = vmatprep.subr.mxu0 0.0
  %1378 = vmatpush1.msra.mxu0 0.0
  %1379 = vmatprep.subr.mxu0 0.0
  %1380 = vmatpush1.msra.mxu0 0.0
  %1381 = vmatprep.subr.mxu0 0.0
  %1382 = vmatpush1.msra.mxu0 0.0
  %1383 = vmatprep.subr.mxu0 0.0
  %1384 = vmatpush1.msra.mxu0 0.0
  %1385 = vmatprep.subr.mxu0 0.0
  %1386 = vmatpush1.msra.mxu0 0.0
  %1387 = vmatprep.subr.mxu0 0.0
  %1388 = vmatpush1.msra.mxu0 0.0
  %1389 = vmatprep.subr.mxu0 0.0
  %1390 = vmatpush1.msra.mxu0 0.0
  %1391 = vmatprep.subr.mxu0 0.0
  %1392 = vmatpush1.msra.mxu0 0.0
  %1393 = vmatprep.subr.mxu0 0.0
  %1394 = vmatpush1.msra.mxu0 0.0
  %1395 = vmatprep.subr.mxu0 0.0
  %1396 = vmatpush1.msra.mxu0 0.0
  %1397 = vmatprep.subr.mxu0 0.0
  %1398 = vmatpush1.msra.mxu0 0.0
  %1399 = vmatprep.subr.mxu0 0.0
  %1400 = vmatpush1.msra.mxu0 0.0
  %1401 = vmatprep.subr.mxu0 0.0
  %1402 = vmatpush1.msra.mxu0 0.0
  %1403 = vmatprep.subr.mxu0 0.0
  %1404 = vmatpush1.msra.mxu0 0.0
  %1405 = vmatprep.subr.mxu0 0.0
  %1406 = vmatpush1.msra.mxu0 0.0
  %1407 = vmatprep.subr.mxu0 0.0
  %1408 = vmatpush1.msra.mxu0 0.0
  %1409 = vmatprep.subr.mxu0 0.0
  %1410 = vmatpush1.msra.mxu0 0.0
  %1411 = vmatprep.subr.mxu0 0.0
  %1412 = vmatpush1.msra.mxu0 0.0
  %1413 = vmatprep.subr.mxu0 0.0
  %1414 = vmatpush1.msra.mxu0 0.0
  %1415 = vmatprep.subr.mxu0 0.0
  %1416 = vmatpush1.msra.mxu0 0.0
  %1417 = vmatprep.subr.mxu0 0.0
  %1418 = vmatpush1.msra.mxu0 0.0
  %1419 = vmatprep.subr.mxu0 0.0
  %1420 = vmatpush1.msra.mxu0 0.0
  %1421 = vmatprep.subr.mxu0 0.0
  %1422 = vmatpush1.msra.mxu0 0.0
  %1423 = vmatprep.subr.mxu0 0.0
  %1424 = vmatpush1.msra.mxu0 0.0
  %1425 = vmatprep.subr.mxu0 0.0
  %1426 = vmatpush1.msra.mxu0 0.0
  %1427 = vmatprep.subr.mxu0 0.0
  %1428 = vmatpush1.msra.mxu0 0.0
  %1429 = vmatprep.subr.mxu0 0.0
  %1430 = vmatpush1.msra.mxu0 0.0
  %1431 = vmatprep.subr.mxu0 0.0
  %1432 = vmatpush1.msra.mxu0 0.0
  %1433 = vmatprep.subr.mxu0 0.0
  %1434 = vmatpush1.msra.mxu0 0.0
  %1435 = vmatprep.mubr.f32.mxu0 0.0
  %1436 = vmatmul.mubr.f32.gmra.mrb[0].mxu0 %v1366
  %v1437 = vpop.f32.mrb[0].mxu0
  %v1438 = vadd.f32 0.0, %v1437
  %v1439 = vpop.f32.mrb[0].mxu0
  %1440 = vdwg.mxu0
  %v1441 = vld [vmem:[%s12] sm:$0xff]
  %v1442 = vld [vmem:[%s12 + $0x8] sm:$0xff]
  %v1443 = vld [vmem:[%s12 + $0x10] sm:$0xff]
  %v1444 = vld [vmem:[%s12 + $0x18] sm:$0xff]
  %v1446 = vsel %vm801, %v1438, 0
  %1448 = vmatprep.subr.mxu0 0.0
  %1449 = vmatpush1.msra.mxu0 %v1441
  %1450 = vmatprep.subr.mxu0 0.0
  %1451 = vmatpush1.msra.mxu0 %v1442
  %1452 = vmatprep.subr.mxu0 0.0
  %1453 = vmatpush1.msra.mxu0 %v1443
  %1454 = vmatprep.subr.mxu0 0.0
  %1455 = vmatpush1.msra.mxu0 %v1444
  %1456 = vmatprep.subr.mxu0 0.0
  %1457 = vmatpush1.msra.mxu0 0.0
  %1458 = vmatprep.subr.mxu0 0.0
  %1459 = vmatpush1.msra.mxu0 0.0
  %1460 = vmatprep.subr.mxu0 0.0
  %1461 = vmatpush1.msra.mxu0 0.0
  %1462 = vmatprep.subr.mxu0 0.0
  %1463 = vmatpush1.msra.mxu0 0.0
  %1464 = vmatprep.subr.mxu0 0.0
  %1465 = vmatpush1.msra.mxu0 0.0
  %1466 = vmatprep.subr.mxu0 0.0
  %1467 = vmatpush1.msra.mxu0 0.0
  %1468 = vmatprep.subr.mxu0 0.0
  %1469 = vmatpush1.msra.mxu0 0.0
  %1470 = vmatprep.subr.mxu0 0.0
  %1471 = vmatpush1.msra.mxu0 0.0
  %1472 = vmatprep.subr.mxu0 0.0
  %1473 = vmatpush1.msra.mxu0 0.0
  %1474 = vmatprep.subr.mxu0 0.0
  %1475 = vmatpush1.msra.mxu0 0.0
  %1476 = vmatprep.subr.mxu0 0.0
  %1477 = vmatpush1.msra.mxu0 0.0
  %1478 = vmatprep.subr.mxu0 0.0
  %1479 = vmatpush1.msra.mxu0 0.0
  %1480 = vmatprep.subr.mxu0 0.0
  %1481 = vmatpush1.msra.mxu0 0.0
  %1482 = vmatprep.subr.mxu0 0.0
  %1483 = vmatpush1.msra.mxu0 0.0
  %1484 = vmatprep.subr.mxu0 0.0
  %1485 = vmatpush1.msra.mxu0 0.0
  %1486 = vmatprep.subr.mxu0 0.0
  %1487 = vmatpush1.msra.mxu0 0.0
  %1488 = vmatprep.subr.mxu0 0.0
  %1489 = vmatpush1.msra.mxu0 0.0
  %1490 = vmatprep.subr.mxu0 0.0
  %1491 = vmatpush1.msra.mxu0 0.0
  %1492 = vmatprep.subr.mxu0 0.0
  %1493 = vmatpush1.msra.mxu0 0.0
  %1494 = vmatprep.subr.mxu0 0.0
  %1495 = vmatpush1.msra.mxu0 0.0
  %1496 = vmatprep.subr.mxu0 0.0
  %1497 = vmatpush1.msra.mxu0 0.0
  %1498 = vmatprep.subr.mxu0 0.0
  %1499 = vmatpush1.msra.mxu0 0.0
  %1500 = vmatprep.subr.mxu0 0.0
  %1501 = vmatpush1.msra.mxu0 0.0
  %1502 = vmatprep.subr.mxu0 0.0
  %1503 = vmatpush1.msra.mxu0 0.0
  %1504 = vmatprep.subr.mxu0 0.0
  %1505 = vmatpush1.msra.mxu0 0.0
  %1506 = vmatprep.subr.mxu0 0.0
  %1507 = vmatpush1.msra.mxu0 0.0
  %1508 = vmatprep.subr.mxu0 0.0
  %1509 = vmatpush1.msra.mxu0 0.0
  %1510 = vmatprep.subr.mxu0 0.0
  %1511 = vmatpush1.msra.mxu0 0.0
  %1512 = vmatprep.mubr.f32.mxu0 0.0
  %1513 = vmatmul.mubr.f32.gmra.mrb[0].mxu0 %v1446
  %v1514 = vpop.f32.mrb[0].mxu0
  %v1515 = vadd.f32 0.0, %v1514
  %v1516 = vpop.f32.mrb[0].mxu0
  %1517 = vdwg.mxu0
  %v1518 = vmax.f32 %v1515, 0.0
  %1519 = vst.msk [vmem:[#allocation3 + $0x1] sm:$0x1] %vm1361, %v1518
  %v1520 = vld [vmem:[#allocation3] sm:$0x3]
  %v1521 = vpack.c.bf16 %v1520, %v1520
  %s1522 = scalar_lea.vmem %s13, 4
  %v1523 = vld [vmem:[%s1522] sm:$0xf]
  %v1524 = vld [vmem:[%s14] sm:$0x1]
  %v1526 = vlaneseq
  %v1527 = vshrl.u32 %v1526, 7
  %v1528 = vsub.s32 0, %v1527
  %v1529 = vrot.slane %v1524, %v1528
  %vm1531 = vcmask 64512
  %v1533 = vsel %vm1531, %v1521, 0
  %v1536 = vsel %vm1209, %v1523, 0
  %1538 = vmatprep.subr.bf16.mxu0 0
  %1539 = vmatpush1.bf16.msra.mxu0 %v1536
  %1540 = vmatprep.subr.bf16.mxu0 0
  %1541 = vmatpush1.bf16.msra.mxu0 0
  %1542 = vmatprep.subr.bf16.mxu0 0
  %1543 = vmatpush1.bf16.msra.mxu0 0
  %1544 = vmatprep.subr.bf16.mxu0 0
  %1545 = vmatpush1.bf16.msra.mxu0 0
  %1546 = vmatprep.subr.bf16.mxu0 0
  %1547 = vmatpush1.bf16.msra.mxu0 0
  %1548 = vmatprep.subr.bf16.mxu0 0
  %1549 = vmatpush1.bf16.msra.mxu0 0
  %1550 = vmatprep.subr.bf16.mxu0 0
  %1551 = vmatpush1.bf16.msra.mxu0 0
  %1552 = vmatprep.subr.bf16.mxu0 0
  %1553 = vmatpush1.bf16.msra.mxu0 0
  %1554 = vmatprep.subr.bf16.mxu0 0
  %1555 = vmatpush1.bf16.msra.mxu0 0
  %1556 = vmatprep.subr.bf16.mxu0 0
  %1557 = vmatpush1.bf16.msra.mxu0 0
  %1558 = vmatprep.subr.bf16.mxu0 0
  %1559 = vmatpush1.bf16.msra.mxu0 0
  %1560 = vmatprep.subr.bf16.mxu0 0
  %1561 = vmatpush1.bf16.msra.mxu0 0
  %1562 = vmatprep.subr.bf16.mxu0 0
  %1563 = vmatpush1.bf16.msra.mxu0 0
  %1564 = vmatprep.subr.bf16.mxu0 0
  %1565 = vmatpush1.bf16.msra.mxu0 0
  %1566 = vmatprep.subr.bf16.mxu0 0
  %1567 = vmatpush1.bf16.msra.mxu0 0
  %1568 = vmatprep.subr.bf16.mxu0 0
  %1569 = vmatpush1.bf16.msra.mxu0 0
  %1570 = vmatprep.mubr.bf16.mxu0 0
  %1571 = vmatmul.mubr.bf16.gmra.mrb[0].mxu0 %v1533
  %v1572 = vpop.f32.mrb[0].mxu0
  %v1573 = vadd.f32 %v1529, %v1572
  %v1574 = vpop.f32.mrb[0].mxu0
  %v1575 = vpop.f32.mrb[0].mxu0
  %v1576 = vpop.f32.mrb[0].mxu0
  %1577 = vdwg.mxu0
  %v1578 = vpack.c.bf16 %v1573, %v1573
  %s1579 = scalar_lea.vmem %s15, 8
  %v1580 = vld [vmem:[%s1579] sm:$0xf]
  %v1581 = vld [vmem:[%s1] sm:$0x3]
  %v1582 = vpack.c.bf16 %v1581, %v1581
  %v1583 = vld [vmem:[%s1579 + $0x4] sm:$0x3]
  %v1585 = vsel %vm1205, %v1582, 0
  %vm1587 = vcmask 1041408
  %v1589 = vsel %vm1587, %v1583, 0
  %1591 = vmatprep.subr.bf16.mxu0 0
  %1592 = vmatpush1.bf16.msra.mxu0 %v1589
  %1593 = vmatprep.subr.bf16.mxu0 0
  %1594 = vmatpush1.bf16.msra.mxu0 0
  %1595 = vmatprep.subr.bf16.mxu0 0
  %1596 = vmatpush1.bf16.msra.mxu0 0
  %1597 = vmatprep.subr.bf16.mxu0 0
  %1598 = vmatpush1.bf16.msra.mxu0 0
  %1599 = vmatprep.subr.bf16.mxu0 0
  %1600 = vmatpush1.bf16.msra.mxu0 0
  %1601 = vmatprep.subr.bf16.mxu0 0
  %1602 = vmatpush1.bf16.msra.mxu0 0
  %1603 = vmatprep.subr.bf16.mxu0 0
  %1604 = vmatpush1.bf16.msra.mxu0 0
  %1605 = vmatprep.subr.bf16.mxu0 0
  %1606 = vmatpush1.bf16.msra.mxu0 0
  %1607 = vmatprep.subr.bf16.mxu0 0
  %1608 = vmatpush1.bf16.msra.mxu0 0
  %1609 = vmatprep.subr.bf16.mxu0 0
  %1610 = vmatpush1.bf16.msra.mxu0 0
  %1611 = vmatprep.subr.bf16.mxu0 0
  %1612 = vmatpush1.bf16.msra.mxu0 0
  %1613 = vmatprep.subr.bf16.mxu0 0
  %1614 = vmatpush1.bf16.msra.mxu0 0
  %1615 = vmatprep.subr.bf16.mxu0 0
  %1616 = vmatpush1.bf16.msra.mxu0 0
  %1617 = vmatprep.subr.bf16.mxu0 0
  %1618 = vmatpush1.bf16.msra.mxu0 0
  %1619 = vmatprep.subr.bf16.mxu0 0
  %1620 = vmatpush1.bf16.msra.mxu0 0
  %1621 = vmatprep.subr.bf16.mxu0 0
  %1622 = vmatpush1.bf16.msra.mxu0 0
  %1623 = vmatprep.mubr.bf16.mxu0 0
  %1624 = vmatmul.mubr.bf16.gmra.mrb[0].mxu0 %v1585
  %v1625 = vpop.f32.mrb[0].mxu0
  %v1626 = vadd.f32 0.0, %v1625
  %v1627 = vpop.f32.mrb[0].mxu0
  %v1628 = vpop.f32.mrb[0].mxu0
  %v1629 = vpop.f32.mrb[0].mxu0
  %1630 = vdwg.mxu0
  %v1632 = vsel %vm1531, %v1578, 0
  %v1635 = vsel %vm1209, %v1580, 0
  %1637 = vmatprep.subr.bf16.mxu0 0
  %1638 = vmatpush1.bf16.msra.mxu0 %v1635
  %1639 = vmatprep.subr.bf16.mxu0 0
  %1640 = vmatpush1.bf16.msra.mxu0 0
  %1641 = vmatprep.subr.bf16.mxu0 0
  %1642 = vmatpush1.bf16.msra.mxu0 0
  %1643 = vmatprep.subr.bf16.mxu0 0
  %1644 = vmatpush1.bf16.msra.mxu0 0
  %1645 = vmatprep.subr.bf16.mxu0 0
  %1646 = vmatpush1.bf16.msra.mxu0 0
  %1647 = vmatprep.subr.bf16.mxu0 0
  %1648 = vmatpush1.bf16.msra.mxu0 0
  %1649 = vmatprep.subr.bf16.mxu0 0
  %1650 = vmatpush1.bf16.msra.mxu0 0
  %1651 = vmatprep.subr.bf16.mxu0 0
  %1652 = vmatpush1.bf16.msra.mxu0 0
  %1653 = vmatprep.subr.bf16.mxu0 0
  %1654 = vmatpush1.bf16.msra.mxu0 0
  %1655 = vmatprep.subr.bf16.mxu0 0
  %1656 = vmatpush1.bf16.msra.mxu0 0
  %1657 = vmatprep.subr.bf16.mxu0 0
  %1658 = vmatpush1.bf16.msra.mxu0 0
  %1659 = vmatprep.subr.bf16.mxu0 0
  %1660 = vmatpush1.bf16.msra.mxu0 0
  %1661 = vmatprep.subr.bf16.mxu0 0
  %1662 = vmatpush1.bf16.msra.mxu0 0
  %1663 = vmatprep.subr.bf16.mxu0 0
  %1664 = vmatpush1.bf16.msra.mxu0 0
  %1665 = vmatprep.subr.bf16.mxu0 0
  %1666 = vmatpush1.bf16.msra.mxu0 0
  %1667 = vmatprep.subr.bf16.mxu0 0
  %1668 = vmatpush1.bf16.msra.mxu0 0
  %1669 = vmatprep.mubr.bf16.mxu0 0
  %1670 = vmatmul.mubr.bf16.gmra.mrb[0].mxu0 %v1632
  %v1671 = vpop.f32.mrb[0].mxu0
  %v1672 = vadd.f32 %v1626, %v1671
  %v1673 = vpop.f32.mrb[0].mxu0
  %v1674 = vpop.f32.mrb[0].mxu0
  %v1675 = vpop.f32.mrb[0].mxu0
  %1676 = vdwg.mxu0
  %v1677 = vld [vmem:[%s16] sm:$0x1]
  %v1679 = vlaneseq
  %v1680 = vshrl.u32 %v1679, 7
  %v1681 = vsub.s32 0, %v1680
  %v1682 = vrot.slane %v1677, %v1681
  %v1684 = vadd.f32 %v1672, %v1682
  %vm1685 = vcmask 58368
  %1686 = vst.msk [vmem:[#allocation2] sm:$0x3] %vm1685, %v1684
  %v1687 = vld [vmem:[#allocation2] sm:$0x1]
  %v1688 = vlaneseq
  %v1689 = vshrl.u32 %v1688, 7
  %v1690 = vsub.s32 0, %v1689
  %v1691 = vrot.slane %v1687, %v1690
  %v1692 = vld [vmem:[%s18] sm:$0xff]
  %v1694 = vsel %vm1531, %v1691, 0
  %1696 = vmatprep.subr.mxu0 0.0
  %1697 = vmatpush1.msra.mxu0 %v1692
  %1698 = vmatprep.subr.mxu0 0.0
  %1699 = vmatpush1.msra.mxu0 0.0
  %1700 = vmatprep.subr.mxu0 0.0
  %1701 = vmatpush1.msra.mxu0 0.0
  %1702 = vmatprep.subr.mxu0 0.0
  %1703 = vmatpush1.msra.mxu0 0.0
  %1704 = vmatprep.subr.mxu0 0.0
  %1705 = vmatpush1.msra.mxu0 0.0
  %1706 = vmatprep.subr.mxu0 0.0
  %1707 = vmatpush1.msra.mxu0 0.0
  %1708 = vmatprep.subr.mxu0 0.0
  %1709 = vmatpush1.msra.mxu0 0.0
  %1710 = vmatprep.subr.mxu0 0.0
  %1711 = vmatpush1.msra.mxu0 0.0
  %1712 = vmatprep.subr.mxu0 0.0
  %1713 = vmatpush1.msra.mxu0 0.0
  %1714 = vmatprep.subr.mxu0 0.0
  %1715 = vmatpush1.msra.mxu0 0.0
  %1716 = vmatprep.subr.mxu0 0.0
  %1717 = vmatpush1.msra.mxu0 0.0
  %1718 = vmatprep.subr.mxu0 0.0
  %1719 = vmatpush1.msra.mxu0 0.0
  %1720 = vmatprep.subr.mxu0 0.0
  %1721 = vmatpush1.msra.mxu0 0.0
  %1722 = vmatprep.subr.mxu0 0.0
  %1723 = vmatpush1.msra.mxu0 0.0
  %1724 = vmatprep.subr.mxu0 0.0
  %1725 = vmatpush1.msra.mxu0 0.0
  %1726 = vmatprep.subr.mxu0 0.0
  %1727 = vmatpush1.msra.mxu0 0.0
  %1728 = vmatprep.subr.mxu0 0.0
  %1729 = vmatpush1.msra.mxu0 0.0
  %1730 = vmatprep.subr.mxu0 0.0
  %1731 = vmatpush1.msra.mxu0 0.0
  %1732 = vmatprep.subr.mxu0 0.0
  %1733 = vmatpush1.msra.mxu0 0.0
  %1734 = vmatprep.subr.mxu0 0.0
  %1735 = vmatpush1.msra.mxu0 0.0
  %1736 = vmatprep.subr.mxu0 0.0
  %1737 = vmatpush1.msra.mxu0 0.0
  %1738 = vmatprep.subr.mxu0 0.0
  %1739 = vmatpush1.msra.mxu0 0.0
  %1740 = vmatprep.subr.mxu0 0.0
  %1741 = vmatpush1.msra.mxu0 0.0
  %1742 = vmatprep.subr.mxu0 0.0
  %1743 = vmatpush1.msra.mxu0 0.0
  %1744 = vmatprep.subr.mxu0 0.0
  %1745 = vmatpush1.msra.mxu0 0.0
  %1746 = vmatprep.subr.mxu0 0.0
  %1747 = vmatpush1.msra.mxu0 0.0
  %1748 = vmatprep.subr.mxu0 0.0
  %1749 = vmatpush1.msra.mxu0 0.0
  %1750 = vmatprep.subr.mxu0 0.0
  %1751 = vmatpush1.msra.mxu0 0.0
  %1752 = vmatprep.subr.mxu0 0.0
  %1753 = vmatpush1.msra.mxu0 0.0
  %1754 = vmatprep.subr.mxu0 0.0
  %1755 = vmatpush1.msra.mxu0 0.0
  %1756 = vmatprep.subr.mxu0 0.0
  %1757 = vmatpush1.msra.mxu0 0.0
  %1758 = vmatprep.subr.mxu0 0.0
  %1759 = vmatpush1.msra.mxu0 0.0
  %1760 = vmatprep.mubr.f32.mxu0 0.0
  %1761 = vmatmul.mubr.f32.gmra.mrb[0].mxu0 %v1694
  %v1762 = vpop.f32.mrb[0].mxu0
  %v1763 = vadd.f32 0.0, %v1762
  %v1764 = vpop.f32.mrb[0].mxu0
  %1765 = vdwg.mxu0
  %v1766 = vmax.f32 %v1763, 0.0
  %1767 = vst.msk [vmem:[#allocation3] sm:$0xf] %vm634, %v1766
  %v1768 = vld [vmem:[#allocation2 + $0x1] sm:$0x1]
  %v1769 = vlaneseq
  %v1770 = vshrl.u32 %v1769, 7
  %v1771 = vsub.s32 0, %v1770
  %v1772 = vrot.slane %v1768, %v1771
  %v1773 = vld [vmem:[%s18] sm:$0xff]
  %v1775 = vsel %vm1531, %v1772, 0
  %1777 = vmatprep.subr.mxu0 0.0
  %1778 = vmatpush1.msra.mxu0 %v1773
  %1779 = vmatprep.subr.mxu0 0.0
  %1780 = vmatpush1.msra.mxu0 0.0
  %1781 = vmatprep.subr.mxu0 0.0
  %1782 = vmatpush1.msra.mxu0 0.0
  %1783 = vmatprep.subr.mxu0 0.0
  %1784 = vmatpush1.msra.mxu0 0.0
  %1785 = vmatprep.subr.mxu0 0.0
  %1786 = vmatpush1.msra.mxu0 0.0
  %1787 = vmatprep.subr.mxu0 0.0
  %1788 = vmatpush1.msra.mxu0 0.0
  %1789 = vmatprep.subr.mxu0 0.0
  %1790 = vmatpush1.msra.mxu0 0.0
  %1791 = vmatprep.subr.mxu0 0.0
  %1792 = vmatpush1.msra.mxu0 0.0
  %1793 = vmatprep.subr.mxu0 0.0
  %1794 = vmatpush1.msra.mxu0 0.0
  %1795 = vmatprep.subr.mxu0 0.0
  %1796 = vmatpush1.msra.mxu0 0.0
  %1797 = vmatprep.subr.mxu0 0.0
  %1798 = vmatpush1.msra.mxu0 0.0
  %1799 = vmatprep.subr.mxu0 0.0
  %1800 = vmatpush1.msra.mxu0 0.0
  %1801 = vmatprep.subr.mxu0 0.0
  %1802 = vmatpush1.msra.mxu0 0.0
  %1803 = vmatprep.subr.mxu0 0.0
  %1804 = vmatpush1.msra.mxu0 0.0
  %1805 = vmatprep.subr.mxu0 0.0
  %1806 = vmatpush1.msra.mxu0 0.0
  %1807 = vmatprep.subr.mxu0 0.0
  %1808 = vmatpush1.msra.mxu0 0.0
  %1809 = vmatprep.subr.mxu0 0.0
  %1810 = vmatpush1.msra.mxu0 0.0
  %1811 = vmatprep.subr.mxu0 0.0
  %1812 = vmatpush1.msra.mxu0 0.0
  %1813 = vmatprep.subr.mxu0 0.0
  %1814 = vmatpush1.msra.mxu0 0.0
  %1815 = vmatprep.subr.mxu0 0.0
  %1816 = vmatpush1.msra.mxu0 0.0
  %1817 = vmatprep.subr.mxu0 0.0
  %1818 = vmatpush1.msra.mxu0 0.0
  %1819 = vmatprep.subr.mxu0 0.0
  %1820 = vmatpush1.msra.mxu0 0.0
  %1821 = vmatprep.subr.mxu0 0.0
  %1822 = vmatpush1.msra.mxu0 0.0
  %1823 = vmatprep.subr.mxu0 0.0
  %1824 = vmatpush1.msra.mxu0 0.0
  %1825 = vmatprep.subr.mxu0 0.0
  %1826 = vmatpush1.msra.mxu0 0.0
  %1827 = vmatprep.subr.mxu0 0.0
  %1828 = vmatpush1.msra.mxu0 0.0
  %1829 = vmatprep.subr.mxu0 0.0
  %1830 = vmatpush1.msra.mxu0 0.0
  %1831 = vmatprep.subr.mxu0 0.0
  %1832 = vmatpush1.msra.mxu0 0.0
  %1833 = vmatprep.subr.mxu0 0.0
  %1834 = vmatpush1.msra.mxu0 0.0
  %1835 = vmatprep.subr.mxu0 0.0
  %1836 = vmatpush1.msra.mxu0 0.0
  %1837 = vmatprep.subr.mxu0 0.0
  %1838 = vmatpush1.msra.mxu0 0.0
  %1839 = vmatprep.subr.mxu0 0.0
  %1840 = vmatpush1.msra.mxu0 0.0
  %1841 = vmatprep.mubr.f32.mxu0 0.0
  %1842 = vmatmul.mubr.f32.gmra.mrb[0].mxu0 %v1775
  %v1843 = vpop.f32.mrb[0].mxu0
  %v1844 = vadd.f32 0.0, %v1843
  %v1845 = vpop.f32.mrb[0].mxu0
  %1846 = vdwg.mxu0
  %v1847 = vmax.f32 %v1844, 0.0
  %1848 = vst.msk [vmem:[#allocation3 + $0x4] sm:$0xf] %vm634, %v1847
  %v1849 = vld [vmem:[#allocation3] sm:$0xff]
  %v1850 = vsel %vm801, %v1849, 0.0
  %v1851 = vrot.slane %v1850, 4
  %v1852 = vadd.f32 %v1850, %v1851
  %v1853 = vrot.slane %v1852, 2
  %v1854 = vadd.f32 %v1852, %v1853
  %v1855 = vrot.slane %v1854, 1
  %v1856 = vadd.f32 %v1854, %v1855
  %v1857 = vmul.f32 %v1849, %v1849
  %v1858 = vsel %vm801, %v1857, 0.0
  %v1859 = vrot.slane %v1858, 4
  %v1860 = vadd.f32 %v1858, %v1859
  %v1861 = vrot.slane %v1860, 2
  %v1862 = vadd.f32 %v1860, %v1861
  %v1863 = vrot.slane %v1862, 1
  %v1864 = vadd.f32 %v1862, %v1863
  %v1865 = vld [vmem:[%s19] sm:$0xff]
  %v1866 = vld [vmem:[%s19 + $0x8] sm:$0xff]
  %v1867 = vld [vmem:[%s19 + $0x10] sm:$0xff]
  %v1868 = vld [vmem:[%s19 + $0x18] sm:$0xff]
  %v1870 = vsel %vm801, %v1856, 0
  %1872 = vmatprep.subr.mxu0 0.0
  %1873 = vmatpush1.msra.mxu0 %v1865
  %1874 = vmatprep.subr.mxu0 0.0
  %1875 = vmatpush1.msra.mxu0 %v1866
  %1876 = vmatprep.subr.mxu0 0.0
  %1877 = vmatpush1.msra.mxu0 %v1867
  %1878 = vmatprep.subr.mxu0 0.0
  %1879 = vmatpush1.msra.mxu0 %v1868
  %1880 = vmatprep.subr.mxu0 0.0
  %1881 = vmatpush1.msra.mxu0 0.0
  %1882 = vmatprep.subr.mxu0 0.0
  %1883 = vmatpush1.msra.mxu0 0.0
  %1884 = vmatprep.subr.mxu0 0.0
  %1885 = vmatpush1.msra.mxu0 0.0
  %1886 = vmatprep.subr.mxu0 0.0
  %1887 = vmatpush1.msra.mxu0 0.0
  %1888 = vmatprep.subr.mxu0 0.0
  %1889 = vmatpush1.msra.mxu0 0.0
  %1890 = vmatprep.subr.mxu0 0.0
  %1891 = vmatpush1.msra.mxu0 0.0
  %1892 = vmatprep.subr.mxu0 0.0
  %1893 = vmatpush1.msra.mxu0 0.0
  %1894 = vmatprep.subr.mxu0 0.0
  %1895 = vmatpush1.msra.mxu0 0.0
  %1896 = vmatprep.subr.mxu0 0.0
  %1897 = vmatpush1.msra.mxu0 0.0
  %1898 = vmatprep.subr.mxu0 0.0
  %1899 = vmatpush1.msra.mxu0 0.0
  %1900 = vmatprep.subr.mxu0 0.0
  %1901 = vmatpush1.msra.mxu0 0.0
  %1902 = vmatprep.subr.mxu0 0.0
  %1903 = vmatpush1.msra.mxu0 0.0
  %1904 = vmatprep.subr.mxu0 0.0
  %1905 = vmatpush1.msra.mxu0 0.0
  %1906 = vmatprep.subr.mxu0 0.0
  %1907 = vmatpush1.msra.mxu0 0.0
  %1908 = vmatprep.subr.mxu0 0.0
  %1909 = vmatpush1.msra.mxu0 0.0
  %1910 = vmatprep.subr.mxu0 0.0
  %1911 = vmatpush1.msra.mxu0 0.0
  %1912 = vmatprep.subr.mxu0 0.0
  %1913 = vmatpush1.msra.mxu0 0.0
  %1914 = vmatprep.subr.mxu0 0.0
  %1915 = vmatpush1.msra.mxu0 0.0
  %1916 = vmatprep.subr.mxu0 0.0
  %1917 = vmatpush1.msra.mxu0 0.0
  %1918 = vmatprep.subr.mxu0 0.0
  %1919 = vmatpush1.msra.mxu0 0.0
  %1920 = vmatprep.subr.mxu0 0.0
  %1921 = vmatpush1.msra.mxu0 0.0
  %1922 = vmatprep.subr.mxu0 0.0
  %1923 = vmatpush1.msra.mxu0 0.0
  %1924 = vmatprep.subr.mxu0 0.0
  %1925 = vmatpush1.msra.mxu0 0.0
  %1926 = vmatprep.subr.mxu0 0.0
  %1927 = vmatpush1.msra.mxu0 0.0
  %1928 = vmatprep.subr.mxu0 0.0
  %1929 = vmatpush1.msra.mxu0 0.0
  %1930 = vmatprep.subr.mxu0 0.0
  %1931 = vmatpush1.msra.mxu0 0.0
  %1932 = vmatprep.subr.mxu0 0.0
  %1933 = vmatpush1.msra.mxu0 0.0
  %1934 = vmatprep.subr.mxu0 0.0
  %1935 = vmatpush1.msra.mxu0 0.0
  %1936 = vmatprep.mubr.f32.mxu0 0.0
  %1937 = vmatmul.mubr.f32.gmra.mrb[0].mxu0 %v1870
  %v1938 = vpop.f32.mrb[0].mxu0
  %v1939 = vadd.f32 0.0, %v1938
  %v1940 = vpop.f32.mrb[0].mxu0
  %1941 = vdwg.mxu0
  %v1942 = vmul.f32 %v1939, 0.03125
  %v1944 = vsel %vm801, %v1864, 0
  %1946 = vmatprep.subr.mxu0 0.0
  %1947 = vmatpush1.msra.mxu0 %v1865
  %1948 = vmatprep.subr.mxu0 0.0
  %1949 = vmatpush1.msra.mxu0 %v1866
  %1950 = vmatprep.subr.mxu0 0.0
  %1951 = vmatpush1.msra.mxu0 %v1867
  %1952 = vmatprep.subr.mxu0 0.0
  %1953 = vmatpush1.msra.mxu0 %v1868
  %1954 = vmatprep.subr.mxu0 0.0
  %1955 = vmatpush1.msra.mxu0 0.0
  %1956 = vmatprep.subr.mxu0 0.0
  %1957 = vmatpush1.msra.mxu0 0.0
  %1958 = vmatprep.subr.mxu0 0.0
  %1959 = vmatpush1.msra.mxu0 0.0
  %1960 = vmatprep.subr.mxu0 0.0
  %1961 = vmatpush1.msra.mxu0 0.0
  %1962 = vmatprep.subr.mxu0 0.0
  %1963 = vmatpush1.msra.mxu0 0.0
  %1964 = vmatprep.subr.mxu0 0.0
  %1965 = vmatpush1.msra.mxu0 0.0
  %1966 = vmatprep.subr.mxu0 0.0
  %1967 = vmatpush1.msra.mxu0 0.0
  %1968 = vmatprep.subr.mxu0 0.0
  %1969 = vmatpush1.msra.mxu0 0.0
  %1970 = vmatprep.subr.mxu0 0.0
  %1971 = vmatpush1.msra.mxu0 0.0
  %1972 = vmatprep.subr.mxu0 0.0
  %1973 = vmatpush1.msra.mxu0 0.0
  %1974 = vmatprep.subr.mxu0 0.0
  %1975 = vmatpush1.msra.mxu0 0.0
  %1976 = vmatprep.subr.mxu0 0.0
  %1977 = vmatpush1.msra.mxu0 0.0
  %1978 = vmatprep.subr.mxu0 0.0
  %1979 = vmatpush1.msra.mxu0 0.0
  %1980 = vmatprep.subr.mxu0 0.0
  %1981 = vmatpush1.msra.mxu0 0.0
  %1982 = vmatprep.subr.mxu0 0.0
  %1983 = vmatpush1.msra.mxu0 0.0
  %1984 = vmatprep.subr.mxu0 0.0
  %1985 = vmatpush1.msra.mxu0 0.0
  %1986 = vmatprep.subr.mxu0 0.0
  %1987 = vmatpush1.msra.mxu0 0.0
  %1988 = vmatprep.subr.mxu0 0.0
  %1989 = vmatpush1.msra.mxu0 0.0
  %1990 = vmatprep.subr.mxu0 0.0
  %1991 = vmatpush1.msra.mxu0 0.0
  %1992 = vmatprep.subr.mxu0 0.0
  %1993 = vmatpush1.msra.mxu0 0.0
  %1994 = vmatprep.subr.mxu0 0.0
  %1995 = vmatpush1.msra.mxu0 0.0
  %1996 = vmatprep.subr.mxu0 0.0
  %1997 = vmatpush1.msra.mxu0 0.0
  %1998 = vmatprep.subr.mxu0 0.0
  %1999 = vmatpush1.msra.mxu0 0.0
  %2000 = vmatprep.subr.mxu0 0.0
  %2001 = vmatpush1.msra.mxu0 0.0
  %2002 = vmatprep.subr.mxu0 0.0
  %2003 = vmatpush1.msra.mxu0 0.0
  %2004 = vmatprep.subr.mxu0 0.0
  %2005 = vmatpush1.msra.mxu0 0.0
  %2006 = vmatprep.subr.mxu0 0.0
  %2007 = vmatpush1.msra.mxu0 0.0
  %2008 = vmatprep.subr.mxu0 0.0
  %2009 = vmatpush1.msra.mxu0 0.0
  %2010 = vmatprep.mubr.f32.mxu0 0.0
  %2011 = vmatmul.mubr.f32.gmra.mrb[0].mxu0 %v1944
  %v2012 = vpop.f32.mrb[0].mxu0
  %v2013 = vadd.f32 0.0, %v2012
  %v2014 = vpop.f32.mrb[0].mxu0
  %2015 = vdwg.mxu0
  %v2016 = vmul.f32 %v2013, 0.03125
  %v2017 = vmul.f32 %v1942, %v1942
  %v2018 = vsub.f32 %v2016, %v2017
  %v2019 = vadd.f32 %v2018, 1e-05
  %v2020 = vrsqrt.pop %v2019
  %v2021 = vlaneseq
  %v2022 = vshrl.u32 %v2021, 7
  %v2023 = vsub.s32 0, %v2022
  %v2024 = vrot.slane %v1942, %v2023
  %v2025 = vsub.f32 %v1849, %v2024
  %v2026 = vld [vmem:[%s20] sm:$0x1]
  %v2027 = vmul.f32 %v2020, %v2026
  %v2028 = vlaneseq
  %v2029 = vshrl.u32 %v2028, 7
  %v2030 = vsub.s32 0, %v2029
  %v2031 = vrot.slane %v2027, %v2030
  %v2032 = vmul.f32 %v2025, %v2031
  %v2033 = vld [vmem:[%s21] sm:$0x1]
  %v2035 = vlaneseq
  %v2036 = vshrl.u32 %v2035, 7
  %v2037 = vsub.s32 0, %v2036
  %v2038 = vrot.slane %v2033, %v2037
  %v2040 = vadd.f32 %v2032, %v2038
  %v2041 = vpack.c.bf16 %v2040, %v2040
  %s2042 = scalar_lea.vmem %s22, 16
  %v2043 = vld [vmem:[%s2042] sm:$0xf]
  %v2044 = vld [vmem:[%s2042 + $0x4] sm:$0xf]
  %v2045 = vld [vmem:[%s2042 + $0x8] sm:$0xf]
  %v2046 = vld [vmem:[%s2042 + $0xc] sm:$0xf]
  %v2047 = vrot.slane %v2040, 7
  %v2048 = vsel %vm1011, %v2047, 0.0
  %v2049 = vpack.c.bf16 %v2048, %v2048
  %v2050 = vld [vmem:[%s22] sm:$0xf]
  %v2051 = vld [vmem:[%s22 + $0x4] sm:$0xf]
  %v2052 = vld [vmem:[%s22 + $0x8] sm:$0xf]
  %v2053 = vld [vmem:[%s22 + $0xc] sm:$0xf]
  %v2058 = vunpack.c.l.b16 %v2050
  %v2059 = vunpack.c.l.b16 %v2051
  %v2060 = vunpack.c.l.b16 %v2052
  %v2061 = vunpack.c.l.b16 %v2053
  %v2062 = vpack.c.b16 %v2059, %v2058
  %v2063 = vpack.c.b16 %v2061, %v2060
  %v2067 = vsel %vm801, %v2049, 0
  %2069 = vmatprep.subr.bf16.mxu0 0
  %2070 = vmatpush1.bf16.msra.mxu0 %v2062
  %2071 = vmatprep.subr.bf16.mxu0 0
  %2072 = vmatpush1.bf16.msra.mxu0 %v2063
  %2073 = vmatprep.subr.bf16.mxu0 0
  %2074 = vmatpush1.bf16.msra.mxu0 0
  %2075 = vmatprep.subr.bf16.mxu0 0
  %2076 = vmatpush1.bf16.msra.mxu0 0
  %2077 = vmatprep.subr.bf16.mxu0 0
  %2078 = vmatpush1.bf16.msra.mxu0 0
  %2079 = vmatprep.subr.bf16.mxu0 0
  %2080 = vmatpush1.bf16.msra.mxu0 0
  %2081 = vmatprep.subr.bf16.mxu0 0
  %2082 = vmatpush1.bf16.msra.mxu0 0
  %2083 = vmatprep.subr.bf16.mxu0 0
  %2084 = vmatpush1.bf16.msra.mxu0 0
  %2085 = vmatprep.subr.bf16.mxu0 0
  %2086 = vmatpush1.bf16.msra.mxu0 0
  %2087 = vmatprep.subr.bf16.mxu0 0
  %2088 = vmatpush1.bf16.msra.mxu0 0
  %2089 = vmatprep.subr.bf16.mxu0 0
  %2090 = vmatpush1.bf16.msra.mxu0 0
  %2091 = vmatprep.subr.bf16.mxu0 0
  %2092 = vmatpush1.bf16.msra.mxu0 0
  %2093 = vmatprep.subr.bf16.mxu0 0
  %2094 = vmatpush1.bf16.msra.mxu0 0
  %2095 = vmatprep.subr.bf16.mxu0 0
  %2096 = vmatpush1.bf16.msra.mxu0 0
  %2097 = vmatprep.subr.bf16.mxu0 0
  %2098 = vmatpush1.bf16.msra.mxu0 0
  %2099 = vmatprep.subr.bf16.mxu0 0
  %2100 = vmatpush1.bf16.msra.mxu0 0
  %2101 = vmatprep.mubr.bf16.mxu0 0
  %2102 = vmatmul.mubr.bf16.gmra.mrb[0].mxu0 %v2067
  %v2103 = vpop.f32.mrb[0].mxu0
  %v2104 = vadd.f32 0.0, %v2103
  %v2105 = vpop.f32.mrb[0].mxu0
  %v2106 = vpop.f32.mrb[0].mxu0
  %v2107 = vpop.f32.mrb[0].mxu0
  %2108 = vdwg.mxu0
  %v2113 = vunpack.c.l.b16 %v2043
  %v2114 = vunpack.c.l.b16 %v2044
  %v2115 = vunpack.c.l.b16 %v2045
  %v2116 = vunpack.c.l.b16 %v2046
  %v2117 = vpack.c.b16 %v2114, %v2113
  %v2118 = vpack.c.b16 %v2116, %v2115
  %v2122 = vsel %vm801, %v2041, 0
  %2124 = vmatprep.subr.bf16.mxu0 0
  %2125 = vmatpush1.bf16.msra.mxu0 %v2117
  %2126 = vmatprep.subr.bf16.mxu0 0
  %2127 = vmatpush1.bf16.msra.mxu0 %v2118
  %2128 = vmatprep.subr.bf16.mxu0 0
  %2129 = vmatpush1.bf16.msra.mxu0 0
  %2130 = vmatprep.subr.bf16.mxu0 0
  %2131 = vmatpush1.bf16.msra.mxu0 0
  %2132 = vmatprep.subr.bf16.mxu0 0
  %2133 = vmatpush1.bf16.msra.mxu0 0
  %2134 = vmatprep.subr.bf16.mxu0 0
  %2135 = vmatpush1.bf16.msra.mxu0 0
  %2136 = vmatprep.subr.bf16.mxu0 0
  %2137 = vmatpush1.bf16.msra.mxu0 0
  %2138 = vmatprep.subr.bf16.mxu0 0
  %2139 = vmatpush1.bf16.msra.mxu0 0
  %2140 = vmatprep.subr.bf16.mxu0 0
  %2141 = vmatpush1.bf16.msra.mxu0 0
  %2142 = vmatprep.subr.bf16.mxu0 0
  %2143 = vmatpush1.bf16.msra.mxu0 0
  %2144 = vmatprep.subr.bf16.mxu0 0
  %2145 = vmatpush1.bf16.msra.mxu0 0
  %2146 = vmatprep.subr.bf16.mxu0 0
  %2147 = vmatpush1.bf16.msra.mxu0 0
  %2148 = vmatprep.subr.bf16.mxu0 0
  %2149 = vmatpush1.bf16.msra.mxu0 0
  %2150 = vmatprep.subr.bf16.mxu0 0
  %2151 = vmatpush1.bf16.msra.mxu0 0
  %2152 = vmatprep.subr.bf16.mxu0 0
  %2153 = vmatpush1.bf16.msra.mxu0 0
  %2154 = vmatprep.subr.bf16.mxu0 0
  %2155 = vmatpush1.bf16.msra.mxu0 0
  %2156 = vmatprep.mubr.bf16.mxu0 0
  %2157 = vmatmul.mubr.bf16.gmra.mrb[0].mxu0 %v2122
  %v2158 = vpop.f32.mrb[0].mxu0
  %v2159 = vadd.f32 %v2104, %v2158
  %v2160 = vpop.f32.mrb[0].mxu0
  %v2161 = vpop.f32.mrb[0].mxu0
  %v2162 = vpop.f32.mrb[0].mxu0
  %2163 = vdwg.mxu0
  %v2164 = vrot.slane %v2040, 1
  %v2165 = vsel %vm1129, %v2164, 0.0
  %v2166 = vpack.c.bf16 %v2165, %v2165
  %s2167 = scalar_lea.vmem %s22, 32
  %v2168 = vld [vmem:[%s2167] sm:$0xf]
  %v2169 = vld [vmem:[%s2167 + $0x4] sm:$0xf]
  %v2170 = vld [vmem:[%s2167 + $0x8] sm:$0xf]
  %v2171 = vld [vmem:[%s2167 + $0xc] sm:$0xf]
  %v2176 = vunpack.c.l.b16 %v2168
  %v2177 = vunpack.c.l.b16 %v2169
  %v2178 = vunpack.c.l.b16 %v2170
  %v2179 = vunpack.c.l.b16 %v2171
  %v2180 = vpack.c.b16 %v2177, %v2176
  %v2181 = vpack.c.b16 %v2179, %v2178
  %v2185 = vsel %vm801, %v2166, 0
  %2187 = vmatprep.subr.bf16.mxu0 0
  %2188 = vmatpush1.bf16.msra.mxu0 %v2180
  %2189 = vmatprep.subr.bf16.mxu0 0
  %2190 = vmatpush1.bf16.msra.mxu0 %v2181
  %2191 = vmatprep.subr.bf16.mxu0 0
  %2192 = vmatpush1.bf16.msra.mxu0 0
  %2193 = vmatprep.subr.bf16.mxu0 0
  %2194 = vmatpush1.bf16.msra.mxu0 0
  %2195 = vmatprep.subr.bf16.mxu0 0
  %2196 = vmatpush1.bf16.msra.mxu0 0
  %2197 = vmatprep.subr.bf16.mxu0 0
  %2198 = vmatpush1.bf16.msra.mxu0 0
  %2199 = vmatprep.subr.bf16.mxu0 0
  %2200 = vmatpush1.bf16.msra.mxu0 0
  %2201 = vmatprep.subr.bf16.mxu0 0
  %2202 = vmatpush1.bf16.msra.mxu0 0
  %2203 = vmatprep.subr.bf16.mxu0 0
  %2204 = vmatpush1.bf16.msra.mxu0 0
  %2205 = vmatprep.subr.bf16.mxu0 0
  %2206 = vmatpush1.bf16.msra.mxu0 0
  %2207 = vmatprep.subr.bf16.mxu0 0
  %2208 = vmatpush1.bf16.msra.mxu0 0
  %2209 = vmatprep.subr.bf16.mxu0 0
  %2210 = vmatpush1.bf16.msra.mxu0 0
  %2211 = vmatprep.subr.bf16.mxu0 0
  %2212 = vmatpush1.bf16.msra.mxu0 0
  %2213 = vmatprep.subr.bf16.mxu0 0
  %2214 = vmatpush1.bf16.msra.mxu0 0
  %2215 = vmatprep.subr.bf16.mxu0 0
  %2216 = vmatpush1.bf16.msra.mxu0 0
  %2217 = vmatprep.subr.bf16.mxu0 0
  %2218 = vmatpush1.bf16.msra.mxu0 0
  %2219 = vmatprep.mubr.bf16.mxu0 0
  %2220 = vmatmul.mubr.bf16.gmra.mrb[0].mxu0 %v2185
  %v2221 = vpop.f32.mrb[0].mxu0
  %v2222 = vadd.f32 0.0, %v2221
  %v2223 = vpop.f32.mrb[0].mxu0
  %v2224 = vpop.f32.mrb[0].mxu0
  %v2225 = vpop.f32.mrb[0].mxu0
  %2226 = vdwg.mxu0
  %v2227 = vadd.f32 %v2159, %v2222
  %v2228 = vld [vmem:[%s23] sm:$0x1]
  %v2230 = vlaneseq
  %v2231 = vshrl.u32 %v2230, 7
  %v2232 = vsub.s32 0, %v2231
  %v2233 = vrot.slane %v2228, %v2232
  %v2235 = vadd.f32 %v2227, %v2233
  %2236 = vst.msk [vmem:[#allocation2] sm:$0xff] %vm801, %v2235
  %v2237 = vld [vmem:[#allocation2] sm:$0xf]
  %v2238 = vld [vmem:[%s24] sm:$0xff]
  %v2239 = vld [vmem:[%s24 + $0x8] sm:$0xff]
  %v2241 = vsel %vm1205, %v2238, 0
  %v2244 = vsel %vm1205, %v2239, 0
  %v2247 = vsel %vm1209, %v2237, 0
  %2249 = vmatprep.subr.mxu0 0.0
  %2250 = vmatpush1.msra.mxu0 %v2247
  %2251 = vmatprep.subr.mxu0 0.0
  %2252 = vmatpush1.msra.mxu0 0.0
  %2253 = vmatprep.subr.mxu0 0.0
  %2254 = vmatpush1.msra.mxu0 0.0
  %2255 = vmatprep.subr.mxu0 0.0
  %2256 = vmatpush1.msra.mxu0 0.0
  %2257 = vmatprep.subr.mxu0 0.0
  %2258 = vmatpush1.msra.mxu0 0.0
  %2259 = vmatprep.subr.mxu0 0.0
  %2260 = vmatpush1.msra.mxu0 0.0
  %2261 = vmatprep.subr.mxu0 0.0
  %2262 = vmatpush1.msra.mxu0 0.0
  %2263 = vmatprep.subr.mxu0 0.0
  %2264 = vmatpush1.msra.mxu0 0.0
  %2265 = vmatprep.subr.mxu0 0.0
  %2266 = vmatpush1.msra.mxu0 0.0
  %2267 = vmatprep.subr.mxu0 0.0
  %2268 = vmatpush1.msra.mxu0 0.0
  %2269 = vmatprep.subr.mxu0 0.0
  %2270 = vmatpush1.msra.mxu0 0.0
  %2271 = vmatprep.subr.mxu0 0.0
  %2272 = vmatpush1.msra.mxu0 0.0
  %2273 = vmatprep.subr.mxu0 0.0
  %2274 = vmatpush1.msra.mxu0 0.0
  %2275 = vmatprep.subr.mxu0 0.0
  %2276 = vmatpush1.msra.mxu0 0.0
  %2277 = vmatprep.subr.mxu0 0.0
  %2278 = vmatpush1.msra.mxu0 0.0
  %2279 = vmatprep.subr.mxu0 0.0
  %2280 = vmatpush1.msra.mxu0 0.0
  %2281 = vmatprep.subr.mxu0 0.0
  %2282 = vmatpush1.msra.mxu0 0.0
  %2283 = vmatprep.subr.mxu0 0.0
  %2284 = vmatpush1.msra.mxu0 0.0
  %2285 = vmatprep.subr.mxu0 0.0
  %2286 = vmatpush1.msra.mxu0 0.0
  %2287 = vmatprep.subr.mxu0 0.0
  %2288 = vmatpush1.msra.mxu0 0.0
  %2289 = vmatprep.subr.mxu0 0.0
  %2290 = vmatpush1.msra.mxu0 0.0
  %2291 = vmatprep.subr.mxu0 0.0
  %2292 = vmatpush1.msra.mxu0 0.0
  %2293 = vmatprep.subr.mxu0 0.0
  %2294 = vmatpush1.msra.mxu0 0.0
  %2295 = vmatprep.subr.mxu0 0.0
  %2296 = vmatpush1.msra.mxu0 0.0
  %2297 = vmatprep.subr.mxu0 0.0
  %2298 = vmatpush1.msra.mxu0 0.0
  %2299 = vmatprep.subr.mxu0 0.0
  %2300 = vmatpush1.msra.mxu0 0.0
  %2301 = vmatprep.subr.mxu0 0.0
  %2302 = vmatpush1.msra.mxu0 0.0
  %2303 = vmatprep.subr.mxu0 0.0
  %2304 = vmatpush1.msra.mxu0 0.0
  %2305 = vmatprep.subr.mxu0 0.0
  %2306 = vmatpush1.msra.mxu0 0.0
  %2307 = vmatprep.subr.mxu0 0.0
  %2308 = vmatpush1.msra.mxu0 0.0
  %2309 = vmatprep.subr.mxu0 0.0
  %2310 = vmatpush1.msra.mxu0 0.0
  %2311 = vmatprep.subr.mxu0 0.0
  %2312 = vmatpush1.msra.mxu0 0.0
  %2313 = vmatprep.mubr.f32.mxu0 0.0
  %2314 = vmatmul.mubr.f32.gmra.mrb[0].mxu0 %v2241
  %v2315 = vpop.f32.mrb[0].mxu0
  %v2316 = vadd.f32 0.0, %v2315
  %v2317 = vpop.f32.mrb[0].mxu0
  %2318 = vmatprep.mubr.f32.mxu0 0.0
  %2319 = vmatmul.mubr.f32.gmra.mrb[0].mxu0 %v2244
  %v2320 = vpop.f32.mrb[0].mxu0
  %v2321 = vadd.f32 0.0, %v2320
  %v2322 = vpop.f32.mrb[0].mxu0
  %2323 = vdwg.mxu0
  %v2324 = vld [vmem:[%s25] sm:$0xff]
  %v2325 = vld [vmem:[%s25 + $0x8] sm:$0xff]
  %v2326 = vld [vmem:[%s25 + $0x10] sm:$0xff]
  %v2327 = vld [vmem:[%s25 + $0x18] sm:$0xff]
  %v2329 = vsel %vm801, %v2316, 0
  %v2332 = vsel %vm801, %v2321, 0
  %2334 = vmatprep.subr.mxu0 0.0
  %2335 = vmatpush1.msra.mxu0 %v2324
  %2336 = vmatprep.subr.mxu0 0.0
  %2337 = vmatpush1.msra.mxu0 %v2325
  %2338 = vmatprep.subr.mxu0 0.0
  %2339 = vmatpush1.msra.mxu0 %v2326
  %2340 = vmatprep.subr.mxu0 0.0
  %2341 = vmatpush1.msra.mxu0 %v2327
  %2342 = vmatprep.subr.mxu0 0.0
  %2343 = vmatpush1.msra.mxu0 0.0
  %2344 = vmatprep.subr.mxu0 0.0
  %2345 = vmatpush1.msra.mxu0 0.0
  %2346 = vmatprep.subr.mxu0 0.0
  %2347 = vmatpush1.msra.mxu0 0.0
  %2348 = vmatprep.subr.mxu0 0.0
  %2349 = vmatpush1.msra.mxu0 0.0
  %2350 = vmatprep.subr.mxu0 0.0
  %2351 = vmatpush1.msra.mxu0 0.0
  %2352 = vmatprep.subr.mxu0 0.0
  %2353 = vmatpush1.msra.mxu0 0.0
  %2354 = vmatprep.subr.mxu0 0.0
  %2355 = vmatpush1.msra.mxu0 0.0
  %2356 = vmatprep.subr.mxu0 0.0
  %2357 = vmatpush1.msra.mxu0 0.0
  %2358 = vmatprep.subr.mxu0 0.0
  %2359 = vmatpush1.msra.mxu0 0.0
  %2360 = vmatprep.subr.mxu0 0.0
  %2361 = vmatpush1.msra.mxu0 0.0
  %2362 = vmatprep.subr.mxu0 0.0
  %2363 = vmatpush1.msra.mxu0 0.0
  %2364 = vmatprep.subr.mxu0 0.0
  %2365 = vmatpush1.msra.mxu0 0.0
  %2366 = vmatprep.subr.mxu0 0.0
  %2367 = vmatpush1.msra.mxu0 0.0
  %2368 = vmatprep.subr.mxu0 0.0
  %2369 = vmatpush1.msra.mxu0 0.0
  %2370 = vmatprep.subr.mxu0 0.0
  %2371 = vmatpush1.msra.mxu0 0.0
  %2372 = vmatprep.subr.mxu0 0.0
  %2373 = vmatpush1.msra.mxu0 0.0
  %2374 = vmatprep.subr.mxu0 0.0
  %2375 = vmatpush1.msra.mxu0 0.0
  %2376 = vmatprep.subr.mxu0 0.0
  %2377 = vmatpush1.msra.mxu0 0.0
  %2378 = vmatprep.subr.mxu0 0.0
  %2379 = vmatpush1.msra.mxu0 0.0
  %2380 = vmatprep.subr.mxu0 0.0
  %2381 = vmatpush1.msra.mxu0 0.0
  %2382 = vmatprep.subr.mxu0 0.0
  %2383 = vmatpush1.msra.mxu0 0.0
  %2384 = vmatprep.subr.mxu0 0.0
  %2385 = vmatpush1.msra.mxu0 0.0
  %2386 = vmatprep.subr.mxu0 0.0
  %2387 = vmatpush1.msra.mxu0 0.0
  %2388 = vmatprep.subr.mxu0 0.0
  %2389 = vmatpush1.msra.mxu0 0.0
  %2390 = vmatprep.subr.mxu0 0.0
  %2391 = vmatpush1.msra.mxu0 0.0
  %2392 = vmatprep.subr.mxu0 0.0
  %2393 = vmatpush1.msra.mxu0 0.0
  %2394 = vmatprep.subr.mxu0 0.0
  %2395 = vmatpush1.msra.mxu0 0.0
  %2396 = vmatprep.subr.mxu0 0.0
  %2397 = vmatpush1.msra.mxu0 0.0
  %2398 = vmatprep.mubr.f32.mxu0 0.0
  %2399 = vmatmul.mubr.f32.gmra.mrb[0].mxu0 %v2329
  %v2400 = vpop.f32.mrb[0].mxu0
  %v2401 = vadd.f32 0.0, %v2400
  %v2402 = vpop.f32.mrb[0].mxu0
  %2403 = vmatprep.mubr.f32.mxu0 0.0
  %2404 = vmatmul.mubr.f32.gmra.mrb[0].mxu0 %v2332
  %v2405 = vpop.f32.mrb[0].mxu0
  %v2406 = vadd.f32 0.0, %v2405
  %v2407 = vpop.f32.mrb[0].mxu0
  %2408 = vdwg.mxu0
  %v2409 = vmax.f32 %v2401, 0.0
  %v2410 = vmax.f32 %v2406, 0.0
  %2411 = vst [vmem:[#allocation3] sm:$0xff] %v2409
  %2412 = vst [vmem:[#allocation3 + $0x8] sm:$0xff] %v2410
  %v2413 = vld [vmem:[#allocation2 + $0x4] sm:$0xf]
  %v2414 = vld [vmem:[%s24] sm:$0xff]
  %v2415 = vld [vmem:[%s24 + $0x8] sm:$0xff]
  %v2417 = vsel %vm1205, %v2414, 0
  %v2420 = vsel %vm1205, %v2415, 0
  %v2423 = vsel %vm1209, %v2413, 0
  %2425 = vmatprep.subr.mxu0 0.0
  %2426 = vmatpush1.msra.mxu0 %v2423
  %2427 = vmatprep.subr.mxu0 0.0
  %2428 = vmatpush1.msra.mxu0 0.0
  %2429 = vmatprep.subr.mxu0 0.0
  %2430 = vmatpush1.msra.mxu0 0.0
  %2431 = vmatprep.subr.mxu0 0.0
  %2432 = vmatpush1.msra.mxu0 0.0
  %2433 = vmatprep.subr.mxu0 0.0
  %2434 = vmatpush1.msra.mxu0 0.0
  %2435 = vmatprep.subr.mxu0 0.0
  %2436 = vmatpush1.msra.mxu0 0.0
  %2437 = vmatprep.subr.mxu0 0.0
  %2438 = vmatpush1.msra.mxu0 0.0
  %2439 = vmatprep.subr.mxu0 0.0
  %2440 = vmatpush1.msra.mxu0 0.0
  %2441 = vmatprep.subr.mxu0 0.0
  %2442 = vmatpush1.msra.mxu0 0.0
  %2443 = vmatprep.subr.mxu0 0.0
  %2444 = vmatpush1.msra.mxu0 0.0
  %2445 = vmatprep.subr.mxu0 0.0
  %2446 = vmatpush1.msra.mxu0 0.0
  %2447 = vmatprep.subr.mxu0 0.0
  %2448 = vmatpush1.msra.mxu0 0.0
  %2449 = vmatprep.subr.mxu0 0.0
  %2450 = vmatpush1.msra.mxu0 0.0
  %2451 = vmatprep.subr.mxu0 0.0
  %2452 = vmatpush1.msra.mxu0 0.0
  %2453 = vmatprep.subr.mxu0 0.0
  %2454 = vmatpush1.msra.mxu0 0.0
  %2455 = vmatprep.subr.mxu0 0.0
  %2456 = vmatpush1.msra.mxu0 0.0
  %2457 = vmatprep.subr.mxu0 0.0
  %2458 = vmatpush1.msra.mxu0 0.0
  %2459 = vmatprep.subr.mxu0 0.0
  %2460 = vmatpush1.msra.mxu0 0.0
  %2461 = vmatprep.subr.mxu0 0.0
  %2462 = vmatpush1.msra.mxu0 0.0
  %2463 = vmatprep.subr.mxu0 0.0
  %2464 = vmatpush1.msra.mxu0 0.0
  %2465 = vmatprep.subr.mxu0 0.0
  %2466 = vmatpush1.msra.mxu0 0.0
  %2467 = vmatprep.subr.mxu0 0.0
  %2468 = vmatpush1.msra.mxu0 0.0
  %2469 = vmatprep.subr.mxu0 0.0
  %2470 = vmatpush1.msra.mxu0 0.0
  %2471 = vmatprep.subr.mxu0 0.0
  %2472 = vmatpush1.msra.mxu0 0.0
  %2473 = vmatprep.subr.mxu0 0.0
  %2474 = vmatpush1.msra.mxu0 0.0
  %2475 = vmatprep.subr.mxu0 0.0
  %2476 = vmatpush1.msra.mxu0 0.0
  %2477 = vmatprep.subr.mxu0 0.0
  %2478 = vmatpush1.msra.mxu0 0.0
  %2479 = vmatprep.subr.mxu0 0.0
  %2480 = vmatpush1.msra.mxu0 0.0
  %2481 = vmatprep.subr.mxu0 0.0
  %2482 = vmatpush1.msra.mxu0 0.0
  %2483 = vmatprep.subr.mxu0 0.0
  %2484 = vmatpush1.msra.mxu0 0.0
  %2485 = vmatprep.subr.mxu0 0.0
  %2486 = vmatpush1.msra.mxu0 0.0
  %2487 = vmatprep.subr.mxu0 0.0
  %2488 = vmatpush1.msra.mxu0 0.0
  %2489 = vmatprep.mubr.f32.mxu0 0.0
  %2490 = vmatmul.mubr.f32.gmra.mrb[0].mxu0 %v2417
  %v2491 = vpop.f32.mrb[0].mxu0
  %v2492 = vadd.f32 0.0, %v2491
  %v2493 = vpop.f32.mrb[0].mxu0
  %2494 = vmatprep.mubr.f32.mxu0 0.0
  %2495 = vmatmul.mubr.f32.gmra.mrb[0].mxu0 %v2420
  %v2496 = vpop.f32.mrb[0].mxu0
  %v2497 = vadd.f32 0.0, %v2496
  %v2498 = vpop.f32.mrb[0].mxu0
  %2499 = vdwg.mxu0
  %v2500 = vld [vmem:[%s25] sm:$0xff]
  %v2501 = vld [vmem:[%s25 + $0x8] sm:$0xff]
  %v2502 = vld [vmem:[%s25 + $0x10] sm:$0xff]
  %v2503 = vld [vmem:[%s25 + $0x18] sm:$0xff]
  %v2505 = vsel %vm801, %v2492, 0
  %v2508 = vsel %vm801, %v2497, 0
  %2510 = vmatprep.subr.mxu0 0.0
  %2511 = vmatpush1.msra.mxu0 %v2500
  %2512 = vmatprep.subr.mxu0 0.0
  %2513 = vmatpush1.msra.mxu0 %v2501
  %2514 = vmatprep.subr.mxu0 0.0
  %2515 = vmatpush1.msra.mxu0 %v2502
  %2516 = vmatprep.subr.mxu0 0.0
  %2517 = vmatpush1.msra.mxu0 %v2503
  %2518 = vmatprep.subr.mxu0 0.0
  %2519 = vmatpush1.msra.mxu0 0.0
  %2520 = vmatprep.subr.mxu0 0.0
  %2521 = vmatpush1.msra.mxu0 0.0
  %2522 = vmatprep.subr.mxu0 0.0
  %2523 = vmatpush1.msra.mxu0 0.0
  %2524 = vmatprep.subr.mxu0 0.0
  %2525 = vmatpush1.msra.mxu0 0.0
  %2526 = vmatprep.subr.mxu0 0.0
  %2527 = vmatpush1.msra.mxu0 0.0
  %2528 = vmatprep.subr.mxu0 0.0
  %2529 = vmatpush1.msra.mxu0 0.0
  %2530 = vmatprep.subr.mxu0 0.0
  %2531 = vmatpush1.msra.mxu0 0.0
  %2532 = vmatprep.subr.mxu0 0.0
  %2533 = vmatpush1.msra.mxu0 0.0
  %2534 = vmatprep.subr.mxu0 0.0
  %2535 = vmatpush1.msra.mxu0 0.0
  %2536 = vmatprep.subr.mxu0 0.0
  %2537 = vmatpush1.msra.mxu0 0.0
  %2538 = vmatprep.subr.mxu0 0.0
  %2539 = vmatpush1.msra.mxu0 0.0
  %2540 = vmatprep.subr.mxu0 0.0
  %2541 = vmatpush1.msra.mxu0 0.0
  %2542 = vmatprep.subr.mxu0 0.0
  %2543 = vmatpush1.msra.mxu0 0.0
  %2544 = vmatprep.subr.mxu0 0.0
  %2545 = vmatpush1.msra.mxu0 0.0
  %2546 = vmatprep.subr.mxu0 0.0
  %2547 = vmatpush1.msra.mxu0 0.0
  %2548 = vmatprep.subr.mxu0 0.0
  %2549 = vmatpush1.msra.mxu0 0.0
  %2550 = vmatprep.subr.mxu0 0.0
  %2551 = vmatpush1.msra.mxu0 0.0
  %2552 = vmatprep.subr.mxu0 0.0
  %2553 = vmatpush1.msra.mxu0 0.0
  %2554 = vmatprep.subr.mxu0 0.0
  %2555 = vmatpush1.msra.mxu0 0.0
  %2556 = vmatprep.subr.mxu0 0.0
  %2557 = vmatpush1.msra.mxu0 0.0
  %2558 = vmatprep.subr.mxu0 0.0
  %2559 = vmatpush1.msra.mxu0 0.0
  %2560 = vmatprep.subr.mxu0 0.0
  %2561 = vmatpush1.msra.mxu0 0.0
  %2562 = vmatprep.subr.mxu0 0.0
  %2563 = vmatpush1.msra.mxu0 0.0
  %2564 = vmatprep.subr.mxu0 0.0
  %2565 = vmatpush1.msra.mxu0 0.0
  %2566 = vmatprep.subr.mxu0 0.0
  %2567 = vmatpush1.msra.mxu0 0.0
  %2568 = vmatprep.subr.mxu0 0.0
  %2569 = vmatpush1.msra.mxu0 0.0
  %2570 = vmatprep.subr.mxu0 0.0
  %2571 = vmatpush1.msra.mxu0 0.0
  %2572 = vmatprep.subr.mxu0 0.0
  %2573 = vmatpush1.msra.mxu0 0.0
  %2574 = vmatprep.mubr.f32.mxu0 0.0
  %2575 = vmatmul.mubr.f32.gmra.mrb[0].mxu0 %v2505
  %v2576 = vpop.f32.mrb[0].mxu0
  %v2577 = vadd.f32 0.0, %v2576
  %v2578 = vpop.f32.mrb[0].mxu0
  %2579 = vmatprep.mubr.f32.mxu0 0.0
  %2580 = vmatmul.mubr.f32.gmra.mrb[0].mxu0 %v2508
  %v2581 = vpop.f32.mrb[0].mxu0
  %v2582 = vadd.f32 0.0, %v2581
  %v2583 = vpop.f32.mrb[0].mxu0
  %2584 = vdwg.mxu0
  %v2585 = vmax.f32 %v2577, 0.0
  %v2586 = vmax.f32 %v2582, 0.0
  %2587 = vst [vmem:[#allocation3 + $0x10] sm:$0xff] %v2585
  %2588 = vst [vmem:[#allocation3 + $0x18] sm:$0xff] %v2586
  %v2589 = vld [vmem:[#allocation3] sm:$0xff]
  %v2590 = vld [vmem:[#allocation3 + $0x8] sm:$0xff]
  %v2591 = vld [vmem:[#allocation3 + $0x10] sm:$0xff]
  %v2592 = vld [vmem:[#allocation3 + $0x18] sm:$0xff]
  %v2593 = vpack.c.bf16 %v2590, %v2589
  %v2594 = vpack.c.bf16 %v2592, %v2591
  %s2595 = scalar_lea.vmem %s26, 64
  %v2596 = vld [vmem:[%s2595] sm:$0xf]
  %v2597 = vld [vmem:[%s2595 + $0x4] sm:$0xf]
  %v2598 = vld [vmem:[%s2595 + $0x8] sm:$0xf]
  %v2599 = vld [vmem:[%s2595 + $0xc] sm:$0xf]
  %v2600 = vld [vmem:[%s2595 + $0x10] sm:$0xf]
  %v2601 = vld [vmem:[%s2595 + $0x14] sm:$0xf]
  %v2602 = vld [vmem:[%s2595 + $0x18] sm:$0xf]
  %v2603 = vld [vmem:[%s2595 + $0x1c] sm:$0xf]
  %v2604 = vld [vmem:[%s2595 + $0x20] sm:$0xf]
  %v2605 = vld [vmem:[%s2595 + $0x24] sm:$0xf]
  %v2606 = vld [vmem:[%s2595 + $0x28] sm:$0xf]
  %v2607 = vld [vmem:[%s2595 + $0x2c] sm:$0xf]
  %v2608 = vld [vmem:[%s2595 + $0x30] sm:$0xf]
  %v2609 = vld [vmem:[%s2595 + $0x34] sm:$0xf]
  %v2610 = vld [vmem:[%s2595 + $0x38] sm:$0xf]
  %v2611 = vld [vmem:[%s2595 + $0x3c] sm:$0xf]
  %v2612 = vrot.slane %v2589, 7
  %v2613 = vrot.slane %v2590, 7
  %v2614 = vrot.slane %v2591, 7
  %v2615 = vrot.slane %v2592, 7
  %v2616 = vsel %vm166, %v2614, %v2615
  %v2617 = vsel %vm166, %v2613, %v2614
  %v2618 = vsel %vm166, %v2612, %v2613
  %v2619 = vsel %vm166, %v2615, %v2612
  %v2620 = vsel %vm158, %v2619, 0.0
  %v2621 = vsel %vm159, %v2618, 0.0
  %v2622 = vsel %vm160, %v2617, 0.0
  %v2623 = vsel %vm161, %v2616, 0.0
  %v2624 = vpack.c.bf16 %v2621, %v2620
  %v2625 = vpack.c.bf16 %v2623, %v2622
  %v2626 = vld [vmem:[%s26] sm:$0xf]
  %v2627 = vld [vmem:[%s26 + $0x4] sm:$0xf]
  %v2628 = vld [vmem:[%s26 + $0x8] sm:$0xf]
  %v2629 = vld [vmem:[%s26 + $0xc] sm:$0xf]
  %v2630 = vld [vmem:[%s26 + $0x10] sm:$0xf]
  %v2631 = vld [vmem:[%s26 + $0x14] sm:$0xf]
  %v2632 = vld [vmem:[%s26 + $0x18] sm:$0xf]
  %v2633 = vld [vmem:[%s26 + $0x1c] sm:$0xf]
  %v2634 = vld [vmem:[%s26 + $0x20] sm:$0xf]
  %v2635 = vld [vmem:[%s26 + $0x24] sm:$0xf]
  %v2636 = vld [vmem:[%s26 + $0x28] sm:$0xf]
  %v2637 = vld [vmem:[%s26 + $0x2c] sm:$0xf]
  %v2638 = vld [vmem:[%s26 + $0x30] sm:$0xf]
  %v2639 = vld [vmem:[%s26 + $0x34] sm:$0xf]
  %v2640 = vld [vmem:[%s26 + $0x38] sm:$0xf]
  %v2641 = vld [vmem:[%s26 + $0x3c] sm:$0xf]
  %v2658 = vunpack.c.l.b16 %v2626
  %v2659 = vunpack.c.l.b16 %v2627
  %v2660 = vunpack.c.l.b16 %v2628
  %v2661 = vunpack.c.l.b16 %v2629
  %v2662 = vunpack.c.l.b16 %v2630
  %v2663 = vunpack.c.l.b16 %v2631
  %v2664 = vunpack.c.l.b16 %v2632
  %v2665 = vunpack.c.l.b16 %v2633
  %v2666 = vunpack.c.l.b16 %v2634
  %v2667 = vunpack.c.l.b16 %v2635
  %v2668 = vunpack.c.l.b16 %v2636
  %v2669 = vunpack.c.l.b16 %v2637
  %v2670 = vunpack.c.l.b16 %v2638
  %v2671 = vunpack.c.l.b16 %v2639
  %v2672 = vunpack.c.l.b16 %v2640
  %v2673 = vunpack.c.l.b16 %v2641
  %v2674 = vpack.c.b16 %v2659, %v2658
  %v2675 = vpack.c.b16 %v2661, %v2660
  %v2676 = vpack.c.b16 %v2663, %v2662
  %v2677 = vpack.c.b16 %v2665, %v2664
  %v2678 = vpack.c.b16 %v2667, %v2666
  %v2679 = vpack.c.b16 %v2669, %v2668
  %v2680 = vpack.c.b16 %v2671, %v2670
  %v2681 = vpack.c.b16 %v2673, %v2672
  %2690 = vmatprep.subr.bf16.mxu0 0
  %2691 = vmatpush1.bf16.msra.mxu0 %v2674
  %2692 = vmatprep.subr.bf16.mxu0 0
  %2693 = vmatpush1.bf16.msra.mxu0 %v2675
  %2694 = vmatprep.subr.bf16.mxu0 0
  %2695 = vmatpush1.bf16.msra.mxu0 %v2676
  %2696 = vmatprep.subr.bf16.mxu0 0
  %2697 = vmatpush1.bf16.msra.mxu0 %v2677
  %2698 = vmatprep.subr.bf16.mxu0 0
  %2699 = vmatpush1.bf16.msra.mxu0 %v2678
  %2700 = vmatprep.subr.bf16.mxu0 0
  %2701 = vmatpush1.bf16.msra.mxu0 %v2679
  %2702 = vmatprep.subr.bf16.mxu0 0
  %2703 = vmatpush1.bf16.msra.mxu0 %v2680
  %2704 = vmatprep.subr.bf16.mxu0 0
  %2705 = vmatpush1.bf16.msra.mxu0 %v2681
  %2706 = vmatprep.subr.bf16.mxu0 0
  %2707 = vmatpush1.bf16.msra.mxu0 0
  %2708 = vmatprep.subr.bf16.mxu0 0
  %2709 = vmatpush1.bf16.msra.mxu0 0
  %2710 = vmatprep.subr.bf16.mxu0 0
  %2711 = vmatpush1.bf16.msra.mxu0 0
  %2712 = vmatprep.subr.bf16.mxu0 0
  %2713 = vmatpush1.bf16.msra.mxu0 0
  %2714 = vmatprep.subr.bf16.mxu0 0
  %2715 = vmatpush1.bf16.msra.mxu0 0
  %2716 = vmatprep.subr.bf16.mxu0 0
  %2717 = vmatpush1.bf16.msra.mxu0 0
  %2718 = vmatprep.subr.bf16.mxu0 0
  %2719 = vmatpush1.bf16.msra.mxu0 0
  %2720 = vmatprep.subr.bf16.mxu0 0
  %2721 = vmatpush1.bf16.msra.mxu0 0
  %2722 = vmatprep.mubr.bf16.mxu0 0
  %2723 = vmatmul.mubr.bf16.gmra.mrb[0].mxu0 %v2624
  %v2724 = vpop.f32.mrb[0].mxu0
  %v2725 = vadd.f32 0.0, %v2724
  %v2726 = vpop.f32.mrb[0].mxu0
  %v2727 = vpop.f32.mrb[0].mxu0
  %v2728 = vadd.f32 0.0, %v2727
  %v2729 = vpop.f32.mrb[0].mxu0
  %2730 = vmatprep.mubr.bf16.mxu0 0
  %2731 = vmatmul.mubr.bf16.gmra.mrb[0].mxu0 %v2625
  %v2732 = vpop.f32.mrb[0].mxu0
  %v2733 = vadd.f32 0.0, %v2732
  %v2734 = vpop.f32.mrb[0].mxu0
  %v2735 = vpop.f32.mrb[0].mxu0
  %v2736 = vadd.f32 0.0, %v2735
  %v2737 = vpop.f32.mrb[0].mxu0
  %2738 = vdwg.mxu0
  %v2755 = vunpack.c.l.b16 %v2596
  %v2756 = vunpack.c.l.b16 %v2597
  %v2757 = vunpack.c.l.b16 %v2598
  %v2758 = vunpack.c.l.b16 %v2599
  %v2759 = vunpack.c.l.b16 %v2600
  %v2760 = vunpack.c.l.b16 %v2601
  %v2761 = vunpack.c.l.b16 %v2602
  %v2762 = vunpack.c.l.b16 %v2603
  %v2763 = vunpack.c.l.b16 %v2604
  %v2764 = vunpack.c.l.b16 %v2605
  %v2765 = vunpack.c.l.b16 %v2606
  %v2766 = vunpack.c.l.b16 %v2607
  %v2767 = vunpack.c.l.b16 %v2608
  %v2768 = vunpack.c.l.b16 %v2609
  %v2769 = vunpack.c.l.b16 %v2610
  %v2770 = vunpack.c.l.b16 %v2611
  %v2771 = vpack.c.b16 %v2756, %v2755
  %v2772 = vpack.c.b16 %v2758, %v2757
  %v2773 = vpack.c.b16 %v2760, %v2759
  %v2774 = vpack.c.b16 %v2762, %v2761
  %v2775 = vpack.c.b16 %v2764, %v2763
  %v2776 = vpack.c.b16 %v2766, %v2765
  %v2777 = vpack.c.b16 %v2768, %v2767
  %v2778 = vpack.c.b16 %v2770, %v2769
  %2787 = vmatprep.subr.bf16.mxu0 0
  %2788 = vmatpush1.bf16.msra.mxu0 %v2771
  %2789 = vmatprep.subr.bf16.mxu0 0
  %2790 = vmatpush1.bf16.msra.mxu0 %v2772
  %2791 = vmatprep.subr.bf16.mxu0 0
  %2792 = vmatpush1.bf16.msra.mxu0 %v2773
  %2793 = vmatprep.subr.bf16.mxu0 0
  %2794 = vmatpush1.bf16.msra.mxu0 %v2774
  %2795 = vmatprep.subr.bf16.mxu0 0
  %2796 = vmatpush1.bf16.msra.mxu0 %v2775
  %2797 = vmatprep.subr.bf16.mxu0 0
  %2798 = vmatpush1.bf16.msra.mxu0 %v2776
  %2799 = vmatprep.subr.bf16.mxu0 0
  %2800 = vmatpush1.bf16.msra.mxu0 %v2777
  %2801 = vmatprep.subr.bf16.mxu0 0
  %2802 = vmatpush1.bf16.msra.mxu0 %v2778
  %2803 = vmatprep.subr.bf16.mxu0 0
  %2804 = vmatpush1.bf16.msra.mxu0 0
  %2805 = vmatprep.subr.bf16.mxu0 0
  %2806 = vmatpush1.bf16.msra.mxu0 0
  %2807 = vmatprep.subr.bf16.mxu0 0
  %2808 = vmatpush1.bf16.msra.mxu0 0
  %2809 = vmatprep.subr.bf16.mxu0 0
  %2810 = vmatpush1.bf16.msra.mxu0 0
  %2811 = vmatprep.subr.bf16.mxu0 0
  %2812 = vmatpush1.bf16.msra.mxu0 0
  %2813 = vmatprep.subr.bf16.mxu0 0
  %2814 = vmatpush1.bf16.msra.mxu0 0
  %2815 = vmatprep.subr.bf16.mxu0 0
  %2816 = vmatpush1.bf16.msra.mxu0 0
  %2817 = vmatprep.subr.bf16.mxu0 0
  %2818 = vmatpush1.bf16.msra.mxu0 0
  %2819 = vmatprep.mubr.bf16.mxu0 0
  %2820 = vmatmul.mubr.bf16.gmra.mrb[0].mxu0 %v2593
  %v2821 = vpop.f32.mrb[0].mxu0
  %v2822 = vadd.f32 %v2725, %v2821
  %v2823 = vpop.f32.mrb[0].mxu0
  %v2824 = vpop.f32.mrb[0].mxu0
  %v2825 = vadd.f32 %v2728, %v2824
  %v2826 = vpop.f32.mrb[0].mxu0
  %2827 = vmatprep.mubr.bf16.mxu0 0
  %2828 = vmatmul.mubr.bf16.gmra.mrb[0].mxu0 %v2594
  %v2829 = vpop.f32.mrb[0].mxu0
  %v2830 = vadd.f32 %v2733, %v2829
  %v2831 = vpop.f32.mrb[0].mxu0
  %v2832 = vpop.f32.mrb[0].mxu0
  %v2833 = vadd.f32 %v2736, %v2832
  %v2834 = vpop.f32.mrb[0].mxu0
  %2835 = vdwg.mxu0
  %v2836 = vrot.slane %v2589, 1
  %v2837 = vrot.slane %v2590, 1
  %v2838 = vrot.slane %v2591, 1
  %v2839 = vrot.slane %v2592, 1
  %v2840 = vsel %vm352, %v2838, %v2839
  %v2841 = vsel %vm352, %v2837, %v2838
  %v2842 = vsel %vm352, %v2836, %v2837
  %v2843 = vsel %vm352, %v2839, %v2836
  %v2844 = vsel %vm344, %v2842, 0.0
  %v2845 = vsel %vm345, %v2841, 0.0
  %v2846 = vsel %vm346, %v2840, 0.0
  %v2847 = vsel %vm347, %v2843, 0.0
  %v2848 = vpack.c.bf16 %v2845, %v2844
  %v2849 = vpack.c.bf16 %v2847, %v2846
  %s2850 = scalar_lea.vmem %s26, 128
  %v2851 = vld [vmem:[%s2850] sm:$0xf]
  %v2852 = vld [vmem:[%s2850 + $0x4] sm:$0xf]
  %v2853 = vld [vmem:[%s2850 + $0x8] sm:$0xf]
  %v2854 = vld [vmem:[%s2850 + $0xc] sm:$0xf]
  %v2855 = vld [vmem:[%s2850 + $0x10] sm:$0xf]
  %v2856 = vld [vmem:[%s2850 + $0x14] sm:$0xf]
  %v2857 = vld [vmem:[%s2850 + $0x18] sm:$0xf]
  %v2858 = vld [vmem:[%s2850 + $0x1c] sm:$0xf]
  %v2859 = vld [vmem:[%s2850 + $0x20] sm:$0xf]
  %v2860 = vld [vmem:[%s2850 + $0x24] sm:$0xf]
  %v2861 = vld [vmem:[%s2850 + $0x28] sm:$0xf]
  %v2862 = vld [vmem:[%s2850 + $0x2c] sm:$0xf]
  %v2863 = vld [vmem:[%s2850 + $0x30] sm:$0xf]
  %v2864 = vld [vmem:[%s2850 + $0x34] sm:$0xf]
  %v2865 = vld [vmem:[%s2850 + $0x38] sm:$0xf]
  %v2866 = vld [vmem:[%s2850 + $0x3c] sm:$0xf]
  %v2883 = vunpack.c.l.b16 %v2851
  %v2884 = vunpack.c.l.b16 %v2852
  %v2885 = vunpack.c.l.b16 %v2853
  %v2886 = vunpack.c.l.b16 %v2854
  %v2887 = vunpack.c.l.b16 %v2855
  %v2888 = vunpack.c.l.b16 %v2856
  %v2889 = vunpack.c.l.b16 %v2857
  %v2890 = vunpack.c.l.b16 %v2858
  %v2891 = vunpack.c.l.b16 %v2859
  %v2892 = vunpack.c.l.b16 %v2860
  %v2893 = vunpack.c.l.b16 %v2861
  %v2894 = vunpack.c.l.b16 %v2862
  %v2895 = vunpack.c.l.b16 %v2863
  %v2896 = vunpack.c.l.b16 %v2864
  %v2897 = vunpack.c.l.b16 %v2865
  %v2898 = vunpack.c.l.b16 %v2866
  %v2899 = vpack.c.b16 %v2884, %v2883
  %v2900 = vpack.c.b16 %v2886, %v2885
  %v2901 = vpack.c.b16 %v2888, %v2887
  %v2902 = vpack.c.b16 %v2890, %v2889
  %v2903 = vpack.c.b16 %v2892, %v2891
  %v2904 = vpack.c.b16 %v2894, %v2893
  %v2905 = vpack.c.b16 %v2896, %v2895
  %v2906 = vpack.c.b16 %v2898, %v2897
  %2915 = vmatprep.subr.bf16.mxu0 0
  %2916 = vmatpush1.bf16.msra.mxu0 %v2899
  %2917 = vmatprep.subr.bf16.mxu0 0
  %2918 = vmatpush1.bf16.msra.mxu0 %v2900
  %2919 = vmatprep.subr.bf16.mxu0 0
  %2920 = vmatpush1.bf16.msra.mxu0 %v2901
  %2921 = vmatprep.subr.bf16.mxu0 0
  %2922 = vmatpush1.bf16.msra.mxu0 %v2902
  %2923 = vmatprep.subr.bf16.mxu0 0
  %2924 = vmatpush1.bf16.msra.mxu0 %v2903
  %2925 = vmatprep.subr.bf16.mxu0 0
  %2926 = vmatpush1.bf16.msra.mxu0 %v2904
  %2927 = vmatprep.subr.bf16.mxu0 0
  %2928 = vmatpush1.bf16.msra.mxu0 %v2905
  %2929 = vmatprep.subr.bf16.mxu0 0
  %2930 = vmatpush1.bf16.msra.mxu0 %v2906
  %2931 = vmatprep.subr.bf16.mxu0 0
  %2932 = vmatpush1.bf16.msra.mxu0 0
  %2933 = vmatprep.subr.bf16.mxu0 0
  %2934 = vmatpush1.bf16.msra.mxu0 0
  %2935 = vmatprep.subr.bf16.mxu0 0
  %2936 = vmatpush1.bf16.msra.mxu0 0
  %2937 = vmatprep.subr.bf16.mxu0 0
  %2938 = vmatpush1.bf16.msra.mxu0 0
  %2939 = vmatprep.subr.bf16.mxu0 0
  %2940 = vmatpush1.bf16.msra.mxu0 0
  %2941 = vmatprep.subr.bf16.mxu0 0
  %2942 = vmatpush1.bf16.msra.mxu0 0
  %2943 = vmatprep.subr.bf16.mxu0 0
  %2944 = vmatpush1.bf16.msra.mxu0 0
  %2945 = vmatprep.subr.bf16.mxu0 0
  %2946 = vmatpush1.bf16.msra.mxu0 0
  %2947 = vmatprep.mubr.bf16.mxu0 0
  %2948 = vmatmul.mubr.bf16.gmra.mrb[0].mxu0 %v2848
  %v2949 = vpop.f32.mrb[0].mxu0
  %v2950 = vadd.f32 0.0, %v2949
  %v2951 = vpop.f32.mrb[0].mxu0
  %v2952 = vpop.f32.mrb[0].mxu0
  %v2953 = vadd.f32 0.0, %v2952
  %v2954 = vpop.f32.mrb[0].mxu0
  %2955 = vmatprep.mubr.bf16.mxu0 0
  %2956 = vmatmul.mubr.bf16.gmra.mrb[0].mxu0 %v2849
  %v2957 = vpop.f32.mrb[0].mxu0
  %v2958 = vadd.f32 0.0, %v2957
  %v2959 = vpop.f32.mrb[0].mxu0
  %v2960 = vpop.f32.mrb[0].mxu0
  %v2961 = vadd.f32 0.0, %v2960
  %v2962 = vpop.f32.mrb[0].mxu0
  %2963 = vdwg.mxu0
  %v2964 = vadd.f32 %v2822, %v2950
  %v2965 = vadd.f32 %v2825, %v2953
  %v2966 = vadd.f32 %v2830, %v2958
  %v2967 = vadd.f32 %v2833, %v2961
  %v2968 = vld [vmem:[%s27] sm:$0x1]
  %v2970 = vlaneseq
  %v2971 = vshrl.u32 %v2970, 7
  %v2972 = vsub.s32 0, %v2971
  %v2973 = vrot.slane %v2968, %v2972
  %v2975 = vadd.f32 %v2964, %v2973
  %v2976 = vadd.f32 %v2965, %v2973
  %v2977 = vadd.f32 %v2966, %v2973
  %v2978 = vadd.f32 %v2967, %v2973
  %v2979 = vtanh.pop %v2975
  %v2980 = vtanh.pop %v2976
  %v2981 = vtanh.pop %v2977
  %v2982 = vtanh.pop %v2978
  %2983 = vst.msk [vmem:[%s28] sm:$0xff] %vm209, %v2979
  %2984 = vst.msk [vmem:[%s28 + $0x8] sm:$0xff] %vm209, %v2980
  %2985 = vst.msk [vmem:[%s28 + $0x10] sm:$0xff] %vm209, %v2981
  %2986 = vst.msk [vmem:[%s28 + $0x18] sm:$0xff] %vm209, %v2982
  // Predicated region
  $region114: #{fwd.1} parent=0 // pred_check
    _
  $region115: #{fwd.1} parent=0 // pred_check_branch
    %2988 = sbr.rel (0) target = $region117
  $region116: #{fwd.1} parent=0 // pred_region
    _
  $region117: #{fwd.1} parent=0 // pred_fallthru
    _
  // Predicated region
  $region118: #{fwd.1} parent=0 // pred_check
    _
  $region119: #{fwd.1} parent=0 // pred_check_branch
    %2990 = sbr.rel (0) target = $region121
  $region120: #{fwd.1} parent=0 // pred_region
    _
  $region121: #{fwd.1} parent=0 // pred_fallthru
    _

</llo_original>
